<compile_context>
chip_gen: v6e
topology: v6e:2x2x1
jax: 0.10.0
libtpu: 0.0.40
codegen_flags: <defaults>
</compile_context>

<pallas_src>
import numpy as np
import jax
import jax.numpy as jnp
from jax.experimental import pallas as pl
from jax.experimental.pallas import tpu as pltpu


# ------------------------------ fused kernel --------------------------------

def cnn_fused_kernel(x_ref, a1_ref, b1_ref, a2_ref, b2_ref,
                     w1_ref, bf1_ref, w2_ref, bf2_ref, w3_ref, bf3_ref,
                     o_ref, p1_ref, p2_ref):
    f32 = jnp.float32

    # ---- conv1 (5x5, 3->6) + bias + ReLU + 2x2 max-pool --------------------
    # x_ref block: (1, 4, 8, 128); x_ref[0, m, r, :] is input row h = 4r + m,
    # lanes = w*4 + c (c padded 3->4).  Output rows ho are computed per residue
    # class (ho mod 4) so every load below is a contiguous sublane slice.
    cls = []
    for c4 in range(4):                                   # ho = c4 + 4t, t<7
        acc = jnp.zeros((7, 256), f32)
        for ki in range(5):
            s = c4 + ki
            xr = x_ref[0, s % 4, pl.ds(s // 4, 7), :]     # (7, 128)
            acc = acc + jnp.dot(xr, a1_ref[ki], preferred_element_type=f32)
        cls.append(jnp.maximum(acc + b1_ref[...], 0.0))   # (7, 256)
    for q in range(2):                                    # pooled-row parity
        yh = jnp.maximum(cls[2 * q], cls[2 * q + 1])      # H-pool
        p1_ref[q] = jnp.maximum(yh[:, :128], yh[:, 128:])  # W-pool -> (7, 128)

    # ---- conv2 (5x5, 6->16) + bias + ReLU + 2x2 max-pool -------------------
    # p1_ref[(hp%2), hp//2, :] holds pooled conv1 row hp, lanes = w*6 + c.
    par = []
    for p2 in range(2):                                   # ho2 = p2 + 2t, t<5
        acc = jnp.zeros((5, 256), f32)
        for ki in range(5):
            s = p2 + ki
            xr = p1_ref[s % 2, pl.ds(s // 2, 5), :]       # (5, 128)
            acc = acc + jnp.dot(xr, a2_ref[ki], preferred_element_type=f32)
        par.append(jnp.maximum(acc + b2_ref[...], 0.0))   # (5, 256)
    yh = jnp.maximum(par[0], par[1])                      # H-pool
    p2_ref[...] = jnp.maximum(yh[:, :128], yh[:, 128:])   # W-pool -> (5, 128)

    # ---- fc1 -> relu -> fc2 -> relu -> fc3 -> relu --------------------------
    # p2_ref[hp, wp*16+co] = pooled2 NHWC value; w1_ref absorbs the NCHW flatten.
    acc = jnp.zeros((1, 128), f32)
    for hp in range(5):
        acc = acc + jnp.dot(p2_ref[pl.ds(hp, 1), :], w1_ref[hp],
                            preferred_element_type=f32)
    h = jnp.maximum(acc + bf1_ref[...], 0.0)                                  # fc1
    h = jnp.maximum(jnp.dot(h, w2_ref[...], preferred_element_type=f32)
                    + bf2_ref[...], 0.0)                                      # fc2
    h = jnp.maximum(jnp.dot(h, w3_ref[...], preferred_element_type=f32)
                    + bf3_ref[...], 0.0)                                      # fc3
    o_ref[0] = h


# --------------------------- one-time weight packing -------------------------

def pack_params(p):
    """Repack PyTorch-convention params into the fused-kernel layout."""
    w1 = np.asarray(p['conv1_w'], np.float32)   # (6,3,5,5)   OIHW
    w2 = np.asarray(p['conv2_w'], np.float32)   # (16,6,5,5)
    b1 = np.asarray(p['conv1_b'], np.float32)
    b2 = np.asarray(p['conv2_b'], np.float32)
    f1w = np.asarray(p['fc1_w'], np.float32)    # (100, 400)  (out, in)
    f2w = np.asarray(p['fc2_w'], np.float32)    # (64, 100)
    f3w = np.asarray(p['fc3_w'], np.float32)    # (10, 64)

    # conv1 banded matrices: input lane = w*4+c, output lane =
    # (wo%2)*128 + (wo//2)*6 + co  (even/odd wo in separate 128-lane blocks).
    A1 = np.zeros((5, 128, 256), np.float32)
    b1row = np.zeros((1, 256), np.float32)
    for ki in range(5):
        for kj in range(5):
            blk = w1[:, :, ki, kj].T            # (cin=3, cout=6)
            for wo in range(28):
                ob = (wo % 2) * 128 + (wo // 2) * 6
                A1[ki, (wo + kj) * 4:(wo + kj) * 4 + 3, ob:ob + 6] = blk
    for wo in range(28):
        ob = (wo % 2) * 128 + (wo // 2) * 6
        b1row[0, ob:ob + 6] = b1

    # conv2 banded matrices: input lane = w*6+c, output lane =
    # (wo%2)*128 + (wo//2)*16 + co.
    A2 = np.zeros((5, 128, 256), np.float32)
    b2row = np.zeros((1, 256), np.float32)
    for ki in range(5):
        for kj in range(5):
            blk = w2[:, :, ki, kj].T            # (cin=6, cout=16)
            for wo in range(10):
                ob = (wo % 2) * 128 + (wo // 2) * 16
                A2[ki, (wo + kj) * 6:(wo + kj) * 6 + 6, ob:ob + 16] = blk
    for wo in range(10):
        ob = (wo % 2) * 128 + (wo // 2) * 16
        b2row[0, ob:ob + 16] = b2

    # fc1: absorb PyTorch's NCHW flatten (idx = co*25 + hp*5 + wp); pooled2
    # activation layout is row = hp, lane = wp*16 + co.  Pad K and N to 128.
    W1 = np.zeros((5, 128, 128), np.float32)
    for hp in range(5):
        for wp in range(5):
            for co in range(16):
                W1[hp, wp * 16 + co, :100] = f1w[:, co * 25 + hp * 5 + wp]
    BF1 = np.zeros((1, 128), np.float32); BF1[0, :100] = np.asarray(p['fc1_b'])
    W2 = np.zeros((128, 128), np.float32); W2[:100, :64] = f2w.T
    BF2 = np.zeros((1, 128), np.float32); BF2[0, :64] = np.asarray(p['fc2_b'])
    W3 = np.zeros((128, 128), np.float32); W3[:64, :10] = f3w.T
    BF3 = np.zeros((1, 128), np.float32); BF3[0, :10] = np.asarray(p['fc3_b'])

    packed = dict(a1=A1, b1=b1row, a2=A2, b2=b2row,
                  w1=W1, bf1=BF1, w2=W2, bf2=BF2, w3=W3, bf3=BF3)
    return {k: jnp.asarray(v) for k, v in packed.items()}


# ------------------------------- forward pass --------------------------------

@jax.jit
def cnn_forward(x_nchw, packed):
    B = x_nchw.shape[0]
    # Input repack (layout glue on the unavoidable HBM read): NCHW -> NHWC,
    # pad C 3->4 so each row is exactly 128 lanes (w*4+c), split rows by
    # (h mod 4) so all in-kernel shifted/pooled accesses are contiguous.
    xn = jnp.transpose(x_nchw, (0, 2, 3, 1))                     # (B,32,32,3)
    xn = jnp.pad(xn, ((0, 0), (0, 0), (0, 0), (0, 1)))           # (B,32,32,4)
    xr = xn.reshape(B, 8, 4, 128).transpose(0, 2, 1, 3)          # (B,4,8,128)

    out = pl.pallas_call(
        cnn_fused_kernel,
        out_shape=jax.ShapeDtypeStruct((B, 1, 128), jnp.float32),
        grid=(B,),
        in_specs=[
            pl.BlockSpec((1, 4, 8, 128), lambda i: (i, 0, 0, 0)),   # x
            pl.BlockSpec((5, 128, 256), lambda i: (0, 0, 0)),       # A1
            pl.BlockSpec((1, 256), lambda i: (0, 0)),               # b1 row
            pl.BlockSpec((5, 128, 256), lambda i: (0, 0, 0)),       # A2
            pl.BlockSpec((1, 256), lambda i: (0, 0)),               # b2 row
            pl.BlockSpec((5, 128, 128), lambda i: (0, 0, 0)),       # fc1 W
            pl.BlockSpec((1, 128), lambda i: (0, 0)),               # fc1 b
            pl.BlockSpec((128, 128), lambda i: (0, 0)),             # fc2 W
            pl.BlockSpec((1, 128), lambda i: (0, 0)),               # fc2 b
            pl.BlockSpec((128, 128), lambda i: (0, 0)),             # fc3 W
            pl.BlockSpec((1, 128), lambda i: (0, 0)),               # fc3 b
        ],
        out_specs=pl.BlockSpec((1, 1, 128), lambda i: (i, 0, 0)),
        scratch_shapes=[pltpu.VMEM((2, 7, 128), jnp.float32),       # pooled conv1
                        pltpu.VMEM((5, 128), jnp.float32)],         # pooled conv2
        compiler_params=pltpu.CompilerParams(
            dimension_semantics=("parallel",)),
    )(xr, packed['a1'], packed['b1'], packed['a2'], packed['b2'],
      packed['w1'], packed['bf1'], packed['w2'], packed['bf2'],
      packed['w3'], packed['bf3'])
    return out[:, 0, :10]


# ------------------------- deterministic parameters --------------------------

def init_params(key):
    ks = jax.random.split(key, 10)

    def u(k, shape, fan_in):
        bound = 1.0 / jnp.sqrt(float(fan_in))
        return jax.random.uniform(k, shape, jnp.float32, -bound, bound)

    return {
        'conv1_w': u(ks[0], (6, 3, 5, 5), 3 * 5 * 5),      # PyTorch OIHW
        'conv1_b': u(ks[1], (6,), 3 * 5 * 5),
        'conv2_w': u(ks[2], (16, 6, 5, 5), 6 * 5 * 5),
        'conv2_b': u(ks[3], (16,), 6 * 5 * 5),
        'fc1_w': u(ks[4], (100, 16 * 5 * 5), 16 * 5 * 5),  # PyTorch (out, in)
        'fc1_b': u(ks[5], (100,), 16 * 5 * 5),
        'fc2_w': u(ks[6], (64, 100), 100),
        'fc2_b': u(ks[7], (64,), 100),
        'fc3_w': u(ks[8], (10, 64), 64),
        'fc3_b': u(ks[9], (10,), 64),
    }


# ------------------------------ pure-JAX reference ---------------------------

def reference_forward(x_nchw, p):
    x = jnp.transpose(x_nchw, (0, 2, 3, 1))

    def conv(x, w_oihw, b):
        w = jnp.transpose(w_oihw, (2, 3, 1, 0))  # HWIO
        y = jax.lax.conv_general_dilated(
            x, w, (1, 1), 'VALID',
            dimension_numbers=('NHWC', 'HWIO', 'NHWC'))
        return jax.nn.relu(y + b)

    def pool(x):
        return jax.lax.reduce_window(x, -jnp.inf, jax.lax.max,
                                     (1, 2, 2, 1), (1, 2, 2, 1), 'VALID')

    x = pool(conv(x, p['conv1_w'], p['conv1_b']))
    x = pool(conv(x, p['conv2_w'], p['conv2_b']))
    x = jnp.transpose(x, (0, 3, 1, 2)).reshape(x.shape[0], -1)  # NCHW flatten
    for name in ('fc1', 'fc2', 'fc3'):
        x = jax.nn.relu(x @ p[name + '_w'].T + p[name + '_b'])
    return x


if __name__ == "__main__":
    key = jax.random.PRNGKey(0)
    kx, kp = jax.random.split(key)
    # NCHW like the PyTorch module; 32x32 spatial is required by 16*5*5 flatten.
    x = jax.random.normal(kx, (2, 3, 32, 32), jnp.float32)
    params = init_params(kp)
    packed = pack_params(params)          # one-time weight repack

    out = cnn_forward(x, packed)
    out = jax.block_until_ready(out)

    ref = reference_forward(x, params)
    assert out.shape == (2, 10), out.shape
    assert jnp.allclose(out, ref, atol=1e-4, rtol=1e-4), \
        float(jnp.max(jnp.abs(out - ref)))
    print("KERNEL_OK")
</pallas_src>

<mosaic_0001>
module attributes {stable_mosaic.version = 11 : i64} {
  func.func @cnn_fused_kernel(%arg0: i32, %arg1: memref<1x4x8x128xf32, #tpu.memory_space<vmem>>, %arg2: memref<5x128x256xf32, #tpu.memory_space<vmem>>, %arg3: memref<1x256xf32, #tpu.memory_space<vmem>>, %arg4: memref<5x128x256xf32, #tpu.memory_space<vmem>>, %arg5: memref<1x256xf32, #tpu.memory_space<vmem>>, %arg6: memref<5x128x128xf32, #tpu.memory_space<vmem>>, %arg7: memref<1x128xf32, #tpu.memory_space<vmem>>, %arg8: memref<128x128xf32, #tpu.memory_space<vmem>>, %arg9: memref<1x128xf32, #tpu.memory_space<vmem>>, %arg10: memref<128x128xf32, #tpu.memory_space<vmem>>, %arg11: memref<1x128xf32, #tpu.memory_space<vmem>>, %arg12: memref<1x1x128xf32, #tpu.memory_space<vmem>>, %arg13: memref<2x7x128xf32, #tpu.memory_space<vmem>>, %arg14: memref<5x128xf32, #tpu.memory_space<vmem>>) attributes {dimension_semantics = [#tpu.dimension_semantics<parallel>], iteration_bounds = array<i64: 2>, scalar_prefetch = 0 : i64, scratch_operands = 2 : i64, tpu.core_type = #tpu.core_type<tc>, window_params = [{transform_indices = @transform_0, window_bounds = array<i64: 1, 4, 8, 128>}, {pipeline_mode = #tpu.pipeline_mode<synchronous>, transform_indices = @transform_1, window_bounds = array<i64: 5, 128, 256>}, {pipeline_mode = #tpu.pipeline_mode<synchronous>, transform_indices = @transform_2, window_bounds = array<i64: 1, 256>}, {pipeline_mode = #tpu.pipeline_mode<synchronous>, transform_indices = @transform_3, window_bounds = array<i64: 5, 128, 256>}, {pipeline_mode = #tpu.pipeline_mode<synchronous>, transform_indices = @transform_4, window_bounds = array<i64: 1, 256>}, {pipeline_mode = #tpu.pipeline_mode<synchronous>, transform_indices = @transform_5, window_bounds = array<i64: 5, 128, 128>}, {pipeline_mode = #tpu.pipeline_mode<synchronous>, transform_indices = @transform_6, window_bounds = array<i64: 1, 128>}, {pipeline_mode = #tpu.pipeline_mode<synchronous>, transform_indices = @transform_7, window_bounds = array<i64: 128, 128>}, {pipeline_mode = #tpu.pipeline_mode<synchronous>, transform_indices = @transform_8, window_bounds = array<i64: 1, 128>}, {pipeline_mode = #tpu.pipeline_mode<synchronous>, transform_indices = @transform_9, window_bounds = array<i64: 128, 128>}, {pipeline_mode = #tpu.pipeline_mode<synchronous>, transform_indices = @transform_10, window_bounds = array<i64: 1, 128>}, {transform_indices = @transform_11, window_bounds = array<i64: 1, 1, 128>}]} {
    %cst = arith.constant 0.000000e+00 : f32
    %0 = vector.broadcast %cst : f32 to vector<7x256xf32>
    %c0 = arith.constant 0 : index
    %c0_0 = arith.constant 0 : index
    %c0_1 = arith.constant 0 : index
    %c0_2 = arith.constant 0 : index
    %1 = vector.load %arg1[%c0, %c0_0, %c0_1, %c0_2] : memref<1x4x8x128xf32, #tpu.memory_space<vmem>>, vector<1x1x7x128xf32>
    %2 = vector.shape_cast %1 : vector<1x1x7x128xf32> to vector<7x128xf32>
    %c0_3 = arith.constant 0 : index
    %c0_4 = arith.constant 0 : index
    %c0_5 = arith.constant 0 : index
    %3 = vector.load %arg2[%c0_3, %c0_4, %c0_5] : memref<5x128x256xf32, #tpu.memory_space<vmem>>, vector<1x128x256xf32>
    %4 = vector.shape_cast %3 : vector<1x128x256xf32> to vector<128x256xf32>
    %cst_6 = arith.constant dense<0.000000e+00> : vector<7x256xf32>
    %5 = tpu.matmul %2, %4, %cst_6 {dimension_numbers = #tpu.dot_dimension_numbers<[1], [0], [0], [1], [0, 0, 1, 1], [], []>} : vector<7x128xf32>, vector<128x256xf32>, vector<7x256xf32> -> vector<7x256xf32>
    %6 = arith.addf %0, %5 : vector<7x256xf32>
    %c0_7 = arith.constant 0 : index
    %c1 = arith.constant 1 : index
    %c0_8 = arith.constant 0 : index
    %c0_9 = arith.constant 0 : index
    %7 = vector.load %arg1[%c0_7, %c1, %c0_8, %c0_9] : memref<1x4x8x128xf32, #tpu.memory_space<vmem>>, vector<1x1x7x128xf32>
    %8 = vector.shape_cast %7 : vector<1x1x7x128xf32> to vector<7x128xf32>
    %c1_10 = arith.constant 1 : index
    %c0_11 = arith.constant 0 : index
    %c0_12 = arith.constant 0 : index
    %9 = vector.load %arg2[%c1_10, %c0_11, %c0_12] : memref<5x128x256xf32, #tpu.memory_space<vmem>>, vector<1x128x256xf32>
    %10 = vector.shape_cast %9 : vector<1x128x256xf32> to vector<128x256xf32>
    %cst_13 = arith.constant dense<0.000000e+00> : vector<7x256xf32>
    %11 = tpu.matmul %8, %10, %cst_13 {dimension_numbers = #tpu.dot_dimension_numbers<[1], [0], [0], [1], [0, 0, 1, 1], [], []>} : vector<7x128xf32>, vector<128x256xf32>, vector<7x256xf32> -> vector<7x256xf32>
    %12 = arith.addf %6, %11 : vector<7x256xf32>
    %c0_14 = arith.constant 0 : index
    %c2 = arith.constant 2 : index
    %c0_15 = arith.constant 0 : index
    %c0_16 = arith.constant 0 : index
    %13 = vector.load %arg1[%c0_14, %c2, %c0_15, %c0_16] : memref<1x4x8x128xf32, #tpu.memory_space<vmem>>, vector<1x1x7x128xf32>
    %14 = vector.shape_cast %13 : vector<1x1x7x128xf32> to vector<7x128xf32>
    %c2_17 = arith.constant 2 : index
    %c0_18 = arith.constant 0 : index
    %c0_19 = arith.constant 0 : index
    %15 = vector.load %arg2[%c2_17, %c0_18, %c0_19] : memref<5x128x256xf32, #tpu.memory_space<vmem>>, vector<1x128x256xf32>
    %16 = vector.shape_cast %15 : vector<1x128x256xf32> to vector<128x256xf32>
    %cst_20 = arith.constant dense<0.000000e+00> : vector<7x256xf32>
    %17 = tpu.matmul %14, %16, %cst_20 {dimension_numbers = #tpu.dot_dimension_numbers<[1], [0], [0], [1], [0, 0, 1, 1], [], []>} : vector<7x128xf32>, vector<128x256xf32>, vector<7x256xf32> -> vector<7x256xf32>
    %18 = arith.addf %12, %17 : vector<7x256xf32>
    %c0_21 = arith.constant 0 : index
    %c3 = arith.constant 3 : index
    %c0_22 = arith.constant 0 : index
    %c0_23 = arith.constant 0 : index
    %19 = vector.load %arg1[%c0_21, %c3, %c0_22, %c0_23] : memref<1x4x8x128xf32, #tpu.memory_space<vmem>>, vector<1x1x7x128xf32>
    %20 = vector.shape_cast %19 : vector<1x1x7x128xf32> to vector<7x128xf32>
    %c3_24 = arith.constant 3 : index
    %c0_25 = arith.constant 0 : index
    %c0_26 = arith.constant 0 : index
    %21 = vector.load %arg2[%c3_24, %c0_25, %c0_26] : memref<5x128x256xf32, #tpu.memory_space<vmem>>, vector<1x128x256xf32>
    %22 = vector.shape_cast %21 : vector<1x128x256xf32> to vector<128x256xf32>
    %cst_27 = arith.constant dense<0.000000e+00> : vector<7x256xf32>
    %23 = tpu.matmul %20, %22, %cst_27 {dimension_numbers = #tpu.dot_dimension_numbers<[1], [0], [0], [1], [0, 0, 1, 1], [], []>} : vector<7x128xf32>, vector<128x256xf32>, vector<7x256xf32> -> vector<7x256xf32>
    %24 = arith.addf %18, %23 : vector<7x256xf32>
    %c0_28 = arith.constant 0 : index
    %c0_29 = arith.constant 0 : index
    %c1_30 = arith.constant 1 : index
    %c0_31 = arith.constant 0 : index
    %25 = vector.load %arg1[%c0_28, %c0_29, %c1_30, %c0_31] : memref<1x4x8x128xf32, #tpu.memory_space<vmem>>, vector<1x1x7x128xf32>
    %26 = vector.shape_cast %25 : vector<1x1x7x128xf32> to vector<7x128xf32>
    %c4 = arith.constant 4 : index
    %c0_32 = arith.constant 0 : index
    %c0_33 = arith.constant 0 : index
    %27 = vector.load %arg2[%c4, %c0_32, %c0_33] : memref<5x128x256xf32, #tpu.memory_space<vmem>>, vector<1x128x256xf32>
    %28 = vector.shape_cast %27 : vector<1x128x256xf32> to vector<128x256xf32>
    %cst_34 = arith.constant dense<0.000000e+00> : vector<7x256xf32>
    %29 = tpu.matmul %26, %28, %cst_34 {dimension_numbers = #tpu.dot_dimension_numbers<[1], [0], [0], [1], [0, 0, 1, 1], [], []>} : vector<7x128xf32>, vector<128x256xf32>, vector<7x256xf32> -> vector<7x256xf32>
    %30 = arith.addf %24, %29 : vector<7x256xf32>
    %c0_35 = arith.constant 0 : index
    %c0_36 = arith.constant 0 : index
    %31 = vector.load %arg3[%c0_35, %c0_36] : memref<1x256xf32, #tpu.memory_space<vmem>>, vector<1x256xf32>
    %32 = vector.broadcast %31 : vector<1x256xf32> to vector<7x256xf32>
    %33 = arith.addf %30, %32 : vector<7x256xf32>
    %cst_37 = arith.constant 0.000000e+00 : f32
    %34 = vector.broadcast %cst_37 : f32 to vector<7x256xf32>
    %35 = arith.maximumf %33, %34 : vector<7x256xf32>
    %cst_38 = arith.constant 0.000000e+00 : f32
    %36 = vector.broadcast %cst_38 : f32 to vector<7x256xf32>
    %c0_39 = arith.constant 0 : index
    %c1_40 = arith.constant 1 : index
    %c0_41 = arith.constant 0 : index
    %c0_42 = arith.constant 0 : index
    %37 = vector.load %arg1[%c0_39, %c1_40, %c0_41, %c0_42] : memref<1x4x8x128xf32, #tpu.memory_space<vmem>>, vector<1x1x7x128xf32>
    %38 = vector.shape_cast %37 : vector<1x1x7x128xf32> to vector<7x128xf32>
    %c0_43 = arith.constant 0 : index
    %c0_44 = arith.constant 0 : index
    %c0_45 = arith.constant 0 : index
    %39 = vector.load %arg2[%c0_43, %c0_44, %c0_45] : memref<5x128x256xf32, #tpu.memory_space<vmem>>, vector<1x128x256xf32>
    %40 = vector.shape_cast %39 : vector<1x128x256xf32> to vector<128x256xf32>
    %cst_46 = arith.constant dense<0.000000e+00> : vector<7x256xf32>
    %41 = tpu.matmul %38, %40, %cst_46 {dimension_numbers = #tpu.dot_dimension_numbers<[1], [0], [0], [1], [0, 0, 1, 1], [], []>} : vector<7x128xf32>, vector<128x256xf32>, vector<7x256xf32> -> vector<7x256xf32>
    %42 = arith.addf %36, %41 : vector<7x256xf32>
    %c0_47 = arith.constant 0 : index
    %c2_48 = arith.constant 2 : index
    %c0_49 = arith.constant 0 : index
    %c0_50 = arith.constant 0 : index
    %43 = vector.load %arg1[%c0_47, %c2_48, %c0_49, %c0_50] : memref<1x4x8x128xf32, #tpu.memory_space<vmem>>, vector<1x1x7x128xf32>
    %44 = vector.shape_cast %43 : vector<1x1x7x128xf32> to vector<7x128xf32>
    %c1_51 = arith.constant 1 : index
    %c0_52 = arith.constant 0 : index
    %c0_53 = arith.constant 0 : index
    %45 = vector.load %arg2[%c1_51, %c0_52, %c0_53] : memref<5x128x256xf32, #tpu.memory_space<vmem>>, vector<1x128x256xf32>
    %46 = vector.shape_cast %45 : vector<1x128x256xf32> to vector<128x256xf32>
    %cst_54 = arith.constant dense<0.000000e+00> : vector<7x256xf32>
    %47 = tpu.matmul %44, %46, %cst_54 {dimension_numbers = #tpu.dot_dimension_numbers<[1], [0], [0], [1], [0, 0, 1, 1], [], []>} : vector<7x128xf32>, vector<128x256xf32>, vector<7x256xf32> -> vector<7x256xf32>
    %48 = arith.addf %42, %47 : vector<7x256xf32>
    %c0_55 = arith.constant 0 : index
    %c3_56 = arith.constant 3 : index
    %c0_57 = arith.constant 0 : index
    %c0_58 = arith.constant 0 : index
    %49 = vector.load %arg1[%c0_55, %c3_56, %c0_57, %c0_58] : memref<1x4x8x128xf32, #tpu.memory_space<vmem>>, vector<1x1x7x128xf32>
    %50 = vector.shape_cast %49 : vector<1x1x7x128xf32> to vector<7x128xf32>
    %c2_59 = arith.constant 2 : index
    %c0_60 = arith.constant 0 : index
    %c0_61 = arith.constant 0 : index
    %51 = vector.load %arg2[%c2_59, %c0_60, %c0_61] : memref<5x128x256xf32, #tpu.memory_space<vmem>>, vector<1x128x256xf32>
    %52 = vector.shape_cast %51 : vector<1x128x256xf32> to vector<128x256xf32>
    %cst_62 = arith.constant dense<0.000000e+00> : vector<7x256xf32>
    %53 = tpu.matmul %50, %52, %cst_62 {dimension_numbers = #tpu.dot_dimension_numbers<[1], [0], [0], [1], [0, 0, 1, 1], [], []>} : vector<7x128xf32>, vector<128x256xf32>, vector<7x256xf32> -> vector<7x256xf32>
    %54 = arith.addf %48, %53 : vector<7x256xf32>
    %c0_63 = arith.constant 0 : index
    %c0_64 = arith.constant 0 : index
    %c1_65 = arith.constant 1 : index
    %c0_66 = arith.constant 0 : index
    %55 = vector.load %arg1[%c0_63, %c0_64, %c1_65, %c0_66] : memref<1x4x8x128xf32, #tpu.memory_space<vmem>>, vector<1x1x7x128xf32>
    %56 = vector.shape_cast %55 : vector<1x1x7x128xf32> to vector<7x128xf32>
    %c3_67 = arith.constant 3 : index
    %c0_68 = arith.constant 0 : index
    %c0_69 = arith.constant 0 : index
    %57 = vector.load %arg2[%c3_67, %c0_68, %c0_69] : memref<5x128x256xf32, #tpu.memory_space<vmem>>, vector<1x128x256xf32>
    %58 = vector.shape_cast %57 : vector<1x128x256xf32> to vector<128x256xf32>
    %cst_70 = arith.constant dense<0.000000e+00> : vector<7x256xf32>
    %59 = tpu.matmul %56, %58, %cst_70 {dimension_numbers = #tpu.dot_dimension_numbers<[1], [0], [0], [1], [0, 0, 1, 1], [], []>} : vector<7x128xf32>, vector<128x256xf32>, vector<7x256xf32> -> vector<7x256xf32>
    %60 = arith.addf %54, %59 : vector<7x256xf32>
    %c0_71 = arith.constant 0 : index
    %c1_72 = arith.constant 1 : index
    %c1_73 = arith.constant 1 : index
    %c0_74 = arith.constant 0 : index
    %61 = vector.load %arg1[%c0_71, %c1_72, %c1_73, %c0_74] : memref<1x4x8x128xf32, #tpu.memory_space<vmem>>, vector<1x1x7x128xf32>
    %62 = vector.shape_cast %61 : vector<1x1x7x128xf32> to vector<7x128xf32>
    %c4_75 = arith.constant 4 : index
    %c0_76 = arith.constant 0 : index
    %c0_77 = arith.constant 0 : index
    %63 = vector.load %arg2[%c4_75, %c0_76, %c0_77] : memref<5x128x256xf32, #tpu.memory_space<vmem>>, vector<1x128x256xf32>
    %64 = vector.shape_cast %63 : vector<1x128x256xf32> to vector<128x256xf32>
    %cst_78 = arith.constant dense<0.000000e+00> : vector<7x256xf32>
    %65 = tpu.matmul %62, %64, %cst_78 {dimension_numbers = #tpu.dot_dimension_numbers<[1], [0], [0], [1], [0, 0, 1, 1], [], []>} : vector<7x128xf32>, vector<128x256xf32>, vector<7x256xf32> -> vector<7x256xf32>
    %66 = arith.addf %60, %65 : vector<7x256xf32>
    %c0_79 = arith.constant 0 : index
    %c0_80 = arith.constant 0 : index
    %67 = vector.load %arg3[%c0_79, %c0_80] : memref<1x256xf32, #tpu.memory_space<vmem>>, vector<1x256xf32>
    %68 = vector.broadcast %67 : vector<1x256xf32> to vector<7x256xf32>
    %69 = arith.addf %66, %68 : vector<7x256xf32>
    %cst_81 = arith.constant 0.000000e+00 : f32
    %70 = vector.broadcast %cst_81 : f32 to vector<7x256xf32>
    %71 = arith.maximumf %69, %70 : vector<7x256xf32>
    %cst_82 = arith.constant 0.000000e+00 : f32
    %72 = vector.broadcast %cst_82 : f32 to vector<7x256xf32>
    %c0_83 = arith.constant 0 : index
    %c2_84 = arith.constant 2 : index
    %c0_85 = arith.constant 0 : index
    %c0_86 = arith.constant 0 : index
    %73 = vector.load %arg1[%c0_83, %c2_84, %c0_85, %c0_86] : memref<1x4x8x128xf32, #tpu.memory_space<vmem>>, vector<1x1x7x128xf32>
    %74 = vector.shape_cast %73 : vector<1x1x7x128xf32> to vector<7x128xf32>
    %c0_87 = arith.constant 0 : index
    %c0_88 = arith.constant 0 : index
    %c0_89 = arith.constant 0 : index
    %75 = vector.load %arg2[%c0_87, %c0_88, %c0_89] : memref<5x128x256xf32, #tpu.memory_space<vmem>>, vector<1x128x256xf32>
    %76 = vector.shape_cast %75 : vector<1x128x256xf32> to vector<128x256xf32>
    %cst_90 = arith.constant dense<0.000000e+00> : vector<7x256xf32>
    %77 = tpu.matmul %74, %76, %cst_90 {dimension_numbers = #tpu.dot_dimension_numbers<[1], [0], [0], [1], [0, 0, 1, 1], [], []>} : vector<7x128xf32>, vector<128x256xf32>, vector<7x256xf32> -> vector<7x256xf32>
    %78 = arith.addf %72, %77 : vector<7x256xf32>
    %c0_91 = arith.constant 0 : index
    %c3_92 = arith.constant 3 : index
    %c0_93 = arith.constant 0 : index
    %c0_94 = arith.constant 0 : index
    %79 = vector.load %arg1[%c0_91, %c3_92, %c0_93, %c0_94] : memref<1x4x8x128xf32, #tpu.memory_space<vmem>>, vector<1x1x7x128xf32>
    %80 = vector.shape_cast %79 : vector<1x1x7x128xf32> to vector<7x128xf32>
    %c1_95 = arith.constant 1 : index
    %c0_96 = arith.constant 0 : index
    %c0_97 = arith.constant 0 : index
    %81 = vector.load %arg2[%c1_95, %c0_96, %c0_97] : memref<5x128x256xf32, #tpu.memory_space<vmem>>, vector<1x128x256xf32>
    %82 = vector.shape_cast %81 : vector<1x128x256xf32> to vector<128x256xf32>
    %cst_98 = arith.constant dense<0.000000e+00> : vector<7x256xf32>
    %83 = tpu.matmul %80, %82, %cst_98 {dimension_numbers = #tpu.dot_dimension_numbers<[1], [0], [0], [1], [0, 0, 1, 1], [], []>} : vector<7x128xf32>, vector<128x256xf32>, vector<7x256xf32> -> vector<7x256xf32>
    %84 = arith.addf %78, %83 : vector<7x256xf32>
    %c0_99 = arith.constant 0 : index
    %c0_100 = arith.constant 0 : index
    %c1_101 = arith.constant 1 : index
    %c0_102 = arith.constant 0 : index
    %85 = vector.load %arg1[%c0_99, %c0_100, %c1_101, %c0_102] : memref<1x4x8x128xf32, #tpu.memory_space<vmem>>, vector<1x1x7x128xf32>
    %86 = vector.shape_cast %85 : vector<1x1x7x128xf32> to vector<7x128xf32>
    %c2_103 = arith.constant 2 : index
    %c0_104 = arith.constant 0 : index
    %c0_105 = arith.constant 0 : index
    %87 = vector.load %arg2[%c2_103, %c0_104, %c0_105] : memref<5x128x256xf32, #tpu.memory_space<vmem>>, vector<1x128x256xf32>
    %88 = vector.shape_cast %87 : vector<1x128x256xf32> to vector<128x256xf32>
    %cst_106 = arith.constant dense<0.000000e+00> : vector<7x256xf32>
    %89 = tpu.matmul %86, %88, %cst_106 {dimension_numbers = #tpu.dot_dimension_numbers<[1], [0], [0], [1], [0, 0, 1, 1], [], []>} : vector<7x128xf32>, vector<128x256xf32>, vector<7x256xf32> -> vector<7x256xf32>
    %90 = arith.addf %84, %89 : vector<7x256xf32>
    %c0_107 = arith.constant 0 : index
    %c1_108 = arith.constant 1 : index
    %c1_109 = arith.constant 1 : index
    %c0_110 = arith.constant 0 : index
    %91 = vector.load %arg1[%c0_107, %c1_108, %c1_109, %c0_110] : memref<1x4x8x128xf32, #tpu.memory_space<vmem>>, vector<1x1x7x128xf32>
    %92 = vector.shape_cast %91 : vector<1x1x7x128xf32> to vector<7x128xf32>
    %c3_111 = arith.constant 3 : index
    %c0_112 = arith.constant 0 : index
    %c0_113 = arith.constant 0 : index
    %93 = vector.load %arg2[%c3_111, %c0_112, %c0_113] : memref<5x128x256xf32, #tpu.memory_space<vmem>>, vector<1x128x256xf32>
    %94 = vector.shape_cast %93 : vector<1x128x256xf32> to vector<128x256xf32>
    %cst_114 = arith.constant dense<0.000000e+00> : vector<7x256xf32>
    %95 = tpu.matmul %92, %94, %cst_114 {dimension_numbers = #tpu.dot_dimension_numbers<[1], [0], [0], [1], [0, 0, 1, 1], [], []>} : vector<7x128xf32>, vector<128x256xf32>, vector<7x256xf32> -> vector<7x256xf32>
    %96 = arith.addf %90, %95 : vector<7x256xf32>
    %c0_115 = arith.constant 0 : index
    %c2_116 = arith.constant 2 : index
    %c1_117 = arith.constant 1 : index
    %c0_118 = arith.constant 0 : index
    %97 = vector.load %arg1[%c0_115, %c2_116, %c1_117, %c0_118] : memref<1x4x8x128xf32, #tpu.memory_space<vmem>>, vector<1x1x7x128xf32>
    %98 = vector.shape_cast %97 : vector<1x1x7x128xf32> to vector<7x128xf32>
    %c4_119 = arith.constant 4 : index
    %c0_120 = arith.constant 0 : index
    %c0_121 = arith.constant 0 : index
    %99 = vector.load %arg2[%c4_119, %c0_120, %c0_121] : memref<5x128x256xf32, #tpu.memory_space<vmem>>, vector<1x128x256xf32>
    %100 = vector.shape_cast %99 : vector<1x128x256xf32> to vector<128x256xf32>
    %cst_122 = arith.constant dense<0.000000e+00> : vector<7x256xf32>
    %101 = tpu.matmul %98, %100, %cst_122 {dimension_numbers = #tpu.dot_dimension_numbers<[1], [0], [0], [1], [0, 0, 1, 1], [], []>} : vector<7x128xf32>, vector<128x256xf32>, vector<7x256xf32> -> vector<7x256xf32>
    %102 = arith.addf %96, %101 : vector<7x256xf32>
    %c0_123 = arith.constant 0 : index
    %c0_124 = arith.constant 0 : index
    %103 = vector.load %arg3[%c0_123, %c0_124] : memref<1x256xf32, #tpu.memory_space<vmem>>, vector<1x256xf32>
    %104 = vector.broadcast %103 : vector<1x256xf32> to vector<7x256xf32>
    %105 = arith.addf %102, %104 : vector<7x256xf32>
    %cst_125 = arith.constant 0.000000e+00 : f32
    %106 = vector.broadcast %cst_125 : f32 to vector<7x256xf32>
    %107 = arith.maximumf %105, %106 : vector<7x256xf32>
    %cst_126 = arith.constant 0.000000e+00 : f32
    %108 = vector.broadcast %cst_126 : f32 to vector<7x256xf32>
    %c0_127 = arith.constant 0 : index
    %c3_128 = arith.constant 3 : index
    %c0_129 = arith.constant 0 : index
    %c0_130 = arith.constant 0 : index
    %109 = vector.load %arg1[%c0_127, %c3_128, %c0_129, %c0_130] : memref<1x4x8x128xf32, #tpu.memory_space<vmem>>, vector<1x1x7x128xf32>
    %110 = vector.shape_cast %109 : vector<1x1x7x128xf32> to vector<7x128xf32>
    %c0_131 = arith.constant 0 : index
    %c0_132 = arith.constant 0 : index
    %c0_133 = arith.constant 0 : index
    %111 = vector.load %arg2[%c0_131, %c0_132, %c0_133] : memref<5x128x256xf32, #tpu.memory_space<vmem>>, vector<1x128x256xf32>
    %112 = vector.shape_cast %111 : vector<1x128x256xf32> to vector<128x256xf32>
    %cst_134 = arith.constant dense<0.000000e+00> : vector<7x256xf32>
    %113 = tpu.matmul %110, %112, %cst_134 {dimension_numbers = #tpu.dot_dimension_numbers<[1], [0], [0], [1], [0, 0, 1, 1], [], []>} : vector<7x128xf32>, vector<128x256xf32>, vector<7x256xf32> -> vector<7x256xf32>
    %114 = arith.addf %108, %113 : vector<7x256xf32>
    %c0_135 = arith.constant 0 : index
    %c0_136 = arith.constant 0 : index
    %c1_137 = arith.constant 1 : index
    %c0_138 = arith.constant 0 : index
    %115 = vector.load %arg1[%c0_135, %c0_136, %c1_137, %c0_138] : memref<1x4x8x128xf32, #tpu.memory_space<vmem>>, vector<1x1x7x128xf32>
    %116 = vector.shape_cast %115 : vector<1x1x7x128xf32> to vector<7x128xf32>
    %c1_139 = arith.constant 1 : index
    %c0_140 = arith.constant 0 : index
    %c0_141 = arith.constant 0 : index
    %117 = vector.load %arg2[%c1_139, %c0_140, %c0_141] : memref<5x128x256xf32, #tpu.memory_space<vmem>>, vector<1x128x256xf32>
    %118 = vector.shape_cast %117 : vector<1x128x256xf32> to vector<128x256xf32>
    %cst_142 = arith.constant dense<0.000000e+00> : vector<7x256xf32>
    %119 = tpu.matmul %116, %118, %cst_142 {dimension_numbers = #tpu.dot_dimension_numbers<[1], [0], [0], [1], [0, 0, 1, 1], [], []>} : vector<7x128xf32>, vector<128x256xf32>, vector<7x256xf32> -> vector<7x256xf32>
    %120 = arith.addf %114, %119 : vector<7x256xf32>
    %c0_143 = arith.constant 0 : index
    %c1_144 = arith.constant 1 : index
    %c1_145 = arith.constant 1 : index
    %c0_146 = arith.constant 0 : index
    %121 = vector.load %arg1[%c0_143, %c1_144, %c1_145, %c0_146] : memref<1x4x8x128xf32, #tpu.memory_space<vmem>>, vector<1x1x7x128xf32>
    %122 = vector.shape_cast %121 : vector<1x1x7x128xf32> to vector<7x128xf32>
    %c2_147 = arith.constant 2 : index
    %c0_148 = arith.constant 0 : index
    %c0_149 = arith.constant 0 : index
    %123 = vector.load %arg2[%c2_147, %c0_148, %c0_149] : memref<5x128x256xf32, #tpu.memory_space<vmem>>, vector<1x128x256xf32>
    %124 = vector.shape_cast %123 : vector<1x128x256xf32> to vector<128x256xf32>
    %cst_150 = arith.constant dense<0.000000e+00> : vector<7x256xf32>
    %125 = tpu.matmul %122, %124, %cst_150 {dimension_numbers = #tpu.dot_dimension_numbers<[1], [0], [0], [1], [0, 0, 1, 1], [], []>} : vector<7x128xf32>, vector<128x256xf32>, vector<7x256xf32> -> vector<7x256xf32>
    %126 = arith.addf %120, %125 : vector<7x256xf32>
    %c0_151 = arith.constant 0 : index
    %c2_152 = arith.constant 2 : index
    %c1_153 = arith.constant 1 : index
    %c0_154 = arith.constant 0 : index
    %127 = vector.load %arg1[%c0_151, %c2_152, %c1_153, %c0_154] : memref<1x4x8x128xf32, #tpu.memory_space<vmem>>, vector<1x1x7x128xf32>
    %128 = vector.shape_cast %127 : vector<1x1x7x128xf32> to vector<7x128xf32>
    %c3_155 = arith.constant 3 : index
    %c0_156 = arith.constant 0 : index
    %c0_157 = arith.constant 0 : index
    %129 = vector.load %arg2[%c3_155, %c0_156, %c0_157] : memref<5x128x256xf32, #tpu.memory_space<vmem>>, vector<1x128x256xf32>
    %130 = vector.shape_cast %129 : vector<1x128x256xf32> to vector<128x256xf32>
    %cst_158 = arith.constant dense<0.000000e+00> : vector<7x256xf32>
    %131 = tpu.matmul %128, %130, %cst_158 {dimension_numbers = #tpu.dot_dimension_numbers<[1], [0], [0], [1], [0, 0, 1, 1], [], []>} : vector<7x128xf32>, vector<128x256xf32>, vector<7x256xf32> -> vector<7x256xf32>
    %132 = arith.addf %126, %131 : vector<7x256xf32>
    %c0_159 = arith.constant 0 : index
    %c3_160 = arith.constant 3 : index
    %c1_161 = arith.constant 1 : index
    %c0_162 = arith.constant 0 : index
    %133 = vector.load %arg1[%c0_159, %c3_160, %c1_161, %c0_162] : memref<1x4x8x128xf32, #tpu.memory_space<vmem>>, vector<1x1x7x128xf32>
    %134 = vector.shape_cast %133 : vector<1x1x7x128xf32> to vector<7x128xf32>
    %c4_163 = arith.constant 4 : index
    %c0_164 = arith.constant 0 : index
    %c0_165 = arith.constant 0 : index
    %135 = vector.load %arg2[%c4_163, %c0_164, %c0_165] : memref<5x128x256xf32, #tpu.memory_space<vmem>>, vector<1x128x256xf32>
    %136 = vector.shape_cast %135 : vector<1x128x256xf32> to vector<128x256xf32>
    %cst_166 = arith.constant dense<0.000000e+00> : vector<7x256xf32>
    %137 = tpu.matmul %134, %136, %cst_166 {dimension_numbers = #tpu.dot_dimension_numbers<[1], [0], [0], [1], [0, 0, 1, 1], [], []>} : vector<7x128xf32>, vector<128x256xf32>, vector<7x256xf32> -> vector<7x256xf32>
    %138 = arith.addf %132, %137 : vector<7x256xf32>
    %c0_167 = arith.constant 0 : index
    %c0_168 = arith.constant 0 : index
    %139 = vector.load %arg3[%c0_167, %c0_168] : memref<1x256xf32, #tpu.memory_space<vmem>>, vector<1x256xf32>
    %140 = vector.broadcast %139 : vector<1x256xf32> to vector<7x256xf32>
    %141 = arith.addf %138, %140 : vector<7x256xf32>
    %cst_169 = arith.constant 0.000000e+00 : f32
    %142 = vector.broadcast %cst_169 : f32 to vector<7x256xf32>
    %143 = arith.maximumf %141, %142 : vector<7x256xf32>
    %144 = arith.maximumf %35, %71 : vector<7x256xf32>
    %145 = vector.extract_strided_slice %144 {offsets = [0, 0], sizes = [7, 128], strides = [1, 1]} : vector<7x256xf32> to vector<7x128xf32>
    %146 = vector.extract_strided_slice %144 {offsets = [0, 128], sizes = [7, 128], strides = [1, 1]} : vector<7x256xf32> to vector<7x128xf32>
    %147 = arith.maximumf %145, %146 : vector<7x128xf32>
    %c0_170 = arith.constant 0 : index
    %c0_171 = arith.constant 0 : index
    %c0_172 = arith.constant 0 : index
    %148 = vector.load %arg13[%c0_170, %c0_171, %c0_172] : memref<2x7x128xf32, #tpu.memory_space<vmem>>, vector<1x7x128xf32>
    %149 = vector.shape_cast %148 : vector<1x7x128xf32> to vector<7x128xf32>
    %150 = vector.shape_cast %147 : vector<7x128xf32> to vector<1x7x128xf32>
    tpu.vector_store %arg13[%c0_170, %c0_171, %c0_172], %150 {strides = array<i32>} : memref<2x7x128xf32, #tpu.memory_space<vmem>>, vector<1x7x128xf32>,
    %151 = arith.maximumf %107, %143 : vector<7x256xf32>
    %152 = vector.extract_strided_slice %151 {offsets = [0, 0], sizes = [7, 128], strides = [1, 1]} : vector<7x256xf32> to vector<7x128xf32>
    %153 = vector.extract_strided_slice %151 {offsets = [0, 128], sizes = [7, 128], strides = [1, 1]} : vector<7x256xf32> to vector<7x128xf32>
    %154 = arith.maximumf %152, %153 : vector<7x128xf32>
    %c1_173 = arith.constant 1 : index
    %c0_174 = arith.constant 0 : index
    %c0_175 = arith.constant 0 : index
    %155 = vector.load %arg13[%c1_173, %c0_174, %c0_175] : memref<2x7x128xf32, #tpu.memory_space<vmem>>, vector<1x7x128xf32>
    %156 = vector.shape_cast %155 : vector<1x7x128xf32> to vector<7x128xf32>
    %157 = vector.shape_cast %154 : vector<7x128xf32> to vector<1x7x128xf32>
    tpu.vector_store %arg13[%c1_173, %c0_174, %c0_175], %157 {strides = array<i32>} : memref<2x7x128xf32, #tpu.memory_space<vmem>>, vector<1x7x128xf32>,
    %cst_176 = arith.constant 0.000000e+00 : f32
    %158 = vector.broadcast %cst_176 : f32 to vector<5x256xf32>
    %c0_177 = arith.constant 0 : index
    %c0_178 = arith.constant 0 : index
    %c0_179 = arith.constant 0 : index
    %159 = vector.load %arg13[%c0_177, %c0_178, %c0_179] : memref<2x7x128xf32, #tpu.memory_space<vmem>>, vector<1x5x128xf32>
    %160 = vector.shape_cast %159 : vector<1x5x128xf32> to vector<5x128xf32>
    %c0_180 = arith.constant 0 : index
    %c0_181 = arith.constant 0 : index
    %c0_182 = arith.constant 0 : index
    %161 = vector.load %arg4[%c0_180, %c0_181, %c0_182] : memref<5x128x256xf32, #tpu.memory_space<vmem>>, vector<1x128x256xf32>
    %162 = vector.shape_cast %161 : vector<1x128x256xf32> to vector<128x256xf32>
    %cst_183 = arith.constant dense<0.000000e+00> : vector<5x256xf32>
    %163 = tpu.matmul %160, %162, %cst_183 {dimension_numbers = #tpu.dot_dimension_numbers<[1], [0], [0], [1], [0, 0, 1, 1], [], []>} : vector<5x128xf32>, vector<128x256xf32>, vector<5x256xf32> -> vector<5x256xf32>
    %164 = arith.addf %158, %163 : vector<5x256xf32>
    %c1_184 = arith.constant 1 : index
    %c0_185 = arith.constant 0 : index
    %c0_186 = arith.constant 0 : index
    %165 = vector.load %arg13[%c1_184, %c0_185, %c0_186] : memref<2x7x128xf32, #tpu.memory_space<vmem>>, vector<1x5x128xf32>
    %166 = vector.shape_cast %165 : vector<1x5x128xf32> to vector<5x128xf32>
    %c1_187 = arith.constant 1 : index
    %c0_188 = arith.constant 0 : index
    %c0_189 = arith.constant 0 : index
    %167 = vector.load %arg4[%c1_187, %c0_188, %c0_189] : memref<5x128x256xf32, #tpu.memory_space<vmem>>, vector<1x128x256xf32>
    %168 = vector.shape_cast %167 : vector<1x128x256xf32> to vector<128x256xf32>
    %cst_190 = arith.constant dense<0.000000e+00> : vector<5x256xf32>
    %169 = tpu.matmul %166, %168, %cst_190 {dimension_numbers = #tpu.dot_dimension_numbers<[1], [0], [0], [1], [0, 0, 1, 1], [], []>} : vector<5x128xf32>, vector<128x256xf32>, vector<5x256xf32> -> vector<5x256xf32>
    %170 = arith.addf %164, %169 : vector<5x256xf32>
    %c0_191 = arith.constant 0 : index
    %c1_192 = arith.constant 1 : index
    %c0_193 = arith.constant 0 : index
    %171 = vector.load %arg13[%c0_191, %c1_192, %c0_193] : memref<2x7x128xf32, #tpu.memory_space<vmem>>, vector<1x5x128xf32>
    %172 = vector.shape_cast %171 : vector<1x5x128xf32> to vector<5x128xf32>
    %c2_194 = arith.constant 2 : index
    %c0_195 = arith.constant 0 : index
    %c0_196 = arith.constant 0 : index
    %173 = vector.load %arg4[%c2_194, %c0_195, %c0_196] : memref<5x128x256xf32, #tpu.memory_space<vmem>>, vector<1x128x256xf32>
    %174 = vector.shape_cast %173 : vector<1x128x256xf32> to vector<128x256xf32>
    %cst_197 = arith.constant dense<0.000000e+00> : vector<5x256xf32>
    %175 = tpu.matmul %172, %174, %cst_197 {dimension_numbers = #tpu.dot_dimension_numbers<[1], [0], [0], [1], [0, 0, 1, 1], [], []>} : vector<5x128xf32>, vector<128x256xf32>, vector<5x256xf32> -> vector<5x256xf32>
    %176 = arith.addf %170, %175 : vector<5x256xf32>
    %c1_198 = arith.constant 1 : index
    %c1_199 = arith.constant 1 : index
    %c0_200 = arith.constant 0 : index
    %177 = vector.load %arg13[%c1_198, %c1_199, %c0_200] : memref<2x7x128xf32, #tpu.memory_space<vmem>>, vector<1x5x128xf32>
    %178 = vector.shape_cast %177 : vector<1x5x128xf32> to vector<5x128xf32>
    %c3_201 = arith.constant 3 : index
    %c0_202 = arith.constant 0 : index
    %c0_203 = arith.constant 0 : index
    %179 = vector.load %arg4[%c3_201, %c0_202, %c0_203] : memref<5x128x256xf32, #tpu.memory_space<vmem>>, vector<1x128x256xf32>
    %180 = vector.shape_cast %179 : vector<1x128x256xf32> to vector<128x256xf32>
    %cst_204 = arith.constant dense<0.000000e+00> : vector<5x256xf32>
    %181 = tpu.matmul %178, %180, %cst_204 {dimension_numbers = #tpu.dot_dimension_numbers<[1], [0], [0], [1], [0, 0, 1, 1], [], []>} : vector<5x128xf32>, vector<128x256xf32>, vector<5x256xf32> -> vector<5x256xf32>
    %182 = arith.addf %176, %181 : vector<5x256xf32>
    %c0_205 = arith.constant 0 : index
    %c2_206 = arith.constant 2 : index
    %c0_207 = arith.constant 0 : index
    %183 = vector.load %arg13[%c0_205, %c2_206, %c0_207] : memref<2x7x128xf32, #tpu.memory_space<vmem>>, vector<1x5x128xf32>
    %184 = vector.shape_cast %183 : vector<1x5x128xf32> to vector<5x128xf32>
    %c4_208 = arith.constant 4 : index
    %c0_209 = arith.constant 0 : index
    %c0_210 = arith.constant 0 : index
    %185 = vector.load %arg4[%c4_208, %c0_209, %c0_210] : memref<5x128x256xf32, #tpu.memory_space<vmem>>, vector<1x128x256xf32>
    %186 = vector.shape_cast %185 : vector<1x128x256xf32> to vector<128x256xf32>
    %cst_211 = arith.constant dense<0.000000e+00> : vector<5x256xf32>
    %187 = tpu.matmul %184, %186, %cst_211 {dimension_numbers = #tpu.dot_dimension_numbers<[1], [0], [0], [1], [0, 0, 1, 1], [], []>} : vector<5x128xf32>, vector<128x256xf32>, vector<5x256xf32> -> vector<5x256xf32>
    %188 = arith.addf %182, %187 : vector<5x256xf32>
    %c0_212 = arith.constant 0 : index
    %c0_213 = arith.constant 0 : index
    %189 = vector.load %arg5[%c0_212, %c0_213] : memref<1x256xf32, #tpu.memory_space<vmem>>, vector<1x256xf32>
    %190 = vector.broadcast %189 : vector<1x256xf32> to vector<5x256xf32>
    %191 = arith.addf %188, %190 : vector<5x256xf32>
    %cst_214 = arith.constant 0.000000e+00 : f32
    %192 = vector.broadcast %cst_214 : f32 to vector<5x256xf32>
    %193 = arith.maximumf %191, %192 : vector<5x256xf32>
    %cst_215 = arith.constant 0.000000e+00 : f32
    %194 = vector.broadcast %cst_215 : f32 to vector<5x256xf32>
    %c1_216 = arith.constant 1 : index
    %c0_217 = arith.constant 0 : index
    %c0_218 = arith.constant 0 : index
    %195 = vector.load %arg13[%c1_216, %c0_217, %c0_218] : memref<2x7x128xf32, #tpu.memory_space<vmem>>, vector<1x5x128xf32>
    %196 = vector.shape_cast %195 : vector<1x5x128xf32> to vector<5x128xf32>
    %c0_219 = arith.constant 0 : index
    %c0_220 = arith.constant 0 : index
    %c0_221 = arith.constant 0 : index
    %197 = vector.load %arg4[%c0_219, %c0_220, %c0_221] : memref<5x128x256xf32, #tpu.memory_space<vmem>>, vector<1x128x256xf32>
    %198 = vector.shape_cast %197 : vector<1x128x256xf32> to vector<128x256xf32>
    %cst_222 = arith.constant dense<0.000000e+00> : vector<5x256xf32>
    %199 = tpu.matmul %196, %198, %cst_222 {dimension_numbers = #tpu.dot_dimension_numbers<[1], [0], [0], [1], [0, 0, 1, 1], [], []>} : vector<5x128xf32>, vector<128x256xf32>, vector<5x256xf32> -> vector<5x256xf32>
    %200 = arith.addf %194, %199 : vector<5x256xf32>
    %c0_223 = arith.constant 0 : index
    %c1_224 = arith.constant 1 : index
    %c0_225 = arith.constant 0 : index
    %201 = vector.load %arg13[%c0_223, %c1_224, %c0_225] : memref<2x7x128xf32, #tpu.memory_space<vmem>>, vector<1x5x128xf32>
    %202 = vector.shape_cast %201 : vector<1x5x128xf32> to vector<5x128xf32>
    %c1_226 = arith.constant 1 : index
    %c0_227 = arith.constant 0 : index
    %c0_228 = arith.constant 0 : index
    %203 = vector.load %arg4[%c1_226, %c0_227, %c0_228] : memref<5x128x256xf32, #tpu.memory_space<vmem>>, vector<1x128x256xf32>
    %204 = vector.shape_cast %203 : vector<1x128x256xf32> to vector<128x256xf32>
    %cst_229 = arith.constant dense<0.000000e+00> : vector<5x256xf32>
    %205 = tpu.matmul %202, %204, %cst_229 {dimension_numbers = #tpu.dot_dimension_numbers<[1], [0], [0], [1], [0, 0, 1, 1], [], []>} : vector<5x128xf32>, vector<128x256xf32>, vector<5x256xf32> -> vector<5x256xf32>
    %206 = arith.addf %200, %205 : vector<5x256xf32>
    %c1_230 = arith.constant 1 : index
    %c1_231 = arith.constant 1 : index
    %c0_232 = arith.constant 0 : index
    %207 = vector.load %arg13[%c1_230, %c1_231, %c0_232] : memref<2x7x128xf32, #tpu.memory_space<vmem>>, vector<1x5x128xf32>
    %208 = vector.shape_cast %207 : vector<1x5x128xf32> to vector<5x128xf32>
    %c2_233 = arith.constant 2 : index
    %c0_234 = arith.constant 0 : index
    %c0_235 = arith.constant 0 : index
    %209 = vector.load %arg4[%c2_233, %c0_234, %c0_235] : memref<5x128x256xf32, #tpu.memory_space<vmem>>, vector<1x128x256xf32>
    %210 = vector.shape_cast %209 : vector<1x128x256xf32> to vector<128x256xf32>
    %cst_236 = arith.constant dense<0.000000e+00> : vector<5x256xf32>
    %211 = tpu.matmul %208, %210, %cst_236 {dimension_numbers = #tpu.dot_dimension_numbers<[1], [0], [0], [1], [0, 0, 1, 1], [], []>} : vector<5x128xf32>, vector<128x256xf32>, vector<5x256xf32> -> vector<5x256xf32>
    %212 = arith.addf %206, %211 : vector<5x256xf32>
    %c0_237 = arith.constant 0 : index
    %c2_238 = arith.constant 2 : index
    %c0_239 = arith.constant 0 : index
    %213 = vector.load %arg13[%c0_237, %c2_238, %c0_239] : memref<2x7x128xf32, #tpu.memory_space<vmem>>, vector<1x5x128xf32>
    %214 = vector.shape_cast %213 : vector<1x5x128xf32> to vector<5x128xf32>
    %c3_240 = arith.constant 3 : index
    %c0_241 = arith.constant 0 : index
    %c0_242 = arith.constant 0 : index
    %215 = vector.load %arg4[%c3_240, %c0_241, %c0_242] : memref<5x128x256xf32, #tpu.memory_space<vmem>>, vector<1x128x256xf32>
    %216 = vector.shape_cast %215 : vector<1x128x256xf32> to vector<128x256xf32>
    %cst_243 = arith.constant dense<0.000000e+00> : vector<5x256xf32>
    %217 = tpu.matmul %214, %216, %cst_243 {dimension_numbers = #tpu.dot_dimension_numbers<[1], [0], [0], [1], [0, 0, 1, 1], [], []>} : vector<5x128xf32>, vector<128x256xf32>, vector<5x256xf32> -> vector<5x256xf32>
    %218 = arith.addf %212, %217 : vector<5x256xf32>
    %c1_244 = arith.constant 1 : index
    %c2_245 = arith.constant 2 : index
    %c0_246 = arith.constant 0 : index
    %219 = vector.load %arg13[%c1_244, %c2_245, %c0_246] : memref<2x7x128xf32, #tpu.memory_space<vmem>>, vector<1x5x128xf32>
    %220 = vector.shape_cast %219 : vector<1x5x128xf32> to vector<5x128xf32>
    %c4_247 = arith.constant 4 : index
    %c0_248 = arith.constant 0 : index
    %c0_249 = arith.constant 0 : index
    %221 = vector.load %arg4[%c4_247, %c0_248, %c0_249] : memref<5x128x256xf32, #tpu.memory_space<vmem>>, vector<1x128x256xf32>
    %222 = vector.shape_cast %221 : vector<1x128x256xf32> to vector<128x256xf32>
    %cst_250 = arith.constant dense<0.000000e+00> : vector<5x256xf32>
    %223 = tpu.matmul %220, %222, %cst_250 {dimension_numbers = #tpu.dot_dimension_numbers<[1], [0], [0], [1], [0, 0, 1, 1], [], []>} : vector<5x128xf32>, vector<128x256xf32>, vector<5x256xf32> -> vector<5x256xf32>
    %224 = arith.addf %218, %223 : vector<5x256xf32>
    %c0_251 = arith.constant 0 : index
    %c0_252 = arith.constant 0 : index
    %225 = vector.load %arg5[%c0_251, %c0_252] : memref<1x256xf32, #tpu.memory_space<vmem>>, vector<1x256xf32>
    %226 = vector.broadcast %225 : vector<1x256xf32> to vector<5x256xf32>
    %227 = arith.addf %224, %226 : vector<5x256xf32>
    %cst_253 = arith.constant 0.000000e+00 : f32
    %228 = vector.broadcast %cst_253 : f32 to vector<5x256xf32>
    %229 = arith.maximumf %227, %228 : vector<5x256xf32>
    %230 = arith.maximumf %193, %229 : vector<5x256xf32>
    %231 = vector.extract_strided_slice %230 {offsets = [0, 0], sizes = [5, 128], strides = [1, 1]} : vector<5x256xf32> to vector<5x128xf32>
    %232 = vector.extract_strided_slice %230 {offsets = [0, 128], sizes = [5, 128], strides = [1, 1]} : vector<5x256xf32> to vector<5x128xf32>
    %233 = arith.maximumf %231, %232 : vector<5x128xf32>
    %c0_254 = arith.constant 0 : index
    %c0_255 = arith.constant 0 : index
    %234 = vector.load %arg14[%c0_254, %c0_255] : memref<5x128xf32, #tpu.memory_space<vmem>>, vector<5x128xf32>
    tpu.vector_store %arg14[%c0_254, %c0_255], %233 {strides = array<i32>} : memref<5x128xf32, #tpu.memory_space<vmem>>, vector<5x128xf32>,
    %cst_256 = arith.constant 0.000000e+00 : f32
    %235 = vector.broadcast %cst_256 : f32 to vector<1x128xf32>
    %c0_257 = arith.constant 0 : index
    %c0_258 = arith.constant 0 : index
    %236 = vector.load %arg14[%c0_257, %c0_258] : memref<5x128xf32, #tpu.memory_space<vmem>>, vector<1x128xf32>
    %c0_259 = arith.constant 0 : index
    %c0_260 = arith.constant 0 : index
    %c0_261 = arith.constant 0 : index
    %237 = vector.load %arg6[%c0_259, %c0_260, %c0_261] : memref<5x128x128xf32, #tpu.memory_space<vmem>>, vector<1x128x128xf32>
    %238 = vector.shape_cast %237 : vector<1x128x128xf32> to vector<128x128xf32>
    %cst_262 = arith.constant dense<0.000000e+00> : vector<1x128xf32>
    %239 = tpu.matmul %236, %238, %cst_262 {dimension_numbers = #tpu.dot_dimension_numbers<[1], [0], [0], [1], [0, 0, 1, 1], [], []>} : vector<1x128xf32>, vector<128x128xf32>, vector<1x128xf32> -> vector<1x128xf32>
    %240 = arith.addf %235, %239 : vector<1x128xf32>
    %c1_263 = arith.constant 1 : index
    %c0_264 = arith.constant 0 : index
    %241 = vector.load %arg14[%c1_263, %c0_264] : memref<5x128xf32, #tpu.memory_space<vmem>>, vector<1x128xf32>
    %c1_265 = arith.constant 1 : index
    %c0_266 = arith.constant 0 : index
    %c0_267 = arith.constant 0 : index
    %242 = vector.load %arg6[%c1_265, %c0_266, %c0_267] : memref<5x128x128xf32, #tpu.memory_space<vmem>>, vector<1x128x128xf32>
    %243 = vector.shape_cast %242 : vector<1x128x128xf32> to vector<128x128xf32>
    %cst_268 = arith.constant dense<0.000000e+00> : vector<1x128xf32>
    %244 = tpu.matmul %241, %243, %cst_268 {dimension_numbers = #tpu.dot_dimension_numbers<[1], [0], [0], [1], [0, 0, 1, 1], [], []>} : vector<1x128xf32>, vector<128x128xf32>, vector<1x128xf32> -> vector<1x128xf32>
    %245 = arith.addf %240, %244 : vector<1x128xf32>
    %c2_269 = arith.constant 2 : index
    %c0_270 = arith.constant 0 : index
    %246 = vector.load %arg14[%c2_269, %c0_270] : memref<5x128xf32, #tpu.memory_space<vmem>>, vector<1x128xf32>
    %c2_271 = arith.constant 2 : index
    %c0_272 = arith.constant 0 : index
    %c0_273 = arith.constant 0 : index
    %247 = vector.load %arg6[%c2_271, %c0_272, %c0_273] : memref<5x128x128xf32, #tpu.memory_space<vmem>>, vector<1x128x128xf32>
    %248 = vector.shape_cast %247 : vector<1x128x128xf32> to vector<128x128xf32>
    %cst_274 = arith.constant dense<0.000000e+00> : vector<1x128xf32>
    %249 = tpu.matmul %246, %248, %cst_274 {dimension_numbers = #tpu.dot_dimension_numbers<[1], [0], [0], [1], [0, 0, 1, 1], [], []>} : vector<1x128xf32>, vector<128x128xf32>, vector<1x128xf32> -> vector<1x128xf32>
    %250 = arith.addf %245, %249 : vector<1x128xf32>
    %c3_275 = arith.constant 3 : index
    %c0_276 = arith.constant 0 : index
    %251 = vector.load %arg14[%c3_275, %c0_276] : memref<5x128xf32, #tpu.memory_space<vmem>>, vector<1x128xf32>
    %c3_277 = arith.constant 3 : index
    %c0_278 = arith.constant 0 : index
    %c0_279 = arith.constant 0 : index
    %252 = vector.load %arg6[%c3_277, %c0_278, %c0_279] : memref<5x128x128xf32, #tpu.memory_space<vmem>>, vector<1x128x128xf32>
    %253 = vector.shape_cast %252 : vector<1x128x128xf32> to vector<128x128xf32>
    %cst_280 = arith.constant dense<0.000000e+00> : vector<1x128xf32>
    %254 = tpu.matmul %251, %253, %cst_280 {dimension_numbers = #tpu.dot_dimension_numbers<[1], [0], [0], [1], [0, 0, 1, 1], [], []>} : vector<1x128xf32>, vector<128x128xf32>, vector<1x128xf32> -> vector<1x128xf32>
    %255 = arith.addf %250, %254 : vector<1x128xf32>
    %c4_281 = arith.constant 4 : index
    %c0_282 = arith.constant 0 : index
    %256 = vector.load %arg14[%c4_281, %c0_282] : memref<5x128xf32, #tpu.memory_space<vmem>>, vector<1x128xf32>
    %c4_283 = arith.constant 4 : index
    %c0_284 = arith.constant 0 : index
    %c0_285 = arith.constant 0 : index
    %257 = vector.load %arg6[%c4_283, %c0_284, %c0_285] : memref<5x128x128xf32, #tpu.memory_space<vmem>>, vector<1x128x128xf32>
    %258 = vector.shape_cast %257 : vector<1x128x128xf32> to vector<128x128xf32>
    %cst_286 = arith.constant dense<0.000000e+00> : vector<1x128xf32>
    %259 = tpu.matmul %256, %258, %cst_286 {dimension_numbers = #tpu.dot_dimension_numbers<[1], [0], [0], [1], [0, 0, 1, 1], [], []>} : vector<1x128xf32>, vector<128x128xf32>, vector<1x128xf32> -> vector<1x128xf32>
    %260 = arith.addf %255, %259 : vector<1x128xf32>
    %c0_287 = arith.constant 0 : index
    %c0_288 = arith.constant 0 : index
    %261 = vector.load %arg7[%c0_287, %c0_288] : memref<1x128xf32, #tpu.memory_space<vmem>>, vector<1x128xf32>
    %262 = arith.addf %260, %261 : vector<1x128xf32>
    %cst_289 = arith.constant 0.000000e+00 : f32
    %263 = vector.broadcast %cst_289 : f32 to vector<1x128xf32>
    %264 = arith.maximumf %262, %263 : vector<1x128xf32>
    %c0_290 = arith.constant 0 : index
    %c0_291 = arith.constant 0 : index
    %265 = vector.load %arg8[%c0_290, %c0_291] : memref<128x128xf32, #tpu.memory_space<vmem>>, vector<128x128xf32>
    %cst_292 = arith.constant dense<0.000000e+00> : vector<1x128xf32>
    %266 = tpu.matmul %264, %265, %cst_292 {dimension_numbers = #tpu.dot_dimension_numbers<[1], [0], [0], [1], [0, 0, 1, 1], [], []>} : vector<1x128xf32>, vector<128x128xf32>, vector<1x128xf32> -> vector<1x128xf32>
    %c0_293 = arith.constant 0 : index
    %c0_294 = arith.constant 0 : index
    %267 = vector.load %arg9[%c0_293, %c0_294] : memref<1x128xf32, #tpu.memory_space<vmem>>, vector<1x128xf32>
    %268 = arith.addf %266, %267 : vector<1x128xf32>
    %cst_295 = arith.constant 0.000000e+00 : f32
    %269 = vector.broadcast %cst_295 : f32 to vector<1x128xf32>
    %270 = arith.maximumf %268, %269 : vector<1x128xf32>
    %c0_296 = arith.constant 0 : index
    %c0_297 = arith.constant 0 : index
    %271 = vector.load %arg10[%c0_296, %c0_297] : memref<128x128xf32, #tpu.memory_space<vmem>>, vector<128x128xf32>
    %cst_298 = arith.constant dense<0.000000e+00> : vector<1x128xf32>
    %272 = tpu.matmul %270, %271, %cst_298 {dimension_numbers = #tpu.dot_dimension_numbers<[1], [0], [0], [1], [0, 0, 1, 1], [], []>} : vector<1x128xf32>, vector<128x128xf32>, vector<1x128xf32> -> vector<1x128xf32>
    %c0_299 = arith.constant 0 : index
    %c0_300 = arith.constant 0 : index
    %273 = vector.load %arg11[%c0_299, %c0_300] : memref<1x128xf32, #tpu.memory_space<vmem>>, vector<1x128xf32>
    %274 = arith.addf %272, %273 : vector<1x128xf32>
    %cst_301 = arith.constant 0.000000e+00 : f32
    %275 = vector.broadcast %cst_301 : f32 to vector<1x128xf32>
    %276 = arith.maximumf %274, %275 : vector<1x128xf32>
    %c0_302 = arith.constant 0 : index
    %c0_303 = arith.constant 0 : index
    %c0_304 = arith.constant 0 : index
    %277 = vector.load %arg12[%c0_302, %c0_303, %c0_304] : memref<1x1x128xf32, #tpu.memory_space<vmem>>, vector<1x1x128xf32>
    %278 = vector.shape_cast %277 : vector<1x1x128xf32> to vector<1x128xf32>
    %279 = vector.shape_cast %276 : vector<1x128xf32> to vector<1x1x128xf32>
    tpu.vector_store %arg12[%c0_302, %c0_303, %c0_304], %279 {strides = array<i32>} : memref<1x1x128xf32, #tpu.memory_space<vmem>>, vector<1x1x128xf32>,
    return
  }
  func.func @transform_0(%arg0: i32) -> (i32, i32, i32, i32) {
    %c0_i32 = arith.constant 0 : i32
    %c0_i32_0 = arith.constant 0 : i32
    %c0_i32_1 = arith.constant 0 : i32
    %c0_i32_2 = arith.constant 0 : i32
    return %arg0, %c0_i32, %c0_i32_0, %c0_i32_1 : i32, i32, i32, i32
  }
  func.func @transform_1(%arg0: i32) -> (i32, i32, i32) {
    %c0_i32 = arith.constant 0 : i32
    %c0_i32_0 = arith.constant 0 : i32
    %c0_i32_1 = arith.constant 0 : i32
    %c0_i32_2 = arith.constant 0 : i32
    return %c0_i32, %c0_i32_0, %c0_i32_1 : i32, i32, i32
  }
  func.func @transform_2(%arg0: i32) -> (i32, i32) {
    %c0_i32 = arith.constant 0 : i32
    %c0_i32_0 = arith.constant 0 : i32
    %c0_i32_1 = arith.constant 0 : i32
    return %c0_i32, %c0_i32_0 : i32, i32
  }
  func.func @transform_3(%arg0: i32) -> (i32, i32, i32) {
    %c0_i32 = arith.constant 0 : i32
    %c0_i32_0 = arith.constant 0 : i32
    %c0_i32_1 = arith.constant 0 : i32
    %c0_i32_2 = arith.constant 0 : i32
    return %c0_i32, %c0_i32_0, %c0_i32_1 : i32, i32, i32
  }
  func.func @transform_4(%arg0: i32) -> (i32, i32) {
    %c0_i32 = arith.constant 0 : i32
    %c0_i32_0 = arith.constant 0 : i32
    %c0_i32_1 = arith.constant 0 : i32
    return %c0_i32, %c0_i32_0 : i32, i32
  }
  func.func @transform_5(%arg0: i32) -> (i32, i32, i32) {
    %c0_i32 = arith.constant 0 : i32
    %c0_i32_0 = arith.constant 0 : i32
    %c0_i32_1 = arith.constant 0 : i32
    %c0_i32_2 = arith.constant 0 : i32
    return %c0_i32, %c0_i32_0, %c0_i32_1 : i32, i32, i32
  }
  func.func @transform_6(%arg0: i32) -> (i32, i32) {
    %c0_i32 = arith.constant 0 : i32
    %c0_i32_0 = arith.constant 0 : i32
    %c0_i32_1 = arith.constant 0 : i32
    return %c0_i32, %c0_i32_0 : i32, i32
  }
  func.func @transform_7(%arg0: i32) -> (i32, i32) {
    %c0_i32 = arith.constant 0 : i32
    %c0_i32_0 = arith.constant 0 : i32
    %c0_i32_1 = arith.constant 0 : i32
    return %c0_i32, %c0_i32_0 : i32, i32
  }
  func.func @transform_8(%arg0: i32) -> (i32, i32) {
    %c0_i32 = arith.constant 0 : i32
    %c0_i32_0 = arith.constant 0 : i32
    %c0_i32_1 = arith.constant 0 : i32
    return %c0_i32, %c0_i32_0 : i32, i32
  }
  func.func @transform_9(%arg0: i32) -> (i32, i32) {
    %c0_i32 = arith.constant 0 : i32
    %c0_i32_0 = arith.constant 0 : i32
    %c0_i32_1 = arith.constant 0 : i32
    return %c0_i32, %c0_i32_0 : i32, i32
  }
  func.func @transform_10(%arg0: i32) -> (i32, i32) {
    %c0_i32 = arith.constant 0 : i32
    %c0_i32_0 = arith.constant 0 : i32
    %c0_i32_1 = arith.constant 0 : i32
    return %c0_i32, %c0_i32_0 : i32, i32
  }
  func.func @transform_11(%arg0: i32) -> (i32, i32, i32) {
    %c0_i32 = arith.constant 0 : i32
    %c0_i32_0 = arith.constant 0 : i32
    %c0_i32_1 = arith.constant 0 : i32
    return %arg0, %c0_i32, %c0_i32_0 : i32, i32, i32
  }
}

</mosaic_0001>

<llo_original>
// kernel: cnn_forward.1
$region0: #{cnn_forward.1}
  #allocation0 [shape = 'u32[]', space=smem, size = 0x4, offset = 0x4, fixed_abs, tag = 'smem constant byte address 0x4 - core index']
  #allocation1 [shape = 'u32[144,128]{1,0:T(1,128)}', space=vmem, size = 0x12000, scoped, tag = 'internal scratch']
  #allocation2 [shape = 'f32[2,7,128]{2,1,0:T(8,128)}', space=vmem, size = 0x2000, scoped, tag = 'scratch operand']
  #allocation3 [shape = 'f32[5,128]{1,0:T(8,128)}', space=vmem, size = 0x1000, scoped, tag = 'scratch operand']
  %s0 = inlined_call_operand.vmem [shape: f32[2,4,8,128], index: 0, kind: input, shape index: {}]
  %s1 = inlined_call_operand.vmem [shape: f32[5,128,256], index: 1, kind: input, shape index: {}]
  %s2 = inlined_call_operand.vmem [shape: f32[1,256], index: 2, kind: input, shape index: {}]
  %s3 = inlined_call_operand.vmem [shape: f32[5,128,256], index: 3, kind: input, shape index: {}]
  %s4 = inlined_call_operand.vmem [shape: f32[1,256], index: 4, kind: input, shape index: {}]
  %s5 = inlined_call_operand.vmem [shape: f32[5,128,128], index: 5, kind: input, shape index: {}]
  %s6 = inlined_call_operand.vmem [shape: f32[1,128], index: 6, kind: input, shape index: {}]
  %s7 = inlined_call_operand.vmem [shape: f32[128,128], index: 7, kind: input, shape index: {}]
  %s8 = inlined_call_operand.vmem [shape: f32[1,128], index: 8, kind: input, shape index: {}]
  %s9 = inlined_call_operand.vmem [shape: f32[128,128], index: 9, kind: input, shape index: {}]
  %s10 = inlined_call_operand.vmem [shape: f32[1,128], index: 10, kind: input, shape index: {}]
  %s11 = inlined_call_operand.hbm [shape: f32[2,1,128], index: 11, kind: output, shape index: {}]
  %s12 = sld [smem:[#allocation0]]
  $region77: #{cnn_forward.1} parent=0
    _
  %s14 = ssub.s32 1, %s12
  %s15 = scalar_select 0, %s14, %s12
  $region1: #{cnn_forward.1} parent=0
    #allocation4 [shape = 'u8[1024]{0}', space=vmem, size = 0x400, scoped, tag = 'output window, operand 0']
    #allocation5 [shape = 's32[2]{0}', space=sflag, size = 0x8, scoped, tag = 'scoped memory for cnn_forward.1']
    %16 = vsyncpa [#allocation5], 0
    %s17 = scalar_lea.sflag [#allocation5], 1
    %18 = vsyncpa %s17, 0
    loop: start=0, step=1, limit=4
    $region2: #{cnn_forward.1} parent=1 // loop_pre_header
      _
    $region3: #{cnn_forward.1} parent=1 // loop_header
      %s20 = sphi 0, %s24
      %p21 = scmp.ge.s32.totalorder %s20, 4
      %s30 = sphi 0, %s32
      %s33 = sphi 0, %s30
      %s34 = sphi 0, %s33
      %s50 = sphi 0, %s34
      %s54 = sphi 0, %s54
      %s56 = sphi 0, %s54
      %s57 = sphi 0, %s56
      %s71 = sphi 0, %s57
      %s75 = sphi 0, %s75
      %s77 = sphi 0, %s75
      %s78 = sphi 0, %s77
      %s92 = sphi 0, %s78
      %s96 = sphi 0, %s96
      %s98 = sphi 0, %s96
      %s99 = sphi 0, %s98
      %s113 = sphi 0, %s99
      %s117 = sphi 0, %s117
      %s119 = sphi 0, %s117
      %s120 = sphi 0, %s119
      %s134 = sphi 0, %s120
      %s138 = sphi 0, %s138
      %s140 = sphi 0, %s138
      %s141 = sphi 0, %s140
      %s155 = sphi 0, %s141
      %s159 = sphi 0, %s159
      %s161 = sphi 0, %s159
      %s162 = sphi 0, %s161
      %s176 = sphi 0, %s162
      %s180 = sphi 0, %s180
      %s182 = sphi 0, %s180
      %s183 = sphi 0, %s182
      %s197 = sphi 0, %s183
      %s201 = sphi 0, %s201
      %s203 = sphi 0, %s201
      %s204 = sphi 0, %s203
      %s218 = sphi 0, %s204
      %s222 = sphi 0, %s222
      %s224 = sphi 0, %s222
      %s225 = sphi 0, %s224
      %s239 = sphi 0, %s225
      %s243 = sphi 0, %s243
      %s245 = sphi 0, %s243
      %s246 = sphi 0, %s245
      %s260 = sphi 0, %s246
      %s266 = sphi 0, %s268
      %s269 = sphi 0, %s266
      %s270 = sphi 0, %s269
      %s286 = sphi 0, %s270
    $region4: #{cnn_forward.1} parent=1 // loop_header_branch
      %23 = sbr.rel (%p21) target = $region8
    $region5: #{cnn_forward.1} parent=1 // loop_body
      %s25 = ssub.s32 %s20, 1
      %s26 = ssub.s32 %s20, 2
      %s27 = sadd.s32 %s20, 1
      %s28 = ssub.s32 %s20, %s27
      %p29 = scmp.eq.s32.totalorder %s28, 0
      %s31 = sadd.s32 %s30, 1
      %s32 = scalar_select %p29, %s30, %s31
      %p35 = pneg %p29
      %p36 = scmp.eq.s32.totalorder %s20, 1
      %p37 = por %p35, %p36
      %p38 = scmp.ne.s32.totalorder %s30, %s33
      %p39 = scmp.eq.s32.totalorder %s20, 0
      %p40 = por %p38, %p39
      %p41 = scmp.ne.s32.totalorder %s30, %s33
      %p42 = scmp.eq.s32.totalorder %s25, 1
      %p43 = por %p41, %p42
      %p44 = scmp.ne.s32.totalorder %s33, %s34
      %p45 = scmp.eq.s32.totalorder %s25, 0
      %p46 = por %p44, %p45
      %p47 = scmp.ne.s32.totalorder %s33, %s34
      %p48 = scmp.eq.s32.totalorder %s26, 1
      %p49 = por %p47, %p48
      %p51 = scmp.ne.s32.totalorder %s34, %s50
      %p52 = scmp.eq.s32.totalorder %s26, 0
      %p53 = por %p51, %p52
      %s55 = sadd.s32 %s54, 1
      %p58 = scmp.eq.s32.totalorder %s20, 1
      %p59 = scmp.ne.s32.totalorder %s54, %s56
      %p60 = scmp.eq.s32.totalorder %s20, 0
      %p61 = por %p59, %p60
      %p62 = scmp.ne.s32.totalorder %s54, %s56
      %p63 = scmp.eq.s32.totalorder %s25, 1
      %p64 = por %p62, %p63
      %p65 = scmp.ne.s32.totalorder %s56, %s57
      %p66 = scmp.eq.s32.totalorder %s25, 0
      %p67 = por %p65, %p66
      %p68 = scmp.ne.s32.totalorder %s56, %s57
      %p69 = scmp.eq.s32.totalorder %s26, 1
      %p70 = por %p68, %p69
      %p72 = scmp.ne.s32.totalorder %s57, %s71
      %p73 = scmp.eq.s32.totalorder %s26, 0
      %p74 = por %p72, %p73
      %s76 = sadd.s32 %s75, 1
      %p79 = scmp.eq.s32.totalorder %s20, 1
      %p80 = scmp.ne.s32.totalorder %s75, %s77
      %p81 = scmp.eq.s32.totalorder %s20, 0
      %p82 = por %p80, %p81
      %p83 = scmp.ne.s32.totalorder %s75, %s77
      %p84 = scmp.eq.s32.totalorder %s25, 1
      %p85 = por %p83, %p84
      %p86 = scmp.ne.s32.totalorder %s77, %s78
      %p87 = scmp.eq.s32.totalorder %s25, 0
      %p88 = por %p86, %p87
      %p89 = scmp.ne.s32.totalorder %s77, %s78
      %p90 = scmp.eq.s32.totalorder %s26, 1
      %p91 = por %p89, %p90
      %p93 = scmp.ne.s32.totalorder %s78, %s92
      %p94 = scmp.eq.s32.totalorder %s26, 0
      %p95 = por %p93, %p94
      %s97 = sadd.s32 %s96, 1
      %p100 = scmp.eq.s32.totalorder %s20, 1
      %p101 = scmp.ne.s32.totalorder %s96, %s98
      %p102 = scmp.eq.s32.totalorder %s20, 0
      %p103 = por %p101, %p102
      %p104 = scmp.ne.s32.totalorder %s96, %s98
      %p105 = scmp.eq.s32.totalorder %s25, 1
      %p106 = por %p104, %p105
      %p107 = scmp.ne.s32.totalorder %s98, %s99
      %p108 = scmp.eq.s32.totalorder %s25, 0
      %p109 = por %p107, %p108
      %p110 = scmp.ne.s32.totalorder %s98, %s99
      %p111 = scmp.eq.s32.totalorder %s26, 1
      %p112 = por %p110, %p111
      %p114 = scmp.ne.s32.totalorder %s99, %s113
      %p115 = scmp.eq.s32.totalorder %s26, 0
      %p116 = por %p114, %p115
      %s118 = sadd.s32 %s117, 1
      %p121 = scmp.eq.s32.totalorder %s20, 1
      %p122 = scmp.ne.s32.totalorder %s117, %s119
      %p123 = scmp.eq.s32.totalorder %s20, 0
      %p124 = por %p122, %p123
      %p125 = scmp.ne.s32.totalorder %s117, %s119
      %p126 = scmp.eq.s32.totalorder %s25, 1
      %p127 = por %p125, %p126
      %p128 = scmp.ne.s32.totalorder %s119, %s120
      %p129 = scmp.eq.s32.totalorder %s25, 0
      %p130 = por %p128, %p129
      %p131 = scmp.ne.s32.totalorder %s119, %s120
      %p132 = scmp.eq.s32.totalorder %s26, 1
      %p133 = por %p131, %p132
      %p135 = scmp.ne.s32.totalorder %s120, %s134
      %p136 = scmp.eq.s32.totalorder %s26, 0
      %p137 = por %p135, %p136
      %s139 = sadd.s32 %s138, 1
      %p142 = scmp.eq.s32.totalorder %s20, 1
      %p143 = scmp.ne.s32.totalorder %s138, %s140
      %p144 = scmp.eq.s32.totalorder %s20, 0
      %p145 = por %p143, %p144
      %p146 = scmp.ne.s32.totalorder %s138, %s140
      %p147 = scmp.eq.s32.totalorder %s25, 1
      %p148 = por %p146, %p147
      %p149 = scmp.ne.s32.totalorder %s140, %s141
      %p150 = scmp.eq.s32.totalorder %s25, 0
      %p151 = por %p149, %p150
      %p152 = scmp.ne.s32.totalorder %s140, %s141
      %p153 = scmp.eq.s32.totalorder %s26, 1
      %p154 = por %p152, %p153
      %p156 = scmp.ne.s32.totalorder %s141, %s155
      %p157 = scmp.eq.s32.totalorder %s26, 0
      %p158 = por %p156, %p157
      %s160 = sadd.s32 %s159, 1
      %p163 = scmp.eq.s32.totalorder %s20, 1
      %p164 = scmp.ne.s32.totalorder %s159, %s161
      %p165 = scmp.eq.s32.totalorder %s20, 0
      %p166 = por %p164, %p165
      %p167 = scmp.ne.s32.totalorder %s159, %s161
      %p168 = scmp.eq.s32.totalorder %s25, 1
      %p169 = por %p167, %p168
      %p170 = scmp.ne.s32.totalorder %s161, %s162
      %p171 = scmp.eq.s32.totalorder %s25, 0
      %p172 = por %p170, %p171
      %p173 = scmp.ne.s32.totalorder %s161, %s162
      %p174 = scmp.eq.s32.totalorder %s26, 1
      %p175 = por %p173, %p174
      %p177 = scmp.ne.s32.totalorder %s162, %s176
      %p178 = scmp.eq.s32.totalorder %s26, 0
      %p179 = por %p177, %p178
      %s181 = sadd.s32 %s180, 1
      %p184 = scmp.eq.s32.totalorder %s20, 1
      %p185 = scmp.ne.s32.totalorder %s180, %s182
      %p186 = scmp.eq.s32.totalorder %s20, 0
      %p187 = por %p185, %p186
      %p188 = scmp.ne.s32.totalorder %s180, %s182
      %p189 = scmp.eq.s32.totalorder %s25, 1
      %p190 = por %p188, %p189
      %p191 = scmp.ne.s32.totalorder %s182, %s183
      %p192 = scmp.eq.s32.totalorder %s25, 0
      %p193 = por %p191, %p192
      %p194 = scmp.ne.s32.totalorder %s182, %s183
      %p195 = scmp.eq.s32.totalorder %s26, 1
      %p196 = por %p194, %p195
      %p198 = scmp.ne.s32.totalorder %s183, %s197
      %p199 = scmp.eq.s32.totalorder %s26, 0
      %p200 = por %p198, %p199
      %s202 = sadd.s32 %s201, 1
      %p205 = scmp.eq.s32.totalorder %s20, 1
      %p206 = scmp.ne.s32.totalorder %s201, %s203
      %p207 = scmp.eq.s32.totalorder %s20, 0
      %p208 = por %p206, %p207
      %p209 = scmp.ne.s32.totalorder %s201, %s203
      %p210 = scmp.eq.s32.totalorder %s25, 1
      %p211 = por %p209, %p210
      %p212 = scmp.ne.s32.totalorder %s203, %s204
      %p213 = scmp.eq.s32.totalorder %s25, 0
      %p214 = por %p212, %p213
      %p215 = scmp.ne.s32.totalorder %s203, %s204
      %p216 = scmp.eq.s32.totalorder %s26, 1
      %p217 = por %p215, %p216
      %p219 = scmp.ne.s32.totalorder %s204, %s218
      %p220 = scmp.eq.s32.totalorder %s26, 0
      %p221 = por %p219, %p220
      %s223 = sadd.s32 %s222, 1
      %p226 = scmp.eq.s32.totalorder %s20, 1
      %p227 = scmp.ne.s32.totalorder %s222, %s224
      %p228 = scmp.eq.s32.totalorder %s20, 0
      %p229 = por %p227, %p228
      %p230 = scmp.ne.s32.totalorder %s222, %s224
      %p231 = scmp.eq.s32.totalorder %s25, 1
      %p232 = por %p230, %p231
      %p233 = scmp.ne.s32.totalorder %s224, %s225
      %p234 = scmp.eq.s32.totalorder %s25, 0
      %p235 = por %p233, %p234
      %p236 = scmp.ne.s32.totalorder %s224, %s225
      %p237 = scmp.eq.s32.totalorder %s26, 1
      %p238 = por %p236, %p237
      %p240 = scmp.ne.s32.totalorder %s225, %s239
      %p241 = scmp.eq.s32.totalorder %s26, 0
      %p242 = por %p240, %p241
      %s244 = sadd.s32 %s243, 1
      %p247 = scmp.eq.s32.totalorder %s20, 1
      %p248 = scmp.ne.s32.totalorder %s243, %s245
      %p249 = scmp.eq.s32.totalorder %s20, 0
      %p250 = por %p248, %p249
      %p251 = scmp.ne.s32.totalorder %s243, %s245
      %p252 = scmp.eq.s32.totalorder %s25, 1
      %p253 = por %p251, %p252
      %p254 = scmp.ne.s32.totalorder %s245, %s246
      %p255 = scmp.eq.s32.totalorder %s25, 0
      %p256 = por %p254, %p255
      %p257 = scmp.ne.s32.totalorder %s245, %s246
      %p258 = scmp.eq.s32.totalorder %s26, 1
      %p259 = por %p257, %p258
      %p261 = scmp.ne.s32.totalorder %s246, %s260
      %p262 = scmp.eq.s32.totalorder %s26, 0
      %p263 = por %p261, %p262
      %s264 = ssub.s32 %s20, %s27
      %p265 = scmp.eq.s32.totalorder %s264, 0
      %s267 = sadd.s32 %s266, 1
      %s268 = scalar_select %p265, %s266, %s267
      %p271 = pneg %p265
      %p272 = scmp.eq.s32.totalorder %s20, 1
      %p273 = por %p271, %p272
      %p274 = scmp.ne.s32.totalorder %s266, %s269
      %p275 = scmp.eq.s32.totalorder %s20, 0
      %p276 = por %p274, %p275
      %p277 = scmp.ne.s32.totalorder %s266, %s269
      %p278 = scmp.eq.s32.totalorder %s25, 1
      %p279 = por %p277, %p278
      %p280 = scmp.ne.s32.totalorder %s269, %s270
      %p281 = scmp.eq.s32.totalorder %s25, 0
      %p282 = por %p280, %p281
      %p283 = scmp.ne.s32.totalorder %s269, %s270
      %p284 = scmp.eq.s32.totalorder %s26, 1
      %p285 = por %p283, %p284
      %p287 = scmp.ne.s32.totalorder %s270, %s286
      %p288 = scmp.eq.s32.totalorder %s26, 0
      %p289 = por %p287, %p288
      %p290 = scmp.le.s32.totalorder 1, %s20
      %p291 = scmp.lt.s32.totalorder %s20, 3
      %p292 = pnand %p290, %p291
      %p293 = pneg %p292
      // Predicated region
      $region9: #{cnn_forward.1} parent=5 // pred_check
        _
      $region10: #{cnn_forward.1} parent=5 // pred_check_branch
        %295 = sbr.rel (%p292) target = $region12
      $region11: #{cnn_forward.1} parent=5 // pred_region
        %s296 = ssub.s32 %s20, 1
        // Predicated region
        $region13: #{cnn_forward.1} parent=11 // pred_check
          %p297 = pneg %p67
        $region14: #{cnn_forward.1} parent=11 // pred_check_branch
          %299 = sbr.rel (%p297) target = $region16
        $region15: #{cnn_forward.1} parent=11 // pred_region
          _
        $region16: #{cnn_forward.1} parent=11 // pred_fallthru
          _
        // Predicated region
        $region17: #{cnn_forward.1} parent=11 // pred_check
          %p300 = pneg %p88
        $region18: #{cnn_forward.1} parent=11 // pred_check_branch
          %302 = sbr.rel (%p300) target = $region20
        $region19: #{cnn_forward.1} parent=11 // pred_region
          _
        $region20: #{cnn_forward.1} parent=11 // pred_fallthru
          _
        // Predicated region
        $region21: #{cnn_forward.1} parent=11 // pred_check
          %p303 = pneg %p109
        $region22: #{cnn_forward.1} parent=11 // pred_check_branch
          %305 = sbr.rel (%p303) target = $region24
        $region23: #{cnn_forward.1} parent=11 // pred_region
          _
        $region24: #{cnn_forward.1} parent=11 // pred_fallthru
          _
        // Predicated region
        $region25: #{cnn_forward.1} parent=11 // pred_check
          %p306 = pneg %p130
        $region26: #{cnn_forward.1} parent=11 // pred_check_branch
          %308 = sbr.rel (%p306) target = $region28
        $region27: #{cnn_forward.1} parent=11 // pred_region
          _
        $region28: #{cnn_forward.1} parent=11 // pred_fallthru
          _
        // Predicated region
        $region29: #{cnn_forward.1} parent=11 // pred_check
          %p309 = pneg %p151
        $region30: #{cnn_forward.1} parent=11 // pred_check_branch
          %311 = sbr.rel (%p309) target = $region32
        $region31: #{cnn_forward.1} parent=11 // pred_region
          _
        $region32: #{cnn_forward.1} parent=11 // pred_fallthru
          _
        // Predicated region
        $region33: #{cnn_forward.1} parent=11 // pred_check
          %p312 = pneg %p172
        $region34: #{cnn_forward.1} parent=11 // pred_check_branch
          %314 = sbr.rel (%p312) target = $region36
        $region35: #{cnn_forward.1} parent=11 // pred_region
          _
        $region36: #{cnn_forward.1} parent=11 // pred_fallthru
          _
        // Predicated region
        $region37: #{cnn_forward.1} parent=11 // pred_check
          %p315 = pneg %p193
        $region38: #{cnn_forward.1} parent=11 // pred_check_branch
          %317 = sbr.rel (%p315) target = $region40
        $region39: #{cnn_forward.1} parent=11 // pred_region
          _
        $region40: #{cnn_forward.1} parent=11 // pred_fallthru
          _
        // Predicated region
        $region41: #{cnn_forward.1} parent=11 // pred_check
          %p318 = pneg %p214
        $region42: #{cnn_forward.1} parent=11 // pred_check_branch
          %320 = sbr.rel (%p318) target = $region44
        $region43: #{cnn_forward.1} parent=11 // pred_region
          _
        $region44: #{cnn_forward.1} parent=11 // pred_fallthru
          _
        // Predicated region
        $region45: #{cnn_forward.1} parent=11 // pred_check
          %p321 = pneg %p235
        $region46: #{cnn_forward.1} parent=11 // pred_check_branch
          %323 = sbr.rel (%p321) target = $region48
        $region47: #{cnn_forward.1} parent=11 // pred_region
          _
        $region48: #{cnn_forward.1} parent=11 // pred_fallthru
          _
        // Predicated region
        $region49: #{cnn_forward.1} parent=11 // pred_check
          %p324 = pneg %p256
        $region50: #{cnn_forward.1} parent=11 // pred_check_branch
          %326 = sbr.rel (%p324) target = $region52
        $region51: #{cnn_forward.1} parent=11 // pred_region
          _
        $region52: #{cnn_forward.1} parent=11 // pred_fallthru
          _
      $region12: #{cnn_forward.1} parent=5 // pred_fallthru
        _
      %p327 = scmp.lt.s32.totalorder %s20, 2
      // Predicated region
      $region53: #{cnn_forward.1} parent=5 // pred_check
        %p328 = pneg %p327
      $region54: #{cnn_forward.1} parent=5 // pred_check_branch
        %330 = sbr.rel (%p328) target = $region56
      $region55: #{cnn_forward.1} parent=5 // pred_region
        // Predicated region
        $region57: #{cnn_forward.1} parent=55 // pred_check
          %p331 = pneg %p40
        $region58: #{cnn_forward.1} parent=55 // pred_check_branch
          %333 = sbr.rel (%p331) target = $region60
        $region59: #{cnn_forward.1} parent=55 // pred_region
          %p334 = scmp.lt.s32.totalorder %s20, 1
          %s335 = scalar_select %p334, %s20, 1
          %s336 = smul.addr %s335, 4
          %s337 = smul.addr %s336, 8
          %s338 = scalar_lea.vmem %s0, %s337
        $region60: #{cnn_forward.1} parent=55 // pred_fallthru
          _
      $region56: #{cnn_forward.1} parent=5 // pred_fallthru
        _
      %p339 = scmp.le.s32.totalorder 1, %s20
      %p340 = scmp.lt.s32.totalorder %s20, 3
      %p341 = pnand %p339, %p340
      %p342 = pneg %p341
      // Predicated region
      $region61: #{cnn_forward.1} parent=5 // pred_check
        _
      $region62: #{cnn_forward.1} parent=5 // pred_check_branch
        %344 = sbr.rel (%p341) target = $region64
      $region63: #{cnn_forward.1} parent=5 // pred_region
        %s345 = ssub.s32 %s20, 1
        %p346 = scmp.lt.s32.totalorder %s25, 1
        %s347 = scalar_select %p346, %s25, 1
        %s348 = smul.addr %s347, 4
        %s349 = smul.addr %s348, 8
        %s350 = scalar_lea.vmem %s0, %s349
        %p351 = pneg %p46
        %p352 = pneg %p43
        %p353 = pneg %p67
        %p354 = pneg %p64
        %p355 = pneg %p88
        %p356 = pneg %p85
        %p357 = pneg %p109
        %p358 = pneg %p106
        %p359 = pneg %p130
        %p360 = pneg %p127
        %p361 = pneg %p151
        %p362 = pneg %p148
        %p363 = pneg %p172
        %p364 = pneg %p169
        %p365 = pneg %p193
        %p366 = pneg %p190
        %p367 = pneg %p214
        %p368 = pneg %p211
        %p369 = pneg %p235
        %p370 = pneg %p232
        %p371 = pneg %p256
        %p372 = pneg %p253
        %p373 = pneg %p282
        %p374 = pneg %p279
        %s375 = sand.u32 %s269, 1
        %s376 = scalar_lea.sflag [#allocation5], %s375
        %s377 = sand.u32 %s269, 1
        %s378 = scalar_lea.vmem [#allocation4], %s377
        %p379 = scmp.lt.s32.totalorder %s25, 1
        %s380 = scalar_select %p379, %s25, 1
        %s381 = smul.addr %s380, 4
        %s382 = smul.addr %s381, 8
        %s383 = scalar_lea.vmem %s0, %s382
        %v384 = vld [vmem:[%s383] sm:$0x7f]
        %v385 = vld [vmem:[%s1] sm:$0xff]
        %v386 = vld [vmem:[%s1 + $0x8] sm:$0xff]
        %v387 = vld [vmem:[%s1 + $0x10] sm:$0xff]
        %v388 = vld [vmem:[%s1 + $0x18] sm:$0xff]
        %v389 = vld [vmem:[%s1 + $0x20] sm:$0xff]
        %v390 = vld [vmem:[%s1 + $0x28] sm:$0xff]
        %v391 = vld [vmem:[%s1 + $0x30] sm:$0xff]
        %v392 = vld [vmem:[%s1 + $0x38] sm:$0xff]
        %v393 = vld [vmem:[%s1 + $0x40] sm:$0xff]
        %v394 = vld [vmem:[%s1 + $0x48] sm:$0xff]
        %v395 = vld [vmem:[%s1 + $0x50] sm:$0xff]
        %v396 = vld [vmem:[%s1 + $0x58] sm:$0xff]
        %v397 = vld [vmem:[%s1 + $0x60] sm:$0xff]
        %v398 = vld [vmem:[%s1 + $0x68] sm:$0xff]
        %v399 = vld [vmem:[%s1 + $0x70] sm:$0xff]
        %v400 = vld [vmem:[%s1 + $0x78] sm:$0xff]
        %v401 = vld [vmem:[%s1 + $0x80] sm:$0xff]
        %v402 = vld [vmem:[%s1 + $0x88] sm:$0xff]
        %v403 = vld [vmem:[%s1 + $0x90] sm:$0xff]
        %v404 = vld [vmem:[%s1 + $0x98] sm:$0xff]
        %v405 = vld [vmem:[%s1 + $0xa0] sm:$0xff]
        %v406 = vld [vmem:[%s1 + $0xa8] sm:$0xff]
        %v407 = vld [vmem:[%s1 + $0xb0] sm:$0xff]
        %v408 = vld [vmem:[%s1 + $0xb8] sm:$0xff]
        %v409 = vld [vmem:[%s1 + $0xc0] sm:$0xff]
        %v410 = vld [vmem:[%s1 + $0xc8] sm:$0xff]
        %v411 = vld [vmem:[%s1 + $0xd0] sm:$0xff]
        %v412 = vld [vmem:[%s1 + $0xd8] sm:$0xff]
        %v413 = vld [vmem:[%s1 + $0xe0] sm:$0xff]
        %v414 = vld [vmem:[%s1 + $0xe8] sm:$0xff]
        %v415 = vld [vmem:[%s1 + $0xf0] sm:$0xff]
        %v416 = vld [vmem:[%s1 + $0xf8] sm:$0xff]
        %s417 = scalar_lea.vmem %s383, 8
        %v418 = vld [vmem:[%s417] sm:$0x7f]
        %s419 = scalar_lea.vmem %s1, 256
        %v420 = vld [vmem:[%s419] sm:$0xff]
        %v421 = vld [vmem:[%s419 + $0x8] sm:$0xff]
        %v422 = vld [vmem:[%s419 + $0x10] sm:$0xff]
        %v423 = vld [vmem:[%s419 + $0x18] sm:$0xff]
        %v424 = vld [vmem:[%s419 + $0x20] sm:$0xff]
        %v425 = vld [vmem:[%s419 + $0x28] sm:$0xff]
        %v426 = vld [vmem:[%s419 + $0x30] sm:$0xff]
        %v427 = vld [vmem:[%s419 + $0x38] sm:$0xff]
        %v428 = vld [vmem:[%s419 + $0x40] sm:$0xff]
        %v429 = vld [vmem:[%s419 + $0x48] sm:$0xff]
        %v430 = vld [vmem:[%s419 + $0x50] sm:$0xff]
        %v431 = vld [vmem:[%s419 + $0x58] sm:$0xff]
        %v432 = vld [vmem:[%s419 + $0x60] sm:$0xff]
        %v433 = vld [vmem:[%s419 + $0x68] sm:$0xff]
        %v434 = vld [vmem:[%s419 + $0x70] sm:$0xff]
        %v435 = vld [vmem:[%s419 + $0x78] sm:$0xff]
        %v436 = vld [vmem:[%s419 + $0x80] sm:$0xff]
        %v437 = vld [vmem:[%s419 + $0x88] sm:$0xff]
        %v438 = vld [vmem:[%s419 + $0x90] sm:$0xff]
        %v439 = vld [vmem:[%s419 + $0x98] sm:$0xff]
        %v440 = vld [vmem:[%s419 + $0xa0] sm:$0xff]
        %v441 = vld [vmem:[%s419 + $0xa8] sm:$0xff]
        %v442 = vld [vmem:[%s419 + $0xb0] sm:$0xff]
        %v443 = vld [vmem:[%s419 + $0xb8] sm:$0xff]
        %v444 = vld [vmem:[%s419 + $0xc0] sm:$0xff]
        %v445 = vld [vmem:[%s419 + $0xc8] sm:$0xff]
        %v446 = vld [vmem:[%s419 + $0xd0] sm:$0xff]
        %v447 = vld [vmem:[%s419 + $0xd8] sm:$0xff]
        %v448 = vld [vmem:[%s419 + $0xe0] sm:$0xff]
        %v449 = vld [vmem:[%s419 + $0xe8] sm:$0xff]
        %v450 = vld [vmem:[%s419 + $0xf0] sm:$0xff]
        %v451 = vld [vmem:[%s419 + $0xf8] sm:$0xff]
        %452 = vmatprep.subr.mxu0 %v451
        %453 = vmatpush1.msra.mxu0 %v450
        %454 = vmatprep.subr.mxu0 %v449
        %455 = vmatpush1.msra.mxu0 %v448
        %456 = vmatprep.subr.mxu0 %v447
        %457 = vmatpush1.msra.mxu0 %v446
        %458 = vmatprep.subr.mxu0 %v445
        %459 = vmatpush1.msra.mxu0 %v444
        %460 = vmatprep.subr.mxu0 %v443
        %461 = vmatpush1.msra.mxu0 %v442
        %462 = vmatprep.subr.mxu0 %v441
        %463 = vmatpush1.msra.mxu0 %v440
        %464 = vmatprep.subr.mxu0 %v439
        %465 = vmatpush1.msra.mxu0 %v438
        %466 = vmatprep.subr.mxu0 %v437
        %467 = vmatpush1.msra.mxu0 %v436
        %468 = vmatprep.subr.mxu0 %v435
        %469 = vmatpush1.msra.mxu0 %v434
        %470 = vmatprep.subr.mxu0 %v433
        %471 = vmatpush1.msra.mxu0 %v432
        %472 = vmatprep.subr.mxu0 %v431
        %473 = vmatpush1.msra.mxu0 %v430
        %474 = vmatprep.subr.mxu0 %v429
        %475 = vmatpush1.msra.mxu0 %v428
        %476 = vmatprep.subr.mxu0 %v427
        %477 = vmatpush1.msra.mxu0 %v426
        %478 = vmatprep.subr.mxu0 %v425
        %479 = vmatpush1.msra.mxu0 %v424
        %480 = vmatprep.subr.mxu0 %v423
        %481 = vmatpush1.msra.mxu0 %v422
        %482 = vmatprep.subr.mxu0 %v421
        %483 = vmatpush1.msra.mxu0 %v420
        %484 = vmatprep.subr.mxu0 0.0
        %485 = vmatpush2.msra.mxu0 0.0
        %486 = vmatprep.subr.mxu0 0.0
        %487 = vmatpush2.msra.mxu0 0.0
        %488 = vmatprep.subr.mxu0 0.0
        %489 = vmatpush2.msra.mxu0 0.0
        %490 = vmatprep.subr.mxu0 0.0
        %491 = vmatpush2.msra.mxu0 0.0
        %492 = vmatprep.subr.mxu0 0.0
        %493 = vmatpush2.msra.mxu0 0.0
        %494 = vmatprep.subr.mxu0 0.0
        %495 = vmatpush2.msra.mxu0 0.0
        %496 = vmatprep.subr.mxu0 0.0
        %497 = vmatpush2.msra.mxu0 0.0
        %498 = vmatprep.subr.mxu0 0.0
        %499 = vmatpush2.msra.mxu0 0.0
        %500 = vmatprep.subr.mxu0 0.0
        %501 = vmatpush2.msra.mxu0 0.0
        %502 = vmatprep.subr.mxu0 0.0
        %503 = vmatpush2.msra.mxu0 0.0
        %504 = vmatprep.subr.mxu0 0.0
        %505 = vmatpush2.msra.mxu0 0.0
        %506 = vmatprep.subr.mxu0 0.0
        %507 = vmatpush2.msra.mxu0 0.0
        %508 = vmatprep.subr.mxu0 0.0
        %509 = vmatpush2.msra.mxu0 0.0
        %510 = vmatprep.subr.mxu0 0.0
        %511 = vmatpush2.msra.mxu0 0.0
        %512 = vmatprep.subr.mxu0 0.0
        %513 = vmatpush2.msra.mxu0 0.0
        %514 = vmatprep.subr.mxu0 0.0
        %515 = vmatpush2.msra.mxu0 0.0
        %516 = vmatprep.mubr.f32.mxu0 0.0
        %517 = vmatmul.mubr.f32.gmra.mxu0 %v418
        %v518 = vpop.f32.mrf.mxu0
        %v519 = vadd.f32 0.0, %v518
        %v520 = vpop.f32.mrf.mxu0
        %v521 = vadd.f32 0.0, %v520
        %522 = vdwg.mxu0
        %523 = vmatprep.subr.mxu0 %v416
        %524 = vmatpush1.msra.mxu0 %v415
        %525 = vmatprep.subr.mxu0 %v414
        %526 = vmatpush1.msra.mxu0 %v413
        %527 = vmatprep.subr.mxu0 %v412
        %528 = vmatpush1.msra.mxu0 %v411
        %529 = vmatprep.subr.mxu0 %v410
        %530 = vmatpush1.msra.mxu0 %v409
        %531 = vmatprep.subr.mxu0 %v408
        %532 = vmatpush1.msra.mxu0 %v407
        %533 = vmatprep.subr.mxu0 %v406
        %534 = vmatpush1.msra.mxu0 %v405
        %535 = vmatprep.subr.mxu0 %v404
        %536 = vmatpush1.msra.mxu0 %v403
        %537 = vmatprep.subr.mxu0 %v402
        %538 = vmatpush1.msra.mxu0 %v401
        %539 = vmatprep.subr.mxu0 %v400
        %540 = vmatpush1.msra.mxu0 %v399
        %541 = vmatprep.subr.mxu0 %v398
        %542 = vmatpush1.msra.mxu0 %v397
        %543 = vmatprep.subr.mxu0 %v396
        %544 = vmatpush1.msra.mxu0 %v395
        %545 = vmatprep.subr.mxu0 %v394
        %546 = vmatpush1.msra.mxu0 %v393
        %547 = vmatprep.subr.mxu0 %v392
        %548 = vmatpush1.msra.mxu0 %v391
        %549 = vmatprep.subr.mxu0 %v390
        %550 = vmatpush1.msra.mxu0 %v389
        %551 = vmatprep.subr.mxu0 %v388
        %552 = vmatpush1.msra.mxu0 %v387
        %553 = vmatprep.subr.mxu0 %v386
        %554 = vmatpush1.msra.mxu0 %v385
        %555 = vmatprep.subr.mxu0 0.0
        %556 = vmatpush2.msra.mxu0 0.0
        %557 = vmatprep.subr.mxu0 0.0
        %558 = vmatpush2.msra.mxu0 0.0
        %559 = vmatprep.subr.mxu0 0.0
        %560 = vmatpush2.msra.mxu0 0.0
        %561 = vmatprep.subr.mxu0 0.0
        %562 = vmatpush2.msra.mxu0 0.0
        %563 = vmatprep.subr.mxu0 0.0
        %564 = vmatpush2.msra.mxu0 0.0
        %565 = vmatprep.subr.mxu0 0.0
        %566 = vmatpush2.msra.mxu0 0.0
        %567 = vmatprep.subr.mxu0 0.0
        %568 = vmatpush2.msra.mxu0 0.0
        %569 = vmatprep.subr.mxu0 0.0
        %570 = vmatpush2.msra.mxu0 0.0
        %571 = vmatprep.subr.mxu0 0.0
        %572 = vmatpush2.msra.mxu0 0.0
        %573 = vmatprep.subr.mxu0 0.0
        %574 = vmatpush2.msra.mxu0 0.0
        %575 = vmatprep.subr.mxu0 0.0
        %576 = vmatpush2.msra.mxu0 0.0
        %577 = vmatprep.subr.mxu0 0.0
        %578 = vmatpush2.msra.mxu0 0.0
        %579 = vmatprep.subr.mxu0 0.0
        %580 = vmatpush2.msra.mxu0 0.0
        %581 = vmatprep.subr.mxu0 0.0
        %582 = vmatpush2.msra.mxu0 0.0
        %583 = vmatprep.subr.mxu0 0.0
        %584 = vmatpush2.msra.mxu0 0.0
        %585 = vmatprep.subr.mxu0 0.0
        %586 = vmatpush2.msra.mxu0 0.0
        %587 = vmatprep.mubr.f32.mxu0 0.0
        %588 = vmatmul.mubr.f32.gmra.mxu0 %v384
        %v589 = vpop.f32.mrf.mxu0
        %v590 = vadd.f32 %v519, %v589
        %v591 = vpop.f32.mrf.mxu0
        %v592 = vadd.f32 %v521, %v591
        %593 = vdwg.mxu0
        %s594 = scalar_lea.vmem %s383, 16
        %v595 = vld [vmem:[%s594] sm:$0x7f]
        %s596 = scalar_lea.vmem %s1, 512
        %v597 = vld [vmem:[%s596] sm:$0xff]
        %v598 = vld [vmem:[%s596 + $0x8] sm:$0xff]
        %v599 = vld [vmem:[%s596 + $0x10] sm:$0xff]
        %v600 = vld [vmem:[%s596 + $0x18] sm:$0xff]
        %v601 = vld [vmem:[%s596 + $0x20] sm:$0xff]
        %v602 = vld [vmem:[%s596 + $0x28] sm:$0xff]
        %v603 = vld [vmem:[%s596 + $0x30] sm:$0xff]
        %v604 = vld [vmem:[%s596 + $0x38] sm:$0xff]
        %v605 = vld [vmem:[%s596 + $0x40] sm:$0xff]
        %v606 = vld [vmem:[%s596 + $0x48] sm:$0xff]
        %v607 = vld [vmem:[%s596 + $0x50] sm:$0xff]
        %v608 = vld [vmem:[%s596 + $0x58] sm:$0xff]
        %v609 = vld [vmem:[%s596 + $0x60] sm:$0xff]
        %v610 = vld [vmem:[%s596 + $0x68] sm:$0xff]
        %v611 = vld [vmem:[%s596 + $0x70] sm:$0xff]
        %v612 = vld [vmem:[%s596 + $0x78] sm:$0xff]
        %v613 = vld [vmem:[%s596 + $0x80] sm:$0xff]
        %v614 = vld [vmem:[%s596 + $0x88] sm:$0xff]
        %v615 = vld [vmem:[%s596 + $0x90] sm:$0xff]
        %v616 = vld [vmem:[%s596 + $0x98] sm:$0xff]
        %v617 = vld [vmem:[%s596 + $0xa0] sm:$0xff]
        %v618 = vld [vmem:[%s596 + $0xa8] sm:$0xff]
        %v619 = vld [vmem:[%s596 + $0xb0] sm:$0xff]
        %v620 = vld [vmem:[%s596 + $0xb8] sm:$0xff]
        %v621 = vld [vmem:[%s596 + $0xc0] sm:$0xff]
        %v622 = vld [vmem:[%s596 + $0xc8] sm:$0xff]
        %v623 = vld [vmem:[%s596 + $0xd0] sm:$0xff]
        %v624 = vld [vmem:[%s596 + $0xd8] sm:$0xff]
        %v625 = vld [vmem:[%s596 + $0xe0] sm:$0xff]
        %v626 = vld [vmem:[%s596 + $0xe8] sm:$0xff]
        %v627 = vld [vmem:[%s596 + $0xf0] sm:$0xff]
        %v628 = vld [vmem:[%s596 + $0xf8] sm:$0xff]
        %629 = vmatprep.subr.mxu0 %v628
        %630 = vmatpush1.msra.mxu0 %v627
        %631 = vmatprep.subr.mxu0 %v626
        %632 = vmatpush1.msra.mxu0 %v625
        %633 = vmatprep.subr.mxu0 %v624
        %634 = vmatpush1.msra.mxu0 %v623
        %635 = vmatprep.subr.mxu0 %v622
        %636 = vmatpush1.msra.mxu0 %v621
        %637 = vmatprep.subr.mxu0 %v620
        %638 = vmatpush1.msra.mxu0 %v619
        %639 = vmatprep.subr.mxu0 %v618
        %640 = vmatpush1.msra.mxu0 %v617
        %641 = vmatprep.subr.mxu0 %v616
        %642 = vmatpush1.msra.mxu0 %v615
        %643 = vmatprep.subr.mxu0 %v614
        %644 = vmatpush1.msra.mxu0 %v613
        %645 = vmatprep.subr.mxu0 %v612
        %646 = vmatpush1.msra.mxu0 %v611
        %647 = vmatprep.subr.mxu0 %v610
        %648 = vmatpush1.msra.mxu0 %v609
        %649 = vmatprep.subr.mxu0 %v608
        %650 = vmatpush1.msra.mxu0 %v607
        %651 = vmatprep.subr.mxu0 %v606
        %652 = vmatpush1.msra.mxu0 %v605
        %653 = vmatprep.subr.mxu0 %v604
        %654 = vmatpush1.msra.mxu0 %v603
        %655 = vmatprep.subr.mxu0 %v602
        %656 = vmatpush1.msra.mxu0 %v601
        %657 = vmatprep.subr.mxu0 %v600
        %658 = vmatpush1.msra.mxu0 %v599
        %659 = vmatprep.subr.mxu0 %v598
        %660 = vmatpush1.msra.mxu0 %v597
        %661 = vmatprep.subr.mxu0 0.0
        %662 = vmatpush2.msra.mxu0 0.0
        %663 = vmatprep.subr.mxu0 0.0
        %664 = vmatpush2.msra.mxu0 0.0
        %665 = vmatprep.subr.mxu0 0.0
        %666 = vmatpush2.msra.mxu0 0.0
        %667 = vmatprep.subr.mxu0 0.0
        %668 = vmatpush2.msra.mxu0 0.0
        %669 = vmatprep.subr.mxu0 0.0
        %670 = vmatpush2.msra.mxu0 0.0
        %671 = vmatprep.subr.mxu0 0.0
        %672 = vmatpush2.msra.mxu0 0.0
        %673 = vmatprep.subr.mxu0 0.0
        %674 = vmatpush2.msra.mxu0 0.0
        %675 = vmatprep.subr.mxu0 0.0
        %676 = vmatpush2.msra.mxu0 0.0
        %677 = vmatprep.subr.mxu0 0.0
        %678 = vmatpush2.msra.mxu0 0.0
        %679 = vmatprep.subr.mxu0 0.0
        %680 = vmatpush2.msra.mxu0 0.0
        %681 = vmatprep.subr.mxu0 0.0
        %682 = vmatpush2.msra.mxu0 0.0
        %683 = vmatprep.subr.mxu0 0.0
        %684 = vmatpush2.msra.mxu0 0.0
        %685 = vmatprep.subr.mxu0 0.0
        %686 = vmatpush2.msra.mxu0 0.0
        %687 = vmatprep.subr.mxu0 0.0
        %688 = vmatpush2.msra.mxu0 0.0
        %689 = vmatprep.subr.mxu0 0.0
        %690 = vmatpush2.msra.mxu0 0.0
        %691 = vmatprep.subr.mxu0 0.0
        %692 = vmatpush2.msra.mxu0 0.0
        %693 = vmatprep.mubr.f32.mxu0 0.0
        %694 = vmatmul.mubr.f32.gmra.mxu0 %v595
        %v695 = vpop.f32.mrf.mxu0
        %v696 = vadd.f32 0.0, %v695
        %v697 = vpop.f32.mrf.mxu0
        %v698 = vadd.f32 0.0, %v697
        %699 = vdwg.mxu0
        %v700 = vadd.f32 %v590, %v696
        %v701 = vadd.f32 %v592, %v698
        %s702 = scalar_lea.vmem %s383, 24
        %v703 = vld [vmem:[%s702] sm:$0x7f]
        %s704 = scalar_lea.vmem %s1, 768
        %v705 = vld [vmem:[%s704] sm:$0xff]
        %v706 = vld [vmem:[%s704 + $0x8] sm:$0xff]
        %v707 = vld [vmem:[%s704 + $0x10] sm:$0xff]
        %v708 = vld [vmem:[%s704 + $0x18] sm:$0xff]
        %v709 = vld [vmem:[%s704 + $0x20] sm:$0xff]
        %v710 = vld [vmem:[%s704 + $0x28] sm:$0xff]
        %v711 = vld [vmem:[%s704 + $0x30] sm:$0xff]
        %v712 = vld [vmem:[%s704 + $0x38] sm:$0xff]
        %v713 = vld [vmem:[%s704 + $0x40] sm:$0xff]
        %v714 = vld [vmem:[%s704 + $0x48] sm:$0xff]
        %v715 = vld [vmem:[%s704 + $0x50] sm:$0xff]
        %v716 = vld [vmem:[%s704 + $0x58] sm:$0xff]
        %v717 = vld [vmem:[%s704 + $0x60] sm:$0xff]
        %v718 = vld [vmem:[%s704 + $0x68] sm:$0xff]
        %v719 = vld [vmem:[%s704 + $0x70] sm:$0xff]
        %v720 = vld [vmem:[%s704 + $0x78] sm:$0xff]
        %v721 = vld [vmem:[%s704 + $0x80] sm:$0xff]
        %v722 = vld [vmem:[%s704 + $0x88] sm:$0xff]
        %v723 = vld [vmem:[%s704 + $0x90] sm:$0xff]
        %v724 = vld [vmem:[%s704 + $0x98] sm:$0xff]
        %v725 = vld [vmem:[%s704 + $0xa0] sm:$0xff]
        %v726 = vld [vmem:[%s704 + $0xa8] sm:$0xff]
        %v727 = vld [vmem:[%s704 + $0xb0] sm:$0xff]
        %v728 = vld [vmem:[%s704 + $0xb8] sm:$0xff]
        %v729 = vld [vmem:[%s704 + $0xc0] sm:$0xff]
        %v730 = vld [vmem:[%s704 + $0xc8] sm:$0xff]
        %v731 = vld [vmem:[%s704 + $0xd0] sm:$0xff]
        %v732 = vld [vmem:[%s704 + $0xd8] sm:$0xff]
        %v733 = vld [vmem:[%s704 + $0xe0] sm:$0xff]
        %v734 = vld [vmem:[%s704 + $0xe8] sm:$0xff]
        %v735 = vld [vmem:[%s704 + $0xf0] sm:$0xff]
        %v736 = vld [vmem:[%s704 + $0xf8] sm:$0xff]
        %737 = vmatprep.subr.mxu0 %v736
        %738 = vmatpush1.msra.mxu0 %v735
        %739 = vmatprep.subr.mxu0 %v734
        %740 = vmatpush1.msra.mxu0 %v733
        %741 = vmatprep.subr.mxu0 %v732
        %742 = vmatpush1.msra.mxu0 %v731
        %743 = vmatprep.subr.mxu0 %v730
        %744 = vmatpush1.msra.mxu0 %v729
        %745 = vmatprep.subr.mxu0 %v728
        %746 = vmatpush1.msra.mxu0 %v727
        %747 = vmatprep.subr.mxu0 %v726
        %748 = vmatpush1.msra.mxu0 %v725
        %749 = vmatprep.subr.mxu0 %v724
        %750 = vmatpush1.msra.mxu0 %v723
        %751 = vmatprep.subr.mxu0 %v722
        %752 = vmatpush1.msra.mxu0 %v721
        %753 = vmatprep.subr.mxu0 %v720
        %754 = vmatpush1.msra.mxu0 %v719
        %755 = vmatprep.subr.mxu0 %v718
        %756 = vmatpush1.msra.mxu0 %v717
        %757 = vmatprep.subr.mxu0 %v716
        %758 = vmatpush1.msra.mxu0 %v715
        %759 = vmatprep.subr.mxu0 %v714
        %760 = vmatpush1.msra.mxu0 %v713
        %761 = vmatprep.subr.mxu0 %v712
        %762 = vmatpush1.msra.mxu0 %v711
        %763 = vmatprep.subr.mxu0 %v710
        %764 = vmatpush1.msra.mxu0 %v709
        %765 = vmatprep.subr.mxu0 %v708
        %766 = vmatpush1.msra.mxu0 %v707
        %767 = vmatprep.subr.mxu0 %v706
        %768 = vmatpush1.msra.mxu0 %v705
        %769 = vmatprep.subr.mxu0 0.0
        %770 = vmatpush2.msra.mxu0 0.0
        %771 = vmatprep.subr.mxu0 0.0
        %772 = vmatpush2.msra.mxu0 0.0
        %773 = vmatprep.subr.mxu0 0.0
        %774 = vmatpush2.msra.mxu0 0.0
        %775 = vmatprep.subr.mxu0 0.0
        %776 = vmatpush2.msra.mxu0 0.0
        %777 = vmatprep.subr.mxu0 0.0
        %778 = vmatpush2.msra.mxu0 0.0
        %779 = vmatprep.subr.mxu0 0.0
        %780 = vmatpush2.msra.mxu0 0.0
        %781 = vmatprep.subr.mxu0 0.0
        %782 = vmatpush2.msra.mxu0 0.0
        %783 = vmatprep.subr.mxu0 0.0
        %784 = vmatpush2.msra.mxu0 0.0
        %785 = vmatprep.subr.mxu0 0.0
        %786 = vmatpush2.msra.mxu0 0.0
        %787 = vmatprep.subr.mxu0 0.0
        %788 = vmatpush2.msra.mxu0 0.0
        %789 = vmatprep.subr.mxu0 0.0
        %790 = vmatpush2.msra.mxu0 0.0
        %791 = vmatprep.subr.mxu0 0.0
        %792 = vmatpush2.msra.mxu0 0.0
        %793 = vmatprep.subr.mxu0 0.0
        %794 = vmatpush2.msra.mxu0 0.0
        %795 = vmatprep.subr.mxu0 0.0
        %796 = vmatpush2.msra.mxu0 0.0
        %797 = vmatprep.subr.mxu0 0.0
        %798 = vmatpush2.msra.mxu0 0.0
        %799 = vmatprep.subr.mxu0 0.0
        %800 = vmatpush2.msra.mxu0 0.0
        %801 = vmatprep.mubr.f32.mxu0 0.0
        %802 = vmatmul.mubr.f32.gmra.mxu0 %v703
        %v803 = vpop.f32.mrf.mxu0
        %v804 = vadd.f32 0.0, %v803
        %v805 = vpop.f32.mrf.mxu0
        %v806 = vadd.f32 0.0, %v805
        %807 = vdwg.mxu0
        %v808 = vadd.f32 %v700, %v804
        %v809 = vadd.f32 %v701, %v806
        %v810 = vld [vmem:[%s383 + $0x1] sm:$0x7f]
        %s811 = scalar_lea.vmem %s1, 1024
        %v812 = vld [vmem:[%s811] sm:$0xff]
        %v813 = vld [vmem:[%s811 + $0x8] sm:$0xff]
        %v814 = vld [vmem:[%s811 + $0x10] sm:$0xff]
        %v815 = vld [vmem:[%s811 + $0x18] sm:$0xff]
        %v816 = vld [vmem:[%s811 + $0x20] sm:$0xff]
        %v817 = vld [vmem:[%s811 + $0x28] sm:$0xff]
        %v818 = vld [vmem:[%s811 + $0x30] sm:$0xff]
        %v819 = vld [vmem:[%s811 + $0x38] sm:$0xff]
        %v820 = vld [vmem:[%s811 + $0x40] sm:$0xff]
        %v821 = vld [vmem:[%s811 + $0x48] sm:$0xff]
        %v822 = vld [vmem:[%s811 + $0x50] sm:$0xff]
        %v823 = vld [vmem:[%s811 + $0x58] sm:$0xff]
        %v824 = vld [vmem:[%s811 + $0x60] sm:$0xff]
        %v825 = vld [vmem:[%s811 + $0x68] sm:$0xff]
        %v826 = vld [vmem:[%s811 + $0x70] sm:$0xff]
        %v827 = vld [vmem:[%s811 + $0x78] sm:$0xff]
        %v828 = vld [vmem:[%s811 + $0x80] sm:$0xff]
        %v829 = vld [vmem:[%s811 + $0x88] sm:$0xff]
        %v830 = vld [vmem:[%s811 + $0x90] sm:$0xff]
        %v831 = vld [vmem:[%s811 + $0x98] sm:$0xff]
        %v832 = vld [vmem:[%s811 + $0xa0] sm:$0xff]
        %v833 = vld [vmem:[%s811 + $0xa8] sm:$0xff]
        %v834 = vld [vmem:[%s811 + $0xb0] sm:$0xff]
        %v835 = vld [vmem:[%s811 + $0xb8] sm:$0xff]
        %v836 = vld [vmem:[%s811 + $0xc0] sm:$0xff]
        %v837 = vld [vmem:[%s811 + $0xc8] sm:$0xff]
        %v838 = vld [vmem:[%s811 + $0xd0] sm:$0xff]
        %v839 = vld [vmem:[%s811 + $0xd8] sm:$0xff]
        %v840 = vld [vmem:[%s811 + $0xe0] sm:$0xff]
        %v841 = vld [vmem:[%s811 + $0xe8] sm:$0xff]
        %v842 = vld [vmem:[%s811 + $0xf0] sm:$0xff]
        %v843 = vld [vmem:[%s811 + $0xf8] sm:$0xff]
        %844 = vmatprep.subr.mxu0 %v843
        %845 = vmatpush1.msra.mxu0 %v842
        %846 = vmatprep.subr.mxu0 %v841
        %847 = vmatpush1.msra.mxu0 %v840
        %848 = vmatprep.subr.mxu0 %v839
        %849 = vmatpush1.msra.mxu0 %v838
        %850 = vmatprep.subr.mxu0 %v837
        %851 = vmatpush1.msra.mxu0 %v836
        %852 = vmatprep.subr.mxu0 %v835
        %853 = vmatpush1.msra.mxu0 %v834
        %854 = vmatprep.subr.mxu0 %v833
        %855 = vmatpush1.msra.mxu0 %v832
        %856 = vmatprep.subr.mxu0 %v831
        %857 = vmatpush1.msra.mxu0 %v830
        %858 = vmatprep.subr.mxu0 %v829
        %859 = vmatpush1.msra.mxu0 %v828
        %860 = vmatprep.subr.mxu0 %v827
        %861 = vmatpush1.msra.mxu0 %v826
        %862 = vmatprep.subr.mxu0 %v825
        %863 = vmatpush1.msra.mxu0 %v824
        %864 = vmatprep.subr.mxu0 %v823
        %865 = vmatpush1.msra.mxu0 %v822
        %866 = vmatprep.subr.mxu0 %v821
        %867 = vmatpush1.msra.mxu0 %v820
        %868 = vmatprep.subr.mxu0 %v819
        %869 = vmatpush1.msra.mxu0 %v818
        %870 = vmatprep.subr.mxu0 %v817
        %871 = vmatpush1.msra.mxu0 %v816
        %872 = vmatprep.subr.mxu0 %v815
        %873 = vmatpush1.msra.mxu0 %v814
        %874 = vmatprep.subr.mxu0 %v813
        %875 = vmatpush1.msra.mxu0 %v812
        %876 = vmatprep.subr.mxu0 0.0
        %877 = vmatpush2.msra.mxu0 0.0
        %878 = vmatprep.subr.mxu0 0.0
        %879 = vmatpush2.msra.mxu0 0.0
        %880 = vmatprep.subr.mxu0 0.0
        %881 = vmatpush2.msra.mxu0 0.0
        %882 = vmatprep.subr.mxu0 0.0
        %883 = vmatpush2.msra.mxu0 0.0
        %884 = vmatprep.subr.mxu0 0.0
        %885 = vmatpush2.msra.mxu0 0.0
        %886 = vmatprep.subr.mxu0 0.0
        %887 = vmatpush2.msra.mxu0 0.0
        %888 = vmatprep.subr.mxu0 0.0
        %889 = vmatpush2.msra.mxu0 0.0
        %890 = vmatprep.subr.mxu0 0.0
        %891 = vmatpush2.msra.mxu0 0.0
        %892 = vmatprep.subr.mxu0 0.0
        %893 = vmatpush2.msra.mxu0 0.0
        %894 = vmatprep.subr.mxu0 0.0
        %895 = vmatpush2.msra.mxu0 0.0
        %896 = vmatprep.subr.mxu0 0.0
        %897 = vmatpush2.msra.mxu0 0.0
        %898 = vmatprep.subr.mxu0 0.0
        %899 = vmatpush2.msra.mxu0 0.0
        %900 = vmatprep.subr.mxu0 0.0
        %901 = vmatpush2.msra.mxu0 0.0
        %902 = vmatprep.subr.mxu0 0.0
        %903 = vmatpush2.msra.mxu0 0.0
        %904 = vmatprep.subr.mxu0 0.0
        %905 = vmatpush2.msra.mxu0 0.0
        %906 = vmatprep.subr.mxu0 0.0
        %907 = vmatpush2.msra.mxu0 0.0
        %908 = vmatprep.mubr.f32.mxu0 0.0
        %909 = vmatmul.mubr.f32.gmra.mxu0 %v810
        %v910 = vpop.f32.mrf.mxu0
        %v911 = vadd.f32 0.0, %v910
        %v912 = vpop.f32.mrf.mxu0
        %v913 = vadd.f32 0.0, %v912
        %914 = vdwg.mxu0
        %v915 = vadd.f32 %v808, %v911
        %v916 = vadd.f32 %v809, %v913
        %v917 = vld [vmem:[%s2] sm:$0x3]
        %v919 = vlaneseq
        %v920 = vshrl.u32 %v919, 7
        %v921 = vsub.s32 0, %v920
        %v922 = vrot.slane %v917, %v921
        %v923 = vlaneseq
        %v924 = vshrl.u32 %v923, 7
        %v925 = vsub.s32 1, %v924
        %v926 = vrot.slane %v917, %v925
        %v929 = vadd.f32 %v915, %v922
        %v930 = vadd.f32 %v916, %v926
        %v931 = vmax.f32 %v929, 0.0
        %v932 = vmax.f32 %v930, 0.0
        %933 = vmatprep.subr.mxu0 %v451
        %934 = vmatpush1.msra.mxu0 %v450
        %935 = vmatprep.subr.mxu0 %v449
        %936 = vmatpush1.msra.mxu0 %v448
        %937 = vmatprep.subr.mxu0 %v447
        %938 = vmatpush1.msra.mxu0 %v446
        %939 = vmatprep.subr.mxu0 %v445
        %940 = vmatpush1.msra.mxu0 %v444
        %941 = vmatprep.subr.mxu0 %v443
        %942 = vmatpush1.msra.mxu0 %v442
        %943 = vmatprep.subr.mxu0 %v441
        %944 = vmatpush1.msra.mxu0 %v440
        %945 = vmatprep.subr.mxu0 %v439
        %946 = vmatpush1.msra.mxu0 %v438
        %947 = vmatprep.subr.mxu0 %v437
        %948 = vmatpush1.msra.mxu0 %v436
        %949 = vmatprep.subr.mxu0 %v435
        %950 = vmatpush1.msra.mxu0 %v434
        %951 = vmatprep.subr.mxu0 %v433
        %952 = vmatpush1.msra.mxu0 %v432
        %953 = vmatprep.subr.mxu0 %v431
        %954 = vmatpush1.msra.mxu0 %v430
        %955 = vmatprep.subr.mxu0 %v429
        %956 = vmatpush1.msra.mxu0 %v428
        %957 = vmatprep.subr.mxu0 %v427
        %958 = vmatpush1.msra.mxu0 %v426
        %959 = vmatprep.subr.mxu0 %v425
        %960 = vmatpush1.msra.mxu0 %v424
        %961 = vmatprep.subr.mxu0 %v423
        %962 = vmatpush1.msra.mxu0 %v422
        %963 = vmatprep.subr.mxu0 %v421
        %964 = vmatpush1.msra.mxu0 %v420
        %965 = vmatprep.subr.mxu0 0.0
        %966 = vmatpush2.msra.mxu0 0.0
        %967 = vmatprep.subr.mxu0 0.0
        %968 = vmatpush2.msra.mxu0 0.0
        %969 = vmatprep.subr.mxu0 0.0
        %970 = vmatpush2.msra.mxu0 0.0
        %971 = vmatprep.subr.mxu0 0.0
        %972 = vmatpush2.msra.mxu0 0.0
        %973 = vmatprep.subr.mxu0 0.0
        %974 = vmatpush2.msra.mxu0 0.0
        %975 = vmatprep.subr.mxu0 0.0
        %976 = vmatpush2.msra.mxu0 0.0
        %977 = vmatprep.subr.mxu0 0.0
        %978 = vmatpush2.msra.mxu0 0.0
        %979 = vmatprep.subr.mxu0 0.0
        %980 = vmatpush2.msra.mxu0 0.0
        %981 = vmatprep.subr.mxu0 0.0
        %982 = vmatpush2.msra.mxu0 0.0
        %983 = vmatprep.subr.mxu0 0.0
        %984 = vmatpush2.msra.mxu0 0.0
        %985 = vmatprep.subr.mxu0 0.0
        %986 = vmatpush2.msra.mxu0 0.0
        %987 = vmatprep.subr.mxu0 0.0
        %988 = vmatpush2.msra.mxu0 0.0
        %989 = vmatprep.subr.mxu0 0.0
        %990 = vmatpush2.msra.mxu0 0.0
        %991 = vmatprep.subr.mxu0 0.0
        %992 = vmatpush2.msra.mxu0 0.0
        %993 = vmatprep.subr.mxu0 0.0
        %994 = vmatpush2.msra.mxu0 0.0
        %995 = vmatprep.subr.mxu0 0.0
        %996 = vmatpush2.msra.mxu0 0.0
        %997 = vmatprep.mubr.f32.mxu0 0.0
        %998 = vmatmul.mubr.f32.gmra.mxu0 %v595
        %v999 = vpop.f32.mrf.mxu0
        %v1000 = vadd.f32 0.0, %v999
        %v1001 = vpop.f32.mrf.mxu0
        %v1002 = vadd.f32 0.0, %v1001
        %1003 = vdwg.mxu0
        %1004 = vmatprep.subr.mxu0 %v416
        %1005 = vmatpush1.msra.mxu0 %v415
        %1006 = vmatprep.subr.mxu0 %v414
        %1007 = vmatpush1.msra.mxu0 %v413
        %1008 = vmatprep.subr.mxu0 %v412
        %1009 = vmatpush1.msra.mxu0 %v411
        %1010 = vmatprep.subr.mxu0 %v410
        %1011 = vmatpush1.msra.mxu0 %v409
        %1012 = vmatprep.subr.mxu0 %v408
        %1013 = vmatpush1.msra.mxu0 %v407
        %1014 = vmatprep.subr.mxu0 %v406
        %1015 = vmatpush1.msra.mxu0 %v405
        %1016 = vmatprep.subr.mxu0 %v404
        %1017 = vmatpush1.msra.mxu0 %v403
        %1018 = vmatprep.subr.mxu0 %v402
        %1019 = vmatpush1.msra.mxu0 %v401
        %1020 = vmatprep.subr.mxu0 %v400
        %1021 = vmatpush1.msra.mxu0 %v399
        %1022 = vmatprep.subr.mxu0 %v398
        %1023 = vmatpush1.msra.mxu0 %v397
        %1024 = vmatprep.subr.mxu0 %v396
        %1025 = vmatpush1.msra.mxu0 %v395
        %1026 = vmatprep.subr.mxu0 %v394
        %1027 = vmatpush1.msra.mxu0 %v393
        %1028 = vmatprep.subr.mxu0 %v392
        %1029 = vmatpush1.msra.mxu0 %v391
        %1030 = vmatprep.subr.mxu0 %v390
        %1031 = vmatpush1.msra.mxu0 %v389
        %1032 = vmatprep.subr.mxu0 %v388
        %1033 = vmatpush1.msra.mxu0 %v387
        %1034 = vmatprep.subr.mxu0 %v386
        %1035 = vmatpush1.msra.mxu0 %v385
        %1036 = vmatprep.subr.mxu0 0.0
        %1037 = vmatpush2.msra.mxu0 0.0
        %1038 = vmatprep.subr.mxu0 0.0
        %1039 = vmatpush2.msra.mxu0 0.0
        %1040 = vmatprep.subr.mxu0 0.0
        %1041 = vmatpush2.msra.mxu0 0.0
        %1042 = vmatprep.subr.mxu0 0.0
        %1043 = vmatpush2.msra.mxu0 0.0
        %1044 = vmatprep.subr.mxu0 0.0
        %1045 = vmatpush2.msra.mxu0 0.0
        %1046 = vmatprep.subr.mxu0 0.0
        %1047 = vmatpush2.msra.mxu0 0.0
        %1048 = vmatprep.subr.mxu0 0.0
        %1049 = vmatpush2.msra.mxu0 0.0
        %1050 = vmatprep.subr.mxu0 0.0
        %1051 = vmatpush2.msra.mxu0 0.0
        %1052 = vmatprep.subr.mxu0 0.0
        %1053 = vmatpush2.msra.mxu0 0.0
        %1054 = vmatprep.subr.mxu0 0.0
        %1055 = vmatpush2.msra.mxu0 0.0
        %1056 = vmatprep.subr.mxu0 0.0
        %1057 = vmatpush2.msra.mxu0 0.0
        %1058 = vmatprep.subr.mxu0 0.0
        %1059 = vmatpush2.msra.mxu0 0.0
        %1060 = vmatprep.subr.mxu0 0.0
        %1061 = vmatpush2.msra.mxu0 0.0
        %1062 = vmatprep.subr.mxu0 0.0
        %1063 = vmatpush2.msra.mxu0 0.0
        %1064 = vmatprep.subr.mxu0 0.0
        %1065 = vmatpush2.msra.mxu0 0.0
        %1066 = vmatprep.subr.mxu0 0.0
        %1067 = vmatpush2.msra.mxu0 0.0
        %1068 = vmatprep.mubr.f32.mxu0 0.0
        %1069 = vmatmul.mubr.f32.gmra.mxu0 %v418
        %v1070 = vpop.f32.mrf.mxu0
        %v1071 = vadd.f32 %v1000, %v1070
        %v1072 = vpop.f32.mrf.mxu0
        %v1073 = vadd.f32 %v1002, %v1072
        %1074 = vdwg.mxu0
        %1075 = vmatprep.subr.mxu0 %v628
        %1076 = vmatpush1.msra.mxu0 %v627
        %1077 = vmatprep.subr.mxu0 %v626
        %1078 = vmatpush1.msra.mxu0 %v625
        %1079 = vmatprep.subr.mxu0 %v624
        %1080 = vmatpush1.msra.mxu0 %v623
        %1081 = vmatprep.subr.mxu0 %v622
        %1082 = vmatpush1.msra.mxu0 %v621
        %1083 = vmatprep.subr.mxu0 %v620
        %1084 = vmatpush1.msra.mxu0 %v619
        %1085 = vmatprep.subr.mxu0 %v618
        %1086 = vmatpush1.msra.mxu0 %v617
        %1087 = vmatprep.subr.mxu0 %v616
        %1088 = vmatpush1.msra.mxu0 %v615
        %1089 = vmatprep.subr.mxu0 %v614
        %1090 = vmatpush1.msra.mxu0 %v613
        %1091 = vmatprep.subr.mxu0 %v612
        %1092 = vmatpush1.msra.mxu0 %v611
        %1093 = vmatprep.subr.mxu0 %v610
        %1094 = vmatpush1.msra.mxu0 %v609
        %1095 = vmatprep.subr.mxu0 %v608
        %1096 = vmatpush1.msra.mxu0 %v607
        %1097 = vmatprep.subr.mxu0 %v606
        %1098 = vmatpush1.msra.mxu0 %v605
        %1099 = vmatprep.subr.mxu0 %v604
        %1100 = vmatpush1.msra.mxu0 %v603
        %1101 = vmatprep.subr.mxu0 %v602
        %1102 = vmatpush1.msra.mxu0 %v601
        %1103 = vmatprep.subr.mxu0 %v600
        %1104 = vmatpush1.msra.mxu0 %v599
        %1105 = vmatprep.subr.mxu0 %v598
        %1106 = vmatpush1.msra.mxu0 %v597
        %1107 = vmatprep.subr.mxu0 0.0
        %1108 = vmatpush2.msra.mxu0 0.0
        %1109 = vmatprep.subr.mxu0 0.0
        %1110 = vmatpush2.msra.mxu0 0.0
        %1111 = vmatprep.subr.mxu0 0.0
        %1112 = vmatpush2.msra.mxu0 0.0
        %1113 = vmatprep.subr.mxu0 0.0
        %1114 = vmatpush2.msra.mxu0 0.0
        %1115 = vmatprep.subr.mxu0 0.0
        %1116 = vmatpush2.msra.mxu0 0.0
        %1117 = vmatprep.subr.mxu0 0.0
        %1118 = vmatpush2.msra.mxu0 0.0
        %1119 = vmatprep.subr.mxu0 0.0
        %1120 = vmatpush2.msra.mxu0 0.0
        %1121 = vmatprep.subr.mxu0 0.0
        %1122 = vmatpush2.msra.mxu0 0.0
        %1123 = vmatprep.subr.mxu0 0.0
        %1124 = vmatpush2.msra.mxu0 0.0
        %1125 = vmatprep.subr.mxu0 0.0
        %1126 = vmatpush2.msra.mxu0 0.0
        %1127 = vmatprep.subr.mxu0 0.0
        %1128 = vmatpush2.msra.mxu0 0.0
        %1129 = vmatprep.subr.mxu0 0.0
        %1130 = vmatpush2.msra.mxu0 0.0
        %1131 = vmatprep.subr.mxu0 0.0
        %1132 = vmatpush2.msra.mxu0 0.0
        %1133 = vmatprep.subr.mxu0 0.0
        %1134 = vmatpush2.msra.mxu0 0.0
        %1135 = vmatprep.subr.mxu0 0.0
        %1136 = vmatpush2.msra.mxu0 0.0
        %1137 = vmatprep.subr.mxu0 0.0
        %1138 = vmatpush2.msra.mxu0 0.0
        %1139 = vmatprep.mubr.f32.mxu0 0.0
        %1140 = vmatmul.mubr.f32.gmra.mxu0 %v703
        %v1141 = vpop.f32.mrf.mxu0
        %v1142 = vadd.f32 0.0, %v1141
        %v1143 = vpop.f32.mrf.mxu0
        %v1144 = vadd.f32 0.0, %v1143
        %1145 = vdwg.mxu0
        %v1146 = vadd.f32 %v1071, %v1142
        %v1147 = vadd.f32 %v1073, %v1144
        %1148 = vmatprep.subr.mxu0 %v736
        %1149 = vmatpush1.msra.mxu0 %v735
        %1150 = vmatprep.subr.mxu0 %v734
        %1151 = vmatpush1.msra.mxu0 %v733
        %1152 = vmatprep.subr.mxu0 %v732
        %1153 = vmatpush1.msra.mxu0 %v731
        %1154 = vmatprep.subr.mxu0 %v730
        %1155 = vmatpush1.msra.mxu0 %v729
        %1156 = vmatprep.subr.mxu0 %v728
        %1157 = vmatpush1.msra.mxu0 %v727
        %1158 = vmatprep.subr.mxu0 %v726
        %1159 = vmatpush1.msra.mxu0 %v725
        %1160 = vmatprep.subr.mxu0 %v724
        %1161 = vmatpush1.msra.mxu0 %v723
        %1162 = vmatprep.subr.mxu0 %v722
        %1163 = vmatpush1.msra.mxu0 %v721
        %1164 = vmatprep.subr.mxu0 %v720
        %1165 = vmatpush1.msra.mxu0 %v719
        %1166 = vmatprep.subr.mxu0 %v718
        %1167 = vmatpush1.msra.mxu0 %v717
        %1168 = vmatprep.subr.mxu0 %v716
        %1169 = vmatpush1.msra.mxu0 %v715
        %1170 = vmatprep.subr.mxu0 %v714
        %1171 = vmatpush1.msra.mxu0 %v713
        %1172 = vmatprep.subr.mxu0 %v712
        %1173 = vmatpush1.msra.mxu0 %v711
        %1174 = vmatprep.subr.mxu0 %v710
        %1175 = vmatpush1.msra.mxu0 %v709
        %1176 = vmatprep.subr.mxu0 %v708
        %1177 = vmatpush1.msra.mxu0 %v707
        %1178 = vmatprep.subr.mxu0 %v706
        %1179 = vmatpush1.msra.mxu0 %v705
        %1180 = vmatprep.subr.mxu0 0.0
        %1181 = vmatpush2.msra.mxu0 0.0
        %1182 = vmatprep.subr.mxu0 0.0
        %1183 = vmatpush2.msra.mxu0 0.0
        %1184 = vmatprep.subr.mxu0 0.0
        %1185 = vmatpush2.msra.mxu0 0.0
        %1186 = vmatprep.subr.mxu0 0.0
        %1187 = vmatpush2.msra.mxu0 0.0
        %1188 = vmatprep.subr.mxu0 0.0
        %1189 = vmatpush2.msra.mxu0 0.0
        %1190 = vmatprep.subr.mxu0 0.0
        %1191 = vmatpush2.msra.mxu0 0.0
        %1192 = vmatprep.subr.mxu0 0.0
        %1193 = vmatpush2.msra.mxu0 0.0
        %1194 = vmatprep.subr.mxu0 0.0
        %1195 = vmatpush2.msra.mxu0 0.0
        %1196 = vmatprep.subr.mxu0 0.0
        %1197 = vmatpush2.msra.mxu0 0.0
        %1198 = vmatprep.subr.mxu0 0.0
        %1199 = vmatpush2.msra.mxu0 0.0
        %1200 = vmatprep.subr.mxu0 0.0
        %1201 = vmatpush2.msra.mxu0 0.0
        %1202 = vmatprep.subr.mxu0 0.0
        %1203 = vmatpush2.msra.mxu0 0.0
        %1204 = vmatprep.subr.mxu0 0.0
        %1205 = vmatpush2.msra.mxu0 0.0
        %1206 = vmatprep.subr.mxu0 0.0
        %1207 = vmatpush2.msra.mxu0 0.0
        %1208 = vmatprep.subr.mxu0 0.0
        %1209 = vmatpush2.msra.mxu0 0.0
        %1210 = vmatprep.subr.mxu0 0.0
        %1211 = vmatpush2.msra.mxu0 0.0
        %1212 = vmatprep.mubr.f32.mxu0 0.0
        %1213 = vmatmul.mubr.f32.gmra.mxu0 %v810
        %v1214 = vpop.f32.mrf.mxu0
        %v1215 = vadd.f32 0.0, %v1214
        %v1216 = vpop.f32.mrf.mxu0
        %v1217 = vadd.f32 0.0, %v1216
        %1218 = vdwg.mxu0
        %v1219 = vadd.f32 %v1146, %v1215
        %v1220 = vadd.f32 %v1147, %v1217
        %v1221 = vld [vmem:[%s417 + $0x1] sm:$0x7f]
        %1222 = vmatprep.subr.mxu0 %v843
        %1223 = vmatpush1.msra.mxu0 %v842
        %1224 = vmatprep.subr.mxu0 %v841
        %1225 = vmatpush1.msra.mxu0 %v840
        %1226 = vmatprep.subr.mxu0 %v839
        %1227 = vmatpush1.msra.mxu0 %v838
        %1228 = vmatprep.subr.mxu0 %v837
        %1229 = vmatpush1.msra.mxu0 %v836
        %1230 = vmatprep.subr.mxu0 %v835
        %1231 = vmatpush1.msra.mxu0 %v834
        %1232 = vmatprep.subr.mxu0 %v833
        %1233 = vmatpush1.msra.mxu0 %v832
        %1234 = vmatprep.subr.mxu0 %v831
        %1235 = vmatpush1.msra.mxu0 %v830
        %1236 = vmatprep.subr.mxu0 %v829
        %1237 = vmatpush1.msra.mxu0 %v828
        %1238 = vmatprep.subr.mxu0 %v827
        %1239 = vmatpush1.msra.mxu0 %v826
        %1240 = vmatprep.subr.mxu0 %v825
        %1241 = vmatpush1.msra.mxu0 %v824
        %1242 = vmatprep.subr.mxu0 %v823
        %1243 = vmatpush1.msra.mxu0 %v822
        %1244 = vmatprep.subr.mxu0 %v821
        %1245 = vmatpush1.msra.mxu0 %v820
        %1246 = vmatprep.subr.mxu0 %v819
        %1247 = vmatpush1.msra.mxu0 %v818
        %1248 = vmatprep.subr.mxu0 %v817
        %1249 = vmatpush1.msra.mxu0 %v816
        %1250 = vmatprep.subr.mxu0 %v815
        %1251 = vmatpush1.msra.mxu0 %v814
        %1252 = vmatprep.subr.mxu0 %v813
        %1253 = vmatpush1.msra.mxu0 %v812
        %1254 = vmatprep.subr.mxu0 0.0
        %1255 = vmatpush2.msra.mxu0 0.0
        %1256 = vmatprep.subr.mxu0 0.0
        %1257 = vmatpush2.msra.mxu0 0.0
        %1258 = vmatprep.subr.mxu0 0.0
        %1259 = vmatpush2.msra.mxu0 0.0
        %1260 = vmatprep.subr.mxu0 0.0
        %1261 = vmatpush2.msra.mxu0 0.0
        %1262 = vmatprep.subr.mxu0 0.0
        %1263 = vmatpush2.msra.mxu0 0.0
        %1264 = vmatprep.subr.mxu0 0.0
        %1265 = vmatpush2.msra.mxu0 0.0
        %1266 = vmatprep.subr.mxu0 0.0
        %1267 = vmatpush2.msra.mxu0 0.0
        %1268 = vmatprep.subr.mxu0 0.0
        %1269 = vmatpush2.msra.mxu0 0.0
        %1270 = vmatprep.subr.mxu0 0.0
        %1271 = vmatpush2.msra.mxu0 0.0
        %1272 = vmatprep.subr.mxu0 0.0
        %1273 = vmatpush2.msra.mxu0 0.0
        %1274 = vmatprep.subr.mxu0 0.0
        %1275 = vmatpush2.msra.mxu0 0.0
        %1276 = vmatprep.subr.mxu0 0.0
        %1277 = vmatpush2.msra.mxu0 0.0
        %1278 = vmatprep.subr.mxu0 0.0
        %1279 = vmatpush2.msra.mxu0 0.0
        %1280 = vmatprep.subr.mxu0 0.0
        %1281 = vmatpush2.msra.mxu0 0.0
        %1282 = vmatprep.subr.mxu0 0.0
        %1283 = vmatpush2.msra.mxu0 0.0
        %1284 = vmatprep.subr.mxu0 0.0
        %1285 = vmatpush2.msra.mxu0 0.0
        %1286 = vmatprep.mubr.f32.mxu0 0.0
        %1287 = vmatmul.mubr.f32.gmra.mxu0 %v1221
        %v1288 = vpop.f32.mrf.mxu0
        %v1289 = vadd.f32 0.0, %v1288
        %v1290 = vpop.f32.mrf.mxu0
        %v1291 = vadd.f32 0.0, %v1290
        %1292 = vdwg.mxu0
        %v1293 = vadd.f32 %v1219, %v1289
        %v1294 = vadd.f32 %v1220, %v1291
        %v1295 = vadd.f32 %v1293, %v922
        %v1296 = vadd.f32 %v1294, %v926
        %v1297 = vmax.f32 %v1295, 0.0
        %v1298 = vmax.f32 %v1296, 0.0
        %1299 = vmatprep.subr.mxu0 %v451
        %1300 = vmatpush1.msra.mxu0 %v450
        %1301 = vmatprep.subr.mxu0 %v449
        %1302 = vmatpush1.msra.mxu0 %v448
        %1303 = vmatprep.subr.mxu0 %v447
        %1304 = vmatpush1.msra.mxu0 %v446
        %1305 = vmatprep.subr.mxu0 %v445
        %1306 = vmatpush1.msra.mxu0 %v444
        %1307 = vmatprep.subr.mxu0 %v443
        %1308 = vmatpush1.msra.mxu0 %v442
        %1309 = vmatprep.subr.mxu0 %v441
        %1310 = vmatpush1.msra.mxu0 %v440
        %1311 = vmatprep.subr.mxu0 %v439
        %1312 = vmatpush1.msra.mxu0 %v438
        %1313 = vmatprep.subr.mxu0 %v437
        %1314 = vmatpush1.msra.mxu0 %v436
        %1315 = vmatprep.subr.mxu0 %v435
        %1316 = vmatpush1.msra.mxu0 %v434
        %1317 = vmatprep.subr.mxu0 %v433
        %1318 = vmatpush1.msra.mxu0 %v432
        %1319 = vmatprep.subr.mxu0 %v431
        %1320 = vmatpush1.msra.mxu0 %v430
        %1321 = vmatprep.subr.mxu0 %v429
        %1322 = vmatpush1.msra.mxu0 %v428
        %1323 = vmatprep.subr.mxu0 %v427
        %1324 = vmatpush1.msra.mxu0 %v426
        %1325 = vmatprep.subr.mxu0 %v425
        %1326 = vmatpush1.msra.mxu0 %v424
        %1327 = vmatprep.subr.mxu0 %v423
        %1328 = vmatpush1.msra.mxu0 %v422
        %1329 = vmatprep.subr.mxu0 %v421
        %1330 = vmatpush1.msra.mxu0 %v420
        %1331 = vmatprep.subr.mxu0 0.0
        %1332 = vmatpush2.msra.mxu0 0.0
        %1333 = vmatprep.subr.mxu0 0.0
        %1334 = vmatpush2.msra.mxu0 0.0
        %1335 = vmatprep.subr.mxu0 0.0
        %1336 = vmatpush2.msra.mxu0 0.0
        %1337 = vmatprep.subr.mxu0 0.0
        %1338 = vmatpush2.msra.mxu0 0.0
        %1339 = vmatprep.subr.mxu0 0.0
        %1340 = vmatpush2.msra.mxu0 0.0
        %1341 = vmatprep.subr.mxu0 0.0
        %1342 = vmatpush2.msra.mxu0 0.0
        %1343 = vmatprep.subr.mxu0 0.0
        %1344 = vmatpush2.msra.mxu0 0.0
        %1345 = vmatprep.subr.mxu0 0.0
        %1346 = vmatpush2.msra.mxu0 0.0
        %1347 = vmatprep.subr.mxu0 0.0
        %1348 = vmatpush2.msra.mxu0 0.0
        %1349 = vmatprep.subr.mxu0 0.0
        %1350 = vmatpush2.msra.mxu0 0.0
        %1351 = vmatprep.subr.mxu0 0.0
        %1352 = vmatpush2.msra.mxu0 0.0
        %1353 = vmatprep.subr.mxu0 0.0
        %1354 = vmatpush2.msra.mxu0 0.0
        %1355 = vmatprep.subr.mxu0 0.0
        %1356 = vmatpush2.msra.mxu0 0.0
        %1357 = vmatprep.subr.mxu0 0.0
        %1358 = vmatpush2.msra.mxu0 0.0
        %1359 = vmatprep.subr.mxu0 0.0
        %1360 = vmatpush2.msra.mxu0 0.0
        %1361 = vmatprep.subr.mxu0 0.0
        %1362 = vmatpush2.msra.mxu0 0.0
        %1363 = vmatprep.mubr.f32.mxu0 0.0
        %1364 = vmatmul.mubr.f32.gmra.mxu0 %v703
        %v1365 = vpop.f32.mrf.mxu0
        %v1366 = vadd.f32 0.0, %v1365
        %v1367 = vpop.f32.mrf.mxu0
        %v1368 = vadd.f32 0.0, %v1367
        %1369 = vdwg.mxu0
        %1370 = vmatprep.subr.mxu0 %v416
        %1371 = vmatpush1.msra.mxu0 %v415
        %1372 = vmatprep.subr.mxu0 %v414
        %1373 = vmatpush1.msra.mxu0 %v413
        %1374 = vmatprep.subr.mxu0 %v412
        %1375 = vmatpush1.msra.mxu0 %v411
        %1376 = vmatprep.subr.mxu0 %v410
        %1377 = vmatpush1.msra.mxu0 %v409
        %1378 = vmatprep.subr.mxu0 %v408
        %1379 = vmatpush1.msra.mxu0 %v407
        %1380 = vmatprep.subr.mxu0 %v406
        %1381 = vmatpush1.msra.mxu0 %v405
        %1382 = vmatprep.subr.mxu0 %v404
        %1383 = vmatpush1.msra.mxu0 %v403
        %1384 = vmatprep.subr.mxu0 %v402
        %1385 = vmatpush1.msra.mxu0 %v401
        %1386 = vmatprep.subr.mxu0 %v400
        %1387 = vmatpush1.msra.mxu0 %v399
        %1388 = vmatprep.subr.mxu0 %v398
        %1389 = vmatpush1.msra.mxu0 %v397
        %1390 = vmatprep.subr.mxu0 %v396
        %1391 = vmatpush1.msra.mxu0 %v395
        %1392 = vmatprep.subr.mxu0 %v394
        %1393 = vmatpush1.msra.mxu0 %v393
        %1394 = vmatprep.subr.mxu0 %v392
        %1395 = vmatpush1.msra.mxu0 %v391
        %1396 = vmatprep.subr.mxu0 %v390
        %1397 = vmatpush1.msra.mxu0 %v389
        %1398 = vmatprep.subr.mxu0 %v388
        %1399 = vmatpush1.msra.mxu0 %v387
        %1400 = vmatprep.subr.mxu0 %v386
        %1401 = vmatpush1.msra.mxu0 %v385
        %1402 = vmatprep.subr.mxu0 0.0
        %1403 = vmatpush2.msra.mxu0 0.0
        %1404 = vmatprep.subr.mxu0 0.0
        %1405 = vmatpush2.msra.mxu0 0.0
        %1406 = vmatprep.subr.mxu0 0.0
        %1407 = vmatpush2.msra.mxu0 0.0
        %1408 = vmatprep.subr.mxu0 0.0
        %1409 = vmatpush2.msra.mxu0 0.0
        %1410 = vmatprep.subr.mxu0 0.0
        %1411 = vmatpush2.msra.mxu0 0.0
        %1412 = vmatprep.subr.mxu0 0.0
        %1413 = vmatpush2.msra.mxu0 0.0
        %1414 = vmatprep.subr.mxu0 0.0
        %1415 = vmatpush2.msra.mxu0 0.0
        %1416 = vmatprep.subr.mxu0 0.0
        %1417 = vmatpush2.msra.mxu0 0.0
        %1418 = vmatprep.subr.mxu0 0.0
        %1419 = vmatpush2.msra.mxu0 0.0
        %1420 = vmatprep.subr.mxu0 0.0
        %1421 = vmatpush2.msra.mxu0 0.0
        %1422 = vmatprep.subr.mxu0 0.0
        %1423 = vmatpush2.msra.mxu0 0.0
        %1424 = vmatprep.subr.mxu0 0.0
        %1425 = vmatpush2.msra.mxu0 0.0
        %1426 = vmatprep.subr.mxu0 0.0
        %1427 = vmatpush2.msra.mxu0 0.0
        %1428 = vmatprep.subr.mxu0 0.0
        %1429 = vmatpush2.msra.mxu0 0.0
        %1430 = vmatprep.subr.mxu0 0.0
        %1431 = vmatpush2.msra.mxu0 0.0
        %1432 = vmatprep.subr.mxu0 0.0
        %1433 = vmatpush2.msra.mxu0 0.0
        %1434 = vmatprep.mubr.f32.mxu0 0.0
        %1435 = vmatmul.mubr.f32.gmra.mxu0 %v595
        %v1436 = vpop.f32.mrf.mxu0
        %v1437 = vadd.f32 %v1366, %v1436
        %v1438 = vpop.f32.mrf.mxu0
        %v1439 = vadd.f32 %v1368, %v1438
        %1440 = vdwg.mxu0
        %1441 = vmatprep.subr.mxu0 %v628
        %1442 = vmatpush1.msra.mxu0 %v627
        %1443 = vmatprep.subr.mxu0 %v626
        %1444 = vmatpush1.msra.mxu0 %v625
        %1445 = vmatprep.subr.mxu0 %v624
        %1446 = vmatpush1.msra.mxu0 %v623
        %1447 = vmatprep.subr.mxu0 %v622
        %1448 = vmatpush1.msra.mxu0 %v621
        %1449 = vmatprep.subr.mxu0 %v620
        %1450 = vmatpush1.msra.mxu0 %v619
        %1451 = vmatprep.subr.mxu0 %v618
        %1452 = vmatpush1.msra.mxu0 %v617
        %1453 = vmatprep.subr.mxu0 %v616
        %1454 = vmatpush1.msra.mxu0 %v615
        %1455 = vmatprep.subr.mxu0 %v614
        %1456 = vmatpush1.msra.mxu0 %v613
        %1457 = vmatprep.subr.mxu0 %v612
        %1458 = vmatpush1.msra.mxu0 %v611
        %1459 = vmatprep.subr.mxu0 %v610
        %1460 = vmatpush1.msra.mxu0 %v609
        %1461 = vmatprep.subr.mxu0 %v608
        %1462 = vmatpush1.msra.mxu0 %v607
        %1463 = vmatprep.subr.mxu0 %v606
        %1464 = vmatpush1.msra.mxu0 %v605
        %1465 = vmatprep.subr.mxu0 %v604
        %1466 = vmatpush1.msra.mxu0 %v603
        %1467 = vmatprep.subr.mxu0 %v602
        %1468 = vmatpush1.msra.mxu0 %v601
        %1469 = vmatprep.subr.mxu0 %v600
        %1470 = vmatpush1.msra.mxu0 %v599
        %1471 = vmatprep.subr.mxu0 %v598
        %1472 = vmatpush1.msra.mxu0 %v597
        %1473 = vmatprep.subr.mxu0 0.0
        %1474 = vmatpush2.msra.mxu0 0.0
        %1475 = vmatprep.subr.mxu0 0.0
        %1476 = vmatpush2.msra.mxu0 0.0
        %1477 = vmatprep.subr.mxu0 0.0
        %1478 = vmatpush2.msra.mxu0 0.0
        %1479 = vmatprep.subr.mxu0 0.0
        %1480 = vmatpush2.msra.mxu0 0.0
        %1481 = vmatprep.subr.mxu0 0.0
        %1482 = vmatpush2.msra.mxu0 0.0
        %1483 = vmatprep.subr.mxu0 0.0
        %1484 = vmatpush2.msra.mxu0 0.0
        %1485 = vmatprep.subr.mxu0 0.0
        %1486 = vmatpush2.msra.mxu0 0.0
        %1487 = vmatprep.subr.mxu0 0.0
        %1488 = vmatpush2.msra.mxu0 0.0
        %1489 = vmatprep.subr.mxu0 0.0
        %1490 = vmatpush2.msra.mxu0 0.0
        %1491 = vmatprep.subr.mxu0 0.0
        %1492 = vmatpush2.msra.mxu0 0.0
        %1493 = vmatprep.subr.mxu0 0.0
        %1494 = vmatpush2.msra.mxu0 0.0
        %1495 = vmatprep.subr.mxu0 0.0
        %1496 = vmatpush2.msra.mxu0 0.0
        %1497 = vmatprep.subr.mxu0 0.0
        %1498 = vmatpush2.msra.mxu0 0.0
        %1499 = vmatprep.subr.mxu0 0.0
        %1500 = vmatpush2.msra.mxu0 0.0
        %1501 = vmatprep.subr.mxu0 0.0
        %1502 = vmatpush2.msra.mxu0 0.0
        %1503 = vmatprep.subr.mxu0 0.0
        %1504 = vmatpush2.msra.mxu0 0.0
        %1505 = vmatprep.mubr.f32.mxu0 0.0
        %1506 = vmatmul.mubr.f32.gmra.mxu0 %v810
        %v1507 = vpop.f32.mrf.mxu0
        %v1508 = vadd.f32 0.0, %v1507
        %v1509 = vpop.f32.mrf.mxu0
        %v1510 = vadd.f32 0.0, %v1509
        %1511 = vdwg.mxu0
        %v1512 = vadd.f32 %v1437, %v1508
        %v1513 = vadd.f32 %v1439, %v1510
        %1514 = vmatprep.subr.mxu0 %v736
        %1515 = vmatpush1.msra.mxu0 %v735
        %1516 = vmatprep.subr.mxu0 %v734
        %1517 = vmatpush1.msra.mxu0 %v733
        %1518 = vmatprep.subr.mxu0 %v732
        %1519 = vmatpush1.msra.mxu0 %v731
        %1520 = vmatprep.subr.mxu0 %v730
        %1521 = vmatpush1.msra.mxu0 %v729
        %1522 = vmatprep.subr.mxu0 %v728
        %1523 = vmatpush1.msra.mxu0 %v727
        %1524 = vmatprep.subr.mxu0 %v726
        %1525 = vmatpush1.msra.mxu0 %v725
        %1526 = vmatprep.subr.mxu0 %v724
        %1527 = vmatpush1.msra.mxu0 %v723
        %1528 = vmatprep.subr.mxu0 %v722
        %1529 = vmatpush1.msra.mxu0 %v721
        %1530 = vmatprep.subr.mxu0 %v720
        %1531 = vmatpush1.msra.mxu0 %v719
        %1532 = vmatprep.subr.mxu0 %v718
        %1533 = vmatpush1.msra.mxu0 %v717
        %1534 = vmatprep.subr.mxu0 %v716
        %1535 = vmatpush1.msra.mxu0 %v715
        %1536 = vmatprep.subr.mxu0 %v714
        %1537 = vmatpush1.msra.mxu0 %v713
        %1538 = vmatprep.subr.mxu0 %v712
        %1539 = vmatpush1.msra.mxu0 %v711
        %1540 = vmatprep.subr.mxu0 %v710
        %1541 = vmatpush1.msra.mxu0 %v709
        %1542 = vmatprep.subr.mxu0 %v708
        %1543 = vmatpush1.msra.mxu0 %v707
        %1544 = vmatprep.subr.mxu0 %v706
        %1545 = vmatpush1.msra.mxu0 %v705
        %1546 = vmatprep.subr.mxu0 0.0
        %1547 = vmatpush2.msra.mxu0 0.0
        %1548 = vmatprep.subr.mxu0 0.0
        %1549 = vmatpush2.msra.mxu0 0.0
        %1550 = vmatprep.subr.mxu0 0.0
        %1551 = vmatpush2.msra.mxu0 0.0
        %1552 = vmatprep.subr.mxu0 0.0
        %1553 = vmatpush2.msra.mxu0 0.0
        %1554 = vmatprep.subr.mxu0 0.0
        %1555 = vmatpush2.msra.mxu0 0.0
        %1556 = vmatprep.subr.mxu0 0.0
        %1557 = vmatpush2.msra.mxu0 0.0
        %1558 = vmatprep.subr.mxu0 0.0
        %1559 = vmatpush2.msra.mxu0 0.0
        %1560 = vmatprep.subr.mxu0 0.0
        %1561 = vmatpush2.msra.mxu0 0.0
        %1562 = vmatprep.subr.mxu0 0.0
        %1563 = vmatpush2.msra.mxu0 0.0
        %1564 = vmatprep.subr.mxu0 0.0
        %1565 = vmatpush2.msra.mxu0 0.0
        %1566 = vmatprep.subr.mxu0 0.0
        %1567 = vmatpush2.msra.mxu0 0.0
        %1568 = vmatprep.subr.mxu0 0.0
        %1569 = vmatpush2.msra.mxu0 0.0
        %1570 = vmatprep.subr.mxu0 0.0
        %1571 = vmatpush2.msra.mxu0 0.0
        %1572 = vmatprep.subr.mxu0 0.0
        %1573 = vmatpush2.msra.mxu0 0.0
        %1574 = vmatprep.subr.mxu0 0.0
        %1575 = vmatpush2.msra.mxu0 0.0
        %1576 = vmatprep.subr.mxu0 0.0
        %1577 = vmatpush2.msra.mxu0 0.0
        %1578 = vmatprep.mubr.f32.mxu0 0.0
        %1579 = vmatmul.mubr.f32.gmra.mxu0 %v1221
        %v1580 = vpop.f32.mrf.mxu0
        %v1581 = vadd.f32 0.0, %v1580
        %v1582 = vpop.f32.mrf.mxu0
        %v1583 = vadd.f32 0.0, %v1582
        %1584 = vdwg.mxu0
        %v1585 = vadd.f32 %v1512, %v1581
        %v1586 = vadd.f32 %v1513, %v1583
        %v1587 = vld [vmem:[%s594 + $0x1] sm:$0x7f]
        %1588 = vmatprep.subr.mxu0 %v843
        %1589 = vmatpush1.msra.mxu0 %v842
        %1590 = vmatprep.subr.mxu0 %v841
        %1591 = vmatpush1.msra.mxu0 %v840
        %1592 = vmatprep.subr.mxu0 %v839
        %1593 = vmatpush1.msra.mxu0 %v838
        %1594 = vmatprep.subr.mxu0 %v837
        %1595 = vmatpush1.msra.mxu0 %v836
        %1596 = vmatprep.subr.mxu0 %v835
        %1597 = vmatpush1.msra.mxu0 %v834
        %1598 = vmatprep.subr.mxu0 %v833
        %1599 = vmatpush1.msra.mxu0 %v832
        %1600 = vmatprep.subr.mxu0 %v831
        %1601 = vmatpush1.msra.mxu0 %v830
        %1602 = vmatprep.subr.mxu0 %v829
        %1603 = vmatpush1.msra.mxu0 %v828
        %1604 = vmatprep.subr.mxu0 %v827
        %1605 = vmatpush1.msra.mxu0 %v826
        %1606 = vmatprep.subr.mxu0 %v825
        %1607 = vmatpush1.msra.mxu0 %v824
        %1608 = vmatprep.subr.mxu0 %v823
        %1609 = vmatpush1.msra.mxu0 %v822
        %1610 = vmatprep.subr.mxu0 %v821
        %1611 = vmatpush1.msra.mxu0 %v820
        %1612 = vmatprep.subr.mxu0 %v819
        %1613 = vmatpush1.msra.mxu0 %v818
        %1614 = vmatprep.subr.mxu0 %v817
        %1615 = vmatpush1.msra.mxu0 %v816
        %1616 = vmatprep.subr.mxu0 %v815
        %1617 = vmatpush1.msra.mxu0 %v814
        %1618 = vmatprep.subr.mxu0 %v813
        %1619 = vmatpush1.msra.mxu0 %v812
        %1620 = vmatprep.subr.mxu0 0.0
        %1621 = vmatpush2.msra.mxu0 0.0
        %1622 = vmatprep.subr.mxu0 0.0
        %1623 = vmatpush2.msra.mxu0 0.0
        %1624 = vmatprep.subr.mxu0 0.0
        %1625 = vmatpush2.msra.mxu0 0.0
        %1626 = vmatprep.subr.mxu0 0.0
        %1627 = vmatpush2.msra.mxu0 0.0
        %1628 = vmatprep.subr.mxu0 0.0
        %1629 = vmatpush2.msra.mxu0 0.0
        %1630 = vmatprep.subr.mxu0 0.0
        %1631 = vmatpush2.msra.mxu0 0.0
        %1632 = vmatprep.subr.mxu0 0.0
        %1633 = vmatpush2.msra.mxu0 0.0
        %1634 = vmatprep.subr.mxu0 0.0
        %1635 = vmatpush2.msra.mxu0 0.0
        %1636 = vmatprep.subr.mxu0 0.0
        %1637 = vmatpush2.msra.mxu0 0.0
        %1638 = vmatprep.subr.mxu0 0.0
        %1639 = vmatpush2.msra.mxu0 0.0
        %1640 = vmatprep.subr.mxu0 0.0
        %1641 = vmatpush2.msra.mxu0 0.0
        %1642 = vmatprep.subr.mxu0 0.0
        %1643 = vmatpush2.msra.mxu0 0.0
        %1644 = vmatprep.subr.mxu0 0.0
        %1645 = vmatpush2.msra.mxu0 0.0
        %1646 = vmatprep.subr.mxu0 0.0
        %1647 = vmatpush2.msra.mxu0 0.0
        %1648 = vmatprep.subr.mxu0 0.0
        %1649 = vmatpush2.msra.mxu0 0.0
        %1650 = vmatprep.subr.mxu0 0.0
        %1651 = vmatpush2.msra.mxu0 0.0
        %1652 = vmatprep.mubr.f32.mxu0 0.0
        %1653 = vmatmul.mubr.f32.gmra.mxu0 %v1587
        %v1654 = vpop.f32.mrf.mxu0
        %v1655 = vadd.f32 0.0, %v1654
        %v1656 = vpop.f32.mrf.mxu0
        %v1657 = vadd.f32 0.0, %v1656
        %1658 = vdwg.mxu0
        %v1659 = vadd.f32 %v1585, %v1655
        %v1660 = vadd.f32 %v1586, %v1657
        %v1661 = vadd.f32 %v1659, %v922
        %v1662 = vadd.f32 %v1660, %v926
        %v1663 = vmax.f32 %v1661, 0.0
        %v1664 = vmax.f32 %v1662, 0.0
        %1665 = vmatprep.subr.mxu0 %v451
        %1666 = vmatpush1.msra.mxu0 %v450
        %1667 = vmatprep.subr.mxu0 %v449
        %1668 = vmatpush1.msra.mxu0 %v448
        %1669 = vmatprep.subr.mxu0 %v447
        %1670 = vmatpush1.msra.mxu0 %v446
        %1671 = vmatprep.subr.mxu0 %v445
        %1672 = vmatpush1.msra.mxu0 %v444
        %1673 = vmatprep.subr.mxu0 %v443
        %1674 = vmatpush1.msra.mxu0 %v442
        %1675 = vmatprep.subr.mxu0 %v441
        %1676 = vmatpush1.msra.mxu0 %v440
        %1677 = vmatprep.subr.mxu0 %v439
        %1678 = vmatpush1.msra.mxu0 %v438
        %1679 = vmatprep.subr.mxu0 %v437
        %1680 = vmatpush1.msra.mxu0 %v436
        %1681 = vmatprep.subr.mxu0 %v435
        %1682 = vmatpush1.msra.mxu0 %v434
        %1683 = vmatprep.subr.mxu0 %v433
        %1684 = vmatpush1.msra.mxu0 %v432
        %1685 = vmatprep.subr.mxu0 %v431
        %1686 = vmatpush1.msra.mxu0 %v430
        %1687 = vmatprep.subr.mxu0 %v429
        %1688 = vmatpush1.msra.mxu0 %v428
        %1689 = vmatprep.subr.mxu0 %v427
        %1690 = vmatpush1.msra.mxu0 %v426
        %1691 = vmatprep.subr.mxu0 %v425
        %1692 = vmatpush1.msra.mxu0 %v424
        %1693 = vmatprep.subr.mxu0 %v423
        %1694 = vmatpush1.msra.mxu0 %v422
        %1695 = vmatprep.subr.mxu0 %v421
        %1696 = vmatpush1.msra.mxu0 %v420
        %1697 = vmatprep.subr.mxu0 0.0
        %1698 = vmatpush2.msra.mxu0 0.0
        %1699 = vmatprep.subr.mxu0 0.0
        %1700 = vmatpush2.msra.mxu0 0.0
        %1701 = vmatprep.subr.mxu0 0.0
        %1702 = vmatpush2.msra.mxu0 0.0
        %1703 = vmatprep.subr.mxu0 0.0
        %1704 = vmatpush2.msra.mxu0 0.0
        %1705 = vmatprep.subr.mxu0 0.0
        %1706 = vmatpush2.msra.mxu0 0.0
        %1707 = vmatprep.subr.mxu0 0.0
        %1708 = vmatpush2.msra.mxu0 0.0
        %1709 = vmatprep.subr.mxu0 0.0
        %1710 = vmatpush2.msra.mxu0 0.0
        %1711 = vmatprep.subr.mxu0 0.0
        %1712 = vmatpush2.msra.mxu0 0.0
        %1713 = vmatprep.subr.mxu0 0.0
        %1714 = vmatpush2.msra.mxu0 0.0
        %1715 = vmatprep.subr.mxu0 0.0
        %1716 = vmatpush2.msra.mxu0 0.0
        %1717 = vmatprep.subr.mxu0 0.0
        %1718 = vmatpush2.msra.mxu0 0.0
        %1719 = vmatprep.subr.mxu0 0.0
        %1720 = vmatpush2.msra.mxu0 0.0
        %1721 = vmatprep.subr.mxu0 0.0
        %1722 = vmatpush2.msra.mxu0 0.0
        %1723 = vmatprep.subr.mxu0 0.0
        %1724 = vmatpush2.msra.mxu0 0.0
        %1725 = vmatprep.subr.mxu0 0.0
        %1726 = vmatpush2.msra.mxu0 0.0
        %1727 = vmatprep.subr.mxu0 0.0
        %1728 = vmatpush2.msra.mxu0 0.0
        %1729 = vmatprep.mubr.f32.mxu0 0.0
        %1730 = vmatmul.mubr.f32.gmra.mxu0 %v810
        %v1731 = vpop.f32.mrf.mxu0
        %v1732 = vadd.f32 0.0, %v1731
        %v1733 = vpop.f32.mrf.mxu0
        %v1734 = vadd.f32 0.0, %v1733
        %1735 = vdwg.mxu0
        %1736 = vmatprep.subr.mxu0 %v416
        %1737 = vmatpush1.msra.mxu0 %v415
        %1738 = vmatprep.subr.mxu0 %v414
        %1739 = vmatpush1.msra.mxu0 %v413
        %1740 = vmatprep.subr.mxu0 %v412
        %1741 = vmatpush1.msra.mxu0 %v411
        %1742 = vmatprep.subr.mxu0 %v410
        %1743 = vmatpush1.msra.mxu0 %v409
        %1744 = vmatprep.subr.mxu0 %v408
        %1745 = vmatpush1.msra.mxu0 %v407
        %1746 = vmatprep.subr.mxu0 %v406
        %1747 = vmatpush1.msra.mxu0 %v405
        %1748 = vmatprep.subr.mxu0 %v404
        %1749 = vmatpush1.msra.mxu0 %v403
        %1750 = vmatprep.subr.mxu0 %v402
        %1751 = vmatpush1.msra.mxu0 %v401
        %1752 = vmatprep.subr.mxu0 %v400
        %1753 = vmatpush1.msra.mxu0 %v399
        %1754 = vmatprep.subr.mxu0 %v398
        %1755 = vmatpush1.msra.mxu0 %v397
        %1756 = vmatprep.subr.mxu0 %v396
        %1757 = vmatpush1.msra.mxu0 %v395
        %1758 = vmatprep.subr.mxu0 %v394
        %1759 = vmatpush1.msra.mxu0 %v393
        %1760 = vmatprep.subr.mxu0 %v392
        %1761 = vmatpush1.msra.mxu0 %v391
        %1762 = vmatprep.subr.mxu0 %v390
        %1763 = vmatpush1.msra.mxu0 %v389
        %1764 = vmatprep.subr.mxu0 %v388
        %1765 = vmatpush1.msra.mxu0 %v387
        %1766 = vmatprep.subr.mxu0 %v386
        %1767 = vmatpush1.msra.mxu0 %v385
        %1768 = vmatprep.subr.mxu0 0.0
        %1769 = vmatpush2.msra.mxu0 0.0
        %1770 = vmatprep.subr.mxu0 0.0
        %1771 = vmatpush2.msra.mxu0 0.0
        %1772 = vmatprep.subr.mxu0 0.0
        %1773 = vmatpush2.msra.mxu0 0.0
        %1774 = vmatprep.subr.mxu0 0.0
        %1775 = vmatpush2.msra.mxu0 0.0
        %1776 = vmatprep.subr.mxu0 0.0
        %1777 = vmatpush2.msra.mxu0 0.0
        %1778 = vmatprep.subr.mxu0 0.0
        %1779 = vmatpush2.msra.mxu0 0.0
        %1780 = vmatprep.subr.mxu0 0.0
        %1781 = vmatpush2.msra.mxu0 0.0
        %1782 = vmatprep.subr.mxu0 0.0
        %1783 = vmatpush2.msra.mxu0 0.0
        %1784 = vmatprep.subr.mxu0 0.0
        %1785 = vmatpush2.msra.mxu0 0.0
        %1786 = vmatprep.subr.mxu0 0.0
        %1787 = vmatpush2.msra.mxu0 0.0
        %1788 = vmatprep.subr.mxu0 0.0
        %1789 = vmatpush2.msra.mxu0 0.0
        %1790 = vmatprep.subr.mxu0 0.0
        %1791 = vmatpush2.msra.mxu0 0.0
        %1792 = vmatprep.subr.mxu0 0.0
        %1793 = vmatpush2.msra.mxu0 0.0
        %1794 = vmatprep.subr.mxu0 0.0
        %1795 = vmatpush2.msra.mxu0 0.0
        %1796 = vmatprep.subr.mxu0 0.0
        %1797 = vmatpush2.msra.mxu0 0.0
        %1798 = vmatprep.subr.mxu0 0.0
        %1799 = vmatpush2.msra.mxu0 0.0
        %1800 = vmatprep.mubr.f32.mxu0 0.0
        %1801 = vmatmul.mubr.f32.gmra.mxu0 %v703
        %v1802 = vpop.f32.mrf.mxu0
        %v1803 = vadd.f32 %v1732, %v1802
        %v1804 = vpop.f32.mrf.mxu0
        %v1805 = vadd.f32 %v1734, %v1804
        %1806 = vdwg.mxu0
        %1807 = vmatprep.subr.mxu0 %v628
        %1808 = vmatpush1.msra.mxu0 %v627
        %1809 = vmatprep.subr.mxu0 %v626
        %1810 = vmatpush1.msra.mxu0 %v625
        %1811 = vmatprep.subr.mxu0 %v624
        %1812 = vmatpush1.msra.mxu0 %v623
        %1813 = vmatprep.subr.mxu0 %v622
        %1814 = vmatpush1.msra.mxu0 %v621
        %1815 = vmatprep.subr.mxu0 %v620
        %1816 = vmatpush1.msra.mxu0 %v619
        %1817 = vmatprep.subr.mxu0 %v618
        %1818 = vmatpush1.msra.mxu0 %v617
        %1819 = vmatprep.subr.mxu0 %v616
        %1820 = vmatpush1.msra.mxu0 %v615
        %1821 = vmatprep.subr.mxu0 %v614
        %1822 = vmatpush1.msra.mxu0 %v613
        %1823 = vmatprep.subr.mxu0 %v612
        %1824 = vmatpush1.msra.mxu0 %v611
        %1825 = vmatprep.subr.mxu0 %v610
        %1826 = vmatpush1.msra.mxu0 %v609
        %1827 = vmatprep.subr.mxu0 %v608
        %1828 = vmatpush1.msra.mxu0 %v607
        %1829 = vmatprep.subr.mxu0 %v606
        %1830 = vmatpush1.msra.mxu0 %v605
        %1831 = vmatprep.subr.mxu0 %v604
        %1832 = vmatpush1.msra.mxu0 %v603
        %1833 = vmatprep.subr.mxu0 %v602
        %1834 = vmatpush1.msra.mxu0 %v601
        %1835 = vmatprep.subr.mxu0 %v600
        %1836 = vmatpush1.msra.mxu0 %v599
        %1837 = vmatprep.subr.mxu0 %v598
        %1838 = vmatpush1.msra.mxu0 %v597
        %1839 = vmatprep.subr.mxu0 0.0
        %1840 = vmatpush2.msra.mxu0 0.0
        %1841 = vmatprep.subr.mxu0 0.0
        %1842 = vmatpush2.msra.mxu0 0.0
        %1843 = vmatprep.subr.mxu0 0.0
        %1844 = vmatpush2.msra.mxu0 0.0
        %1845 = vmatprep.subr.mxu0 0.0
        %1846 = vmatpush2.msra.mxu0 0.0
        %1847 = vmatprep.subr.mxu0 0.0
        %1848 = vmatpush2.msra.mxu0 0.0
        %1849 = vmatprep.subr.mxu0 0.0
        %1850 = vmatpush2.msra.mxu0 0.0
        %1851 = vmatprep.subr.mxu0 0.0
        %1852 = vmatpush2.msra.mxu0 0.0
        %1853 = vmatprep.subr.mxu0 0.0
        %1854 = vmatpush2.msra.mxu0 0.0
        %1855 = vmatprep.subr.mxu0 0.0
        %1856 = vmatpush2.msra.mxu0 0.0
        %1857 = vmatprep.subr.mxu0 0.0
        %1858 = vmatpush2.msra.mxu0 0.0
        %1859 = vmatprep.subr.mxu0 0.0
        %1860 = vmatpush2.msra.mxu0 0.0
        %1861 = vmatprep.subr.mxu0 0.0
        %1862 = vmatpush2.msra.mxu0 0.0
        %1863 = vmatprep.subr.mxu0 0.0
        %1864 = vmatpush2.msra.mxu0 0.0
        %1865 = vmatprep.subr.mxu0 0.0
        %1866 = vmatpush2.msra.mxu0 0.0
        %1867 = vmatprep.subr.mxu0 0.0
        %1868 = vmatpush2.msra.mxu0 0.0
        %1869 = vmatprep.subr.mxu0 0.0
        %1870 = vmatpush2.msra.mxu0 0.0
        %1871 = vmatprep.mubr.f32.mxu0 0.0
        %1872 = vmatmul.mubr.f32.gmra.mxu0 %v1221
        %v1873 = vpop.f32.mrf.mxu0
        %v1874 = vadd.f32 0.0, %v1873
        %v1875 = vpop.f32.mrf.mxu0
        %v1876 = vadd.f32 0.0, %v1875
        %1877 = vdwg.mxu0
        %v1878 = vadd.f32 %v1803, %v1874
        %v1879 = vadd.f32 %v1805, %v1876
        %1880 = vmatprep.subr.mxu0 %v736
        %1881 = vmatpush1.msra.mxu0 %v735
        %1882 = vmatprep.subr.mxu0 %v734
        %1883 = vmatpush1.msra.mxu0 %v733
        %1884 = vmatprep.subr.mxu0 %v732
        %1885 = vmatpush1.msra.mxu0 %v731
        %1886 = vmatprep.subr.mxu0 %v730
        %1887 = vmatpush1.msra.mxu0 %v729
        %1888 = vmatprep.subr.mxu0 %v728
        %1889 = vmatpush1.msra.mxu0 %v727
        %1890 = vmatprep.subr.mxu0 %v726
        %1891 = vmatpush1.msra.mxu0 %v725
        %1892 = vmatprep.subr.mxu0 %v724
        %1893 = vmatpush1.msra.mxu0 %v723
        %1894 = vmatprep.subr.mxu0 %v722
        %1895 = vmatpush1.msra.mxu0 %v721
        %1896 = vmatprep.subr.mxu0 %v720
        %1897 = vmatpush1.msra.mxu0 %v719
        %1898 = vmatprep.subr.mxu0 %v718
        %1899 = vmatpush1.msra.mxu0 %v717
        %1900 = vmatprep.subr.mxu0 %v716
        %1901 = vmatpush1.msra.mxu0 %v715
        %1902 = vmatprep.subr.mxu0 %v714
        %1903 = vmatpush1.msra.mxu0 %v713
        %1904 = vmatprep.subr.mxu0 %v712
        %1905 = vmatpush1.msra.mxu0 %v711
        %1906 = vmatprep.subr.mxu0 %v710
        %1907 = vmatpush1.msra.mxu0 %v709
        %1908 = vmatprep.subr.mxu0 %v708
        %1909 = vmatpush1.msra.mxu0 %v707
        %1910 = vmatprep.subr.mxu0 %v706
        %1911 = vmatpush1.msra.mxu0 %v705
        %1912 = vmatprep.subr.mxu0 0.0
        %1913 = vmatpush2.msra.mxu0 0.0
        %1914 = vmatprep.subr.mxu0 0.0
        %1915 = vmatpush2.msra.mxu0 0.0
        %1916 = vmatprep.subr.mxu0 0.0
        %1917 = vmatpush2.msra.mxu0 0.0
        %1918 = vmatprep.subr.mxu0 0.0
        %1919 = vmatpush2.msra.mxu0 0.0
        %1920 = vmatprep.subr.mxu0 0.0
        %1921 = vmatpush2.msra.mxu0 0.0
        %1922 = vmatprep.subr.mxu0 0.0
        %1923 = vmatpush2.msra.mxu0 0.0
        %1924 = vmatprep.subr.mxu0 0.0
        %1925 = vmatpush2.msra.mxu0 0.0
        %1926 = vmatprep.subr.mxu0 0.0
        %1927 = vmatpush2.msra.mxu0 0.0
        %1928 = vmatprep.subr.mxu0 0.0
        %1929 = vmatpush2.msra.mxu0 0.0
        %1930 = vmatprep.subr.mxu0 0.0
        %1931 = vmatpush2.msra.mxu0 0.0
        %1932 = vmatprep.subr.mxu0 0.0
        %1933 = vmatpush2.msra.mxu0 0.0
        %1934 = vmatprep.subr.mxu0 0.0
        %1935 = vmatpush2.msra.mxu0 0.0
        %1936 = vmatprep.subr.mxu0 0.0
        %1937 = vmatpush2.msra.mxu0 0.0
        %1938 = vmatprep.subr.mxu0 0.0
        %1939 = vmatpush2.msra.mxu0 0.0
        %1940 = vmatprep.subr.mxu0 0.0
        %1941 = vmatpush2.msra.mxu0 0.0
        %1942 = vmatprep.subr.mxu0 0.0
        %1943 = vmatpush2.msra.mxu0 0.0
        %1944 = vmatprep.mubr.f32.mxu0 0.0
        %1945 = vmatmul.mubr.f32.gmra.mxu0 %v1587
        %v1946 = vpop.f32.mrf.mxu0
        %v1947 = vadd.f32 0.0, %v1946
        %v1948 = vpop.f32.mrf.mxu0
        %v1949 = vadd.f32 0.0, %v1948
        %1950 = vdwg.mxu0
        %v1951 = vadd.f32 %v1878, %v1947
        %v1952 = vadd.f32 %v1879, %v1949
        %v1953 = vld [vmem:[%s702 + $0x1] sm:$0x7f]
        %1954 = vmatprep.subr.mxu0 %v843
        %1955 = vmatpush1.msra.mxu0 %v842
        %1956 = vmatprep.subr.mxu0 %v841
        %1957 = vmatpush1.msra.mxu0 %v840
        %1958 = vmatprep.subr.mxu0 %v839
        %1959 = vmatpush1.msra.mxu0 %v838
        %1960 = vmatprep.subr.mxu0 %v837
        %1961 = vmatpush1.msra.mxu0 %v836
        %1962 = vmatprep.subr.mxu0 %v835
        %1963 = vmatpush1.msra.mxu0 %v834
        %1964 = vmatprep.subr.mxu0 %v833
        %1965 = vmatpush1.msra.mxu0 %v832
        %1966 = vmatprep.subr.mxu0 %v831
        %1967 = vmatpush1.msra.mxu0 %v830
        %1968 = vmatprep.subr.mxu0 %v829
        %1969 = vmatpush1.msra.mxu0 %v828
        %1970 = vmatprep.subr.mxu0 %v827
        %1971 = vmatpush1.msra.mxu0 %v826
        %1972 = vmatprep.subr.mxu0 %v825
        %1973 = vmatpush1.msra.mxu0 %v824
        %1974 = vmatprep.subr.mxu0 %v823
        %1975 = vmatpush1.msra.mxu0 %v822
        %1976 = vmatprep.subr.mxu0 %v821
        %1977 = vmatpush1.msra.mxu0 %v820
        %1978 = vmatprep.subr.mxu0 %v819
        %1979 = vmatpush1.msra.mxu0 %v818
        %1980 = vmatprep.subr.mxu0 %v817
        %1981 = vmatpush1.msra.mxu0 %v816
        %1982 = vmatprep.subr.mxu0 %v815
        %1983 = vmatpush1.msra.mxu0 %v814
        %1984 = vmatprep.subr.mxu0 %v813
        %1985 = vmatpush1.msra.mxu0 %v812
        %1986 = vmatprep.subr.mxu0 0.0
        %1987 = vmatpush2.msra.mxu0 0.0
        %1988 = vmatprep.subr.mxu0 0.0
        %1989 = vmatpush2.msra.mxu0 0.0
        %1990 = vmatprep.subr.mxu0 0.0
        %1991 = vmatpush2.msra.mxu0 0.0
        %1992 = vmatprep.subr.mxu0 0.0
        %1993 = vmatpush2.msra.mxu0 0.0
        %1994 = vmatprep.subr.mxu0 0.0
        %1995 = vmatpush2.msra.mxu0 0.0
        %1996 = vmatprep.subr.mxu0 0.0
        %1997 = vmatpush2.msra.mxu0 0.0
        %1998 = vmatprep.subr.mxu0 0.0
        %1999 = vmatpush2.msra.mxu0 0.0
        %2000 = vmatprep.subr.mxu0 0.0
        %2001 = vmatpush2.msra.mxu0 0.0
        %2002 = vmatprep.subr.mxu0 0.0
        %2003 = vmatpush2.msra.mxu0 0.0
        %2004 = vmatprep.subr.mxu0 0.0
        %2005 = vmatpush2.msra.mxu0 0.0
        %2006 = vmatprep.subr.mxu0 0.0
        %2007 = vmatpush2.msra.mxu0 0.0
        %2008 = vmatprep.subr.mxu0 0.0
        %2009 = vmatpush2.msra.mxu0 0.0
        %2010 = vmatprep.subr.mxu0 0.0
        %2011 = vmatpush2.msra.mxu0 0.0
        %2012 = vmatprep.subr.mxu0 0.0
        %2013 = vmatpush2.msra.mxu0 0.0
        %2014 = vmatprep.subr.mxu0 0.0
        %2015 = vmatpush2.msra.mxu0 0.0
        %2016 = vmatprep.subr.mxu0 0.0
        %2017 = vmatpush2.msra.mxu0 0.0
        %2018 = vmatprep.mubr.f32.mxu0 0.0
        %2019 = vmatmul.mubr.f32.gmra.mxu0 %v1953
        %v2020 = vpop.f32.mrf.mxu0
        %v2021 = vadd.f32 0.0, %v2020
        %v2022 = vpop.f32.mrf.mxu0
        %v2023 = vadd.f32 0.0, %v2022
        %2024 = vdwg.mxu0
        %v2025 = vadd.f32 %v1951, %v2021
        %v2026 = vadd.f32 %v1952, %v2023
        %v2027 = vadd.f32 %v2025, %v922
        %v2028 = vadd.f32 %v2026, %v926
        %v2029 = vmax.f32 %v2027, 0.0
        %v2030 = vmax.f32 %v2028, 0.0
        %v2031 = vmax.f32 %v931, %v1297
        %v2032 = vmax.f32 %v932, %v1298
        %v2033 = vmax.f32 %v2031, %v2032
        %2034 = vst [vmem:[#allocation2] sm:$0x7f] %v2033
        %v2035 = vmax.f32 %v1663, %v2029
        %v2036 = vmax.f32 %v1664, %v2030
        %v2037 = vmax.f32 %v2035, %v2036
        %s2038 = scalar_lea.vmem [#allocation2], 8
        %2039 = vst [vmem:[%s2038] sm:$0x7f] %v2037
        %v2040 = vld [vmem:[#allocation2] sm:$0x1f]
        %v2041 = vld [vmem:[%s3] sm:$0xff]
        %v2042 = vld [vmem:[%s3 + $0x8] sm:$0xff]
        %v2043 = vld [vmem:[%s3 + $0x10] sm:$0xff]
        %v2044 = vld [vmem:[%s3 + $0x18] sm:$0xff]
        %v2045 = vld [vmem:[%s3 + $0x20] sm:$0xff]
        %v2046 = vld [vmem:[%s3 + $0x28] sm:$0xff]
        %v2047 = vld [vmem:[%s3 + $0x30] sm:$0xff]
        %v2048 = vld [vmem:[%s3 + $0x38] sm:$0xff]
        %v2049 = vld [vmem:[%s3 + $0x40] sm:$0xff]
        %v2050 = vld [vmem:[%s3 + $0x48] sm:$0xff]
        %v2051 = vld [vmem:[%s3 + $0x50] sm:$0xff]
        %v2052 = vld [vmem:[%s3 + $0x58] sm:$0xff]
        %v2053 = vld [vmem:[%s3 + $0x60] sm:$0xff]
        %v2054 = vld [vmem:[%s3 + $0x68] sm:$0xff]
        %v2055 = vld [vmem:[%s3 + $0x70] sm:$0xff]
        %v2056 = vld [vmem:[%s3 + $0x78] sm:$0xff]
        %v2057 = vld [vmem:[%s3 + $0x80] sm:$0xff]
        %v2058 = vld [vmem:[%s3 + $0x88] sm:$0xff]
        %v2059 = vld [vmem:[%s3 + $0x90] sm:$0xff]
        %v2060 = vld [vmem:[%s3 + $0x98] sm:$0xff]
        %v2061 = vld [vmem:[%s3 + $0xa0] sm:$0xff]
        %v2062 = vld [vmem:[%s3 + $0xa8] sm:$0xff]
        %v2063 = vld [vmem:[%s3 + $0xb0] sm:$0xff]
        %v2064 = vld [vmem:[%s3 + $0xb8] sm:$0xff]
        %v2065 = vld [vmem:[%s3 + $0xc0] sm:$0xff]
        %v2066 = vld [vmem:[%s3 + $0xc8] sm:$0xff]
        %v2067 = vld [vmem:[%s3 + $0xd0] sm:$0xff]
        %v2068 = vld [vmem:[%s3 + $0xd8] sm:$0xff]
        %v2069 = vld [vmem:[%s3 + $0xe0] sm:$0xff]
        %v2070 = vld [vmem:[%s3 + $0xe8] sm:$0xff]
        %v2071 = vld [vmem:[%s3 + $0xf0] sm:$0xff]
        %v2072 = vld [vmem:[%s3 + $0xf8] sm:$0xff]
        %v2073 = vld [vmem:[%s2038] sm:$0x1f]
        %s2074 = scalar_lea.vmem %s3, 256
        %v2075 = vld [vmem:[%s2074] sm:$0xff]
        %v2076 = vld [vmem:[%s2074 + $0x8] sm:$0xff]
        %v2077 = vld [vmem:[%s2074 + $0x10] sm:$0xff]
        %v2078 = vld [vmem:[%s2074 + $0x18] sm:$0xff]
        %v2079 = vld [vmem:[%s2074 + $0x20] sm:$0xff]
        %v2080 = vld [vmem:[%s2074 + $0x28] sm:$0xff]
        %v2081 = vld [vmem:[%s2074 + $0x30] sm:$0xff]
        %v2082 = vld [vmem:[%s2074 + $0x38] sm:$0xff]
        %v2083 = vld [vmem:[%s2074 + $0x40] sm:$0xff]
        %v2084 = vld [vmem:[%s2074 + $0x48] sm:$0xff]
        %v2085 = vld [vmem:[%s2074 + $0x50] sm:$0xff]
        %v2086 = vld [vmem:[%s2074 + $0x58] sm:$0xff]
        %v2087 = vld [vmem:[%s2074 + $0x60] sm:$0xff]
        %v2088 = vld [vmem:[%s2074 + $0x68] sm:$0xff]
        %v2089 = vld [vmem:[%s2074 + $0x70] sm:$0xff]
        %v2090 = vld [vmem:[%s2074 + $0x78] sm:$0xff]
        %v2091 = vld [vmem:[%s2074 + $0x80] sm:$0xff]
        %v2092 = vld [vmem:[%s2074 + $0x88] sm:$0xff]
        %v2093 = vld [vmem:[%s2074 + $0x90] sm:$0xff]
        %v2094 = vld [vmem:[%s2074 + $0x98] sm:$0xff]
        %v2095 = vld [vmem:[%s2074 + $0xa0] sm:$0xff]
        %v2096 = vld [vmem:[%s2074 + $0xa8] sm:$0xff]
        %v2097 = vld [vmem:[%s2074 + $0xb0] sm:$0xff]
        %v2098 = vld [vmem:[%s2074 + $0xb8] sm:$0xff]
        %v2099 = vld [vmem:[%s2074 + $0xc0] sm:$0xff]
        %v2100 = vld [vmem:[%s2074 + $0xc8] sm:$0xff]
        %v2101 = vld [vmem:[%s2074 + $0xd0] sm:$0xff]
        %v2102 = vld [vmem:[%s2074 + $0xd8] sm:$0xff]
        %v2103 = vld [vmem:[%s2074 + $0xe0] sm:$0xff]
        %v2104 = vld [vmem:[%s2074 + $0xe8] sm:$0xff]
        %v2105 = vld [vmem:[%s2074 + $0xf0] sm:$0xff]
        %v2106 = vld [vmem:[%s2074 + $0xf8] sm:$0xff]
        %2107 = vmatprep.subr.mxu0 %v2106
        %2108 = vmatpush1.msra.mxu0 %v2105
        %2109 = vmatprep.subr.mxu0 %v2104
        %2110 = vmatpush1.msra.mxu0 %v2103
        %2111 = vmatprep.subr.mxu0 %v2102
        %2112 = vmatpush1.msra.mxu0 %v2101
        %2113 = vmatprep.subr.mxu0 %v2100
        %2114 = vmatpush1.msra.mxu0 %v2099
        %2115 = vmatprep.subr.mxu0 %v2098
        %2116 = vmatpush1.msra.mxu0 %v2097
        %2117 = vmatprep.subr.mxu0 %v2096
        %2118 = vmatpush1.msra.mxu0 %v2095
        %2119 = vmatprep.subr.mxu0 %v2094
        %2120 = vmatpush1.msra.mxu0 %v2093
        %2121 = vmatprep.subr.mxu0 %v2092
        %2122 = vmatpush1.msra.mxu0 %v2091
        %2123 = vmatprep.subr.mxu0 %v2090
        %2124 = vmatpush1.msra.mxu0 %v2089
        %2125 = vmatprep.subr.mxu0 %v2088
        %2126 = vmatpush1.msra.mxu0 %v2087
        %2127 = vmatprep.subr.mxu0 %v2086
        %2128 = vmatpush1.msra.mxu0 %v2085
        %2129 = vmatprep.subr.mxu0 %v2084
        %2130 = vmatpush1.msra.mxu0 %v2083
        %2131 = vmatprep.subr.mxu0 %v2082
        %2132 = vmatpush1.msra.mxu0 %v2081
        %2133 = vmatprep.subr.mxu0 %v2080
        %2134 = vmatpush1.msra.mxu0 %v2079
        %2135 = vmatprep.subr.mxu0 %v2078
        %2136 = vmatpush1.msra.mxu0 %v2077
        %2137 = vmatprep.subr.mxu0 %v2076
        %2138 = vmatpush1.msra.mxu0 %v2075
        %2139 = vmatprep.subr.mxu0 0.0
        %2140 = vmatpush2.msra.mxu0 0.0
        %2141 = vmatprep.subr.mxu0 0.0
        %2142 = vmatpush2.msra.mxu0 0.0
        %2143 = vmatprep.subr.mxu0 0.0
        %2144 = vmatpush2.msra.mxu0 0.0
        %2145 = vmatprep.subr.mxu0 0.0
        %2146 = vmatpush2.msra.mxu0 0.0
        %2147 = vmatprep.subr.mxu0 0.0
        %2148 = vmatpush2.msra.mxu0 0.0
        %2149 = vmatprep.subr.mxu0 0.0
        %2150 = vmatpush2.msra.mxu0 0.0
        %2151 = vmatprep.subr.mxu0 0.0
        %2152 = vmatpush2.msra.mxu0 0.0
        %2153 = vmatprep.subr.mxu0 0.0
        %2154 = vmatpush2.msra.mxu0 0.0
        %2155 = vmatprep.subr.mxu0 0.0
        %2156 = vmatpush2.msra.mxu0 0.0
        %2157 = vmatprep.subr.mxu0 0.0
        %2158 = vmatpush2.msra.mxu0 0.0
        %2159 = vmatprep.subr.mxu0 0.0
        %2160 = vmatpush2.msra.mxu0 0.0
        %2161 = vmatprep.subr.mxu0 0.0
        %2162 = vmatpush2.msra.mxu0 0.0
        %2163 = vmatprep.subr.mxu0 0.0
        %2164 = vmatpush2.msra.mxu0 0.0
        %2165 = vmatprep.subr.mxu0 0.0
        %2166 = vmatpush2.msra.mxu0 0.0
        %2167 = vmatprep.subr.mxu0 0.0
        %2168 = vmatpush2.msra.mxu0 0.0
        %2169 = vmatprep.subr.mxu0 0.0
        %2170 = vmatpush2.msra.mxu0 0.0
        %2171 = vmatprep.mubr.f32.mxu0 0.0
        %2172 = vmatmul.mubr.f32.gmra.mxu0 %v2073
        %v2173 = vpop.f32.mrf.mxu0
        %v2174 = vadd.f32 0.0, %v2173
        %v2175 = vpop.f32.mrf.mxu0
        %v2176 = vadd.f32 0.0, %v2175
        %2177 = vdwg.mxu0
        %2178 = vmatprep.subr.mxu0 %v2072
        %2179 = vmatpush1.msra.mxu0 %v2071
        %2180 = vmatprep.subr.mxu0 %v2070
        %2181 = vmatpush1.msra.mxu0 %v2069
        %2182 = vmatprep.subr.mxu0 %v2068
        %2183 = vmatpush1.msra.mxu0 %v2067
        %2184 = vmatprep.subr.mxu0 %v2066
        %2185 = vmatpush1.msra.mxu0 %v2065
        %2186 = vmatprep.subr.mxu0 %v2064
        %2187 = vmatpush1.msra.mxu0 %v2063
        %2188 = vmatprep.subr.mxu0 %v2062
        %2189 = vmatpush1.msra.mxu0 %v2061
        %2190 = vmatprep.subr.mxu0 %v2060
        %2191 = vmatpush1.msra.mxu0 %v2059
        %2192 = vmatprep.subr.mxu0 %v2058
        %2193 = vmatpush1.msra.mxu0 %v2057
        %2194 = vmatprep.subr.mxu0 %v2056
        %2195 = vmatpush1.msra.mxu0 %v2055
        %2196 = vmatprep.subr.mxu0 %v2054
        %2197 = vmatpush1.msra.mxu0 %v2053
        %2198 = vmatprep.subr.mxu0 %v2052
        %2199 = vmatpush1.msra.mxu0 %v2051
        %2200 = vmatprep.subr.mxu0 %v2050
        %2201 = vmatpush1.msra.mxu0 %v2049
        %2202 = vmatprep.subr.mxu0 %v2048
        %2203 = vmatpush1.msra.mxu0 %v2047
        %2204 = vmatprep.subr.mxu0 %v2046
        %2205 = vmatpush1.msra.mxu0 %v2045
        %2206 = vmatprep.subr.mxu0 %v2044
        %2207 = vmatpush1.msra.mxu0 %v2043
        %2208 = vmatprep.subr.mxu0 %v2042
        %2209 = vmatpush1.msra.mxu0 %v2041
        %2210 = vmatprep.subr.mxu0 0.0
        %2211 = vmatpush2.msra.mxu0 0.0
        %2212 = vmatprep.subr.mxu0 0.0
        %2213 = vmatpush2.msra.mxu0 0.0
        %2214 = vmatprep.subr.mxu0 0.0
        %2215 = vmatpush2.msra.mxu0 0.0
        %2216 = vmatprep.subr.mxu0 0.0
        %2217 = vmatpush2.msra.mxu0 0.0
        %2218 = vmatprep.subr.mxu0 0.0
        %2219 = vmatpush2.msra.mxu0 0.0
        %2220 = vmatprep.subr.mxu0 0.0
        %2221 = vmatpush2.msra.mxu0 0.0
        %2222 = vmatprep.subr.mxu0 0.0
        %2223 = vmatpush2.msra.mxu0 0.0
        %2224 = vmatprep.subr.mxu0 0.0
        %2225 = vmatpush2.msra.mxu0 0.0
        %2226 = vmatprep.subr.mxu0 0.0
        %2227 = vmatpush2.msra.mxu0 0.0
        %2228 = vmatprep.subr.mxu0 0.0
        %2229 = vmatpush2.msra.mxu0 0.0
        %2230 = vmatprep.subr.mxu0 0.0
        %2231 = vmatpush2.msra.mxu0 0.0
        %2232 = vmatprep.subr.mxu0 0.0
        %2233 = vmatpush2.msra.mxu0 0.0
        %2234 = vmatprep.subr.mxu0 0.0
        %2235 = vmatpush2.msra.mxu0 0.0
        %2236 = vmatprep.subr.mxu0 0.0
        %2237 = vmatpush2.msra.mxu0 0.0
        %2238 = vmatprep.subr.mxu0 0.0
        %2239 = vmatpush2.msra.mxu0 0.0
        %2240 = vmatprep.subr.mxu0 0.0
        %2241 = vmatpush2.msra.mxu0 0.0
        %2242 = vmatprep.mubr.f32.mxu0 0.0
        %2243 = vmatmul.mubr.f32.gmra.mxu0 %v2040
        %v2244 = vpop.f32.mrf.mxu0
        %v2245 = vadd.f32 %v2174, %v2244
        %v2246 = vpop.f32.mrf.mxu0
        %v2247 = vadd.f32 %v2176, %v2246
        %2248 = vdwg.mxu0
        %v2249 = vld [vmem:[#allocation2 + $0x1] sm:$0x1f]
        %s2250 = scalar_lea.vmem %s3, 512
        %v2251 = vld [vmem:[%s2250] sm:$0xff]
        %v2252 = vld [vmem:[%s2250 + $0x8] sm:$0xff]
        %v2253 = vld [vmem:[%s2250 + $0x10] sm:$0xff]
        %v2254 = vld [vmem:[%s2250 + $0x18] sm:$0xff]
        %v2255 = vld [vmem:[%s2250 + $0x20] sm:$0xff]
        %v2256 = vld [vmem:[%s2250 + $0x28] sm:$0xff]
        %v2257 = vld [vmem:[%s2250 + $0x30] sm:$0xff]
        %v2258 = vld [vmem:[%s2250 + $0x38] sm:$0xff]
        %v2259 = vld [vmem:[%s2250 + $0x40] sm:$0xff]
        %v2260 = vld [vmem:[%s2250 + $0x48] sm:$0xff]
        %v2261 = vld [vmem:[%s2250 + $0x50] sm:$0xff]
        %v2262 = vld [vmem:[%s2250 + $0x58] sm:$0xff]
        %v2263 = vld [vmem:[%s2250 + $0x60] sm:$0xff]
        %v2264 = vld [vmem:[%s2250 + $0x68] sm:$0xff]
        %v2265 = vld [vmem:[%s2250 + $0x70] sm:$0xff]
        %v2266 = vld [vmem:[%s2250 + $0x78] sm:$0xff]
        %v2267 = vld [vmem:[%s2250 + $0x80] sm:$0xff]
        %v2268 = vld [vmem:[%s2250 + $0x88] sm:$0xff]
        %v2269 = vld [vmem:[%s2250 + $0x90] sm:$0xff]
        %v2270 = vld [vmem:[%s2250 + $0x98] sm:$0xff]
        %v2271 = vld [vmem:[%s2250 + $0xa0] sm:$0xff]
        %v2272 = vld [vmem:[%s2250 + $0xa8] sm:$0xff]
        %v2273 = vld [vmem:[%s2250 + $0xb0] sm:$0xff]
        %v2274 = vld [vmem:[%s2250 + $0xb8] sm:$0xff]
        %v2275 = vld [vmem:[%s2250 + $0xc0] sm:$0xff]
        %v2276 = vld [vmem:[%s2250 + $0xc8] sm:$0xff]
        %v2277 = vld [vmem:[%s2250 + $0xd0] sm:$0xff]
        %v2278 = vld [vmem:[%s2250 + $0xd8] sm:$0xff]
        %v2279 = vld [vmem:[%s2250 + $0xe0] sm:$0xff]
        %v2280 = vld [vmem:[%s2250 + $0xe8] sm:$0xff]
        %v2281 = vld [vmem:[%s2250 + $0xf0] sm:$0xff]
        %v2282 = vld [vmem:[%s2250 + $0xf8] sm:$0xff]
        %2283 = vmatprep.subr.mxu0 %v2282
        %2284 = vmatpush1.msra.mxu0 %v2281
        %2285 = vmatprep.subr.mxu0 %v2280
        %2286 = vmatpush1.msra.mxu0 %v2279
        %2287 = vmatprep.subr.mxu0 %v2278
        %2288 = vmatpush1.msra.mxu0 %v2277
        %2289 = vmatprep.subr.mxu0 %v2276
        %2290 = vmatpush1.msra.mxu0 %v2275
        %2291 = vmatprep.subr.mxu0 %v2274
        %2292 = vmatpush1.msra.mxu0 %v2273
        %2293 = vmatprep.subr.mxu0 %v2272
        %2294 = vmatpush1.msra.mxu0 %v2271
        %2295 = vmatprep.subr.mxu0 %v2270
        %2296 = vmatpush1.msra.mxu0 %v2269
        %2297 = vmatprep.subr.mxu0 %v2268
        %2298 = vmatpush1.msra.mxu0 %v2267
        %2299 = vmatprep.subr.mxu0 %v2266
        %2300 = vmatpush1.msra.mxu0 %v2265
        %2301 = vmatprep.subr.mxu0 %v2264
        %2302 = vmatpush1.msra.mxu0 %v2263
        %2303 = vmatprep.subr.mxu0 %v2262
        %2304 = vmatpush1.msra.mxu0 %v2261
        %2305 = vmatprep.subr.mxu0 %v2260
        %2306 = vmatpush1.msra.mxu0 %v2259
        %2307 = vmatprep.subr.mxu0 %v2258
        %2308 = vmatpush1.msra.mxu0 %v2257
        %2309 = vmatprep.subr.mxu0 %v2256
        %2310 = vmatpush1.msra.mxu0 %v2255
        %2311 = vmatprep.subr.mxu0 %v2254
        %2312 = vmatpush1.msra.mxu0 %v2253
        %2313 = vmatprep.subr.mxu0 %v2252
        %2314 = vmatpush1.msra.mxu0 %v2251
        %2315 = vmatprep.subr.mxu0 0.0
        %2316 = vmatpush2.msra.mxu0 0.0
        %2317 = vmatprep.subr.mxu0 0.0
        %2318 = vmatpush2.msra.mxu0 0.0
        %2319 = vmatprep.subr.mxu0 0.0
        %2320 = vmatpush2.msra.mxu0 0.0
        %2321 = vmatprep.subr.mxu0 0.0
        %2322 = vmatpush2.msra.mxu0 0.0
        %2323 = vmatprep.subr.mxu0 0.0
        %2324 = vmatpush2.msra.mxu0 0.0
        %2325 = vmatprep.subr.mxu0 0.0
        %2326 = vmatpush2.msra.mxu0 0.0
        %2327 = vmatprep.subr.mxu0 0.0
        %2328 = vmatpush2.msra.mxu0 0.0
        %2329 = vmatprep.subr.mxu0 0.0
        %2330 = vmatpush2.msra.mxu0 0.0
        %2331 = vmatprep.subr.mxu0 0.0
        %2332 = vmatpush2.msra.mxu0 0.0
        %2333 = vmatprep.subr.mxu0 0.0
        %2334 = vmatpush2.msra.mxu0 0.0
        %2335 = vmatprep.subr.mxu0 0.0
        %2336 = vmatpush2.msra.mxu0 0.0
        %2337 = vmatprep.subr.mxu0 0.0
        %2338 = vmatpush2.msra.mxu0 0.0
        %2339 = vmatprep.subr.mxu0 0.0
        %2340 = vmatpush2.msra.mxu0 0.0
        %2341 = vmatprep.subr.mxu0 0.0
        %2342 = vmatpush2.msra.mxu0 0.0
        %2343 = vmatprep.subr.mxu0 0.0
        %2344 = vmatpush2.msra.mxu0 0.0
        %2345 = vmatprep.subr.mxu0 0.0
        %2346 = vmatpush2.msra.mxu0 0.0
        %2347 = vmatprep.mubr.f32.mxu0 0.0
        %2348 = vmatmul.mubr.f32.gmra.mxu0 %v2249
        %v2349 = vpop.f32.mrf.mxu0
        %v2350 = vadd.f32 0.0, %v2349
        %v2351 = vpop.f32.mrf.mxu0
        %v2352 = vadd.f32 0.0, %v2351
        %2353 = vdwg.mxu0
        %v2354 = vadd.f32 %v2245, %v2350
        %v2355 = vadd.f32 %v2247, %v2352
        %v2356 = vld [vmem:[%s2038 + $0x1] sm:$0x1f]
        %s2357 = scalar_lea.vmem %s3, 768
        %v2358 = vld [vmem:[%s2357] sm:$0xff]
        %v2359 = vld [vmem:[%s2357 + $0x8] sm:$0xff]
        %v2360 = vld [vmem:[%s2357 + $0x10] sm:$0xff]
        %v2361 = vld [vmem:[%s2357 + $0x18] sm:$0xff]
        %v2362 = vld [vmem:[%s2357 + $0x20] sm:$0xff]
        %v2363 = vld [vmem:[%s2357 + $0x28] sm:$0xff]
        %v2364 = vld [vmem:[%s2357 + $0x30] sm:$0xff]
        %v2365 = vld [vmem:[%s2357 + $0x38] sm:$0xff]
        %v2366 = vld [vmem:[%s2357 + $0x40] sm:$0xff]
        %v2367 = vld [vmem:[%s2357 + $0x48] sm:$0xff]
        %v2368 = vld [vmem:[%s2357 + $0x50] sm:$0xff]
        %v2369 = vld [vmem:[%s2357 + $0x58] sm:$0xff]
        %v2370 = vld [vmem:[%s2357 + $0x60] sm:$0xff]
        %v2371 = vld [vmem:[%s2357 + $0x68] sm:$0xff]
        %v2372 = vld [vmem:[%s2357 + $0x70] sm:$0xff]
        %v2373 = vld [vmem:[%s2357 + $0x78] sm:$0xff]
        %v2374 = vld [vmem:[%s2357 + $0x80] sm:$0xff]
        %v2375 = vld [vmem:[%s2357 + $0x88] sm:$0xff]
        %v2376 = vld [vmem:[%s2357 + $0x90] sm:$0xff]
        %v2377 = vld [vmem:[%s2357 + $0x98] sm:$0xff]
        %v2378 = vld [vmem:[%s2357 + $0xa0] sm:$0xff]
        %v2379 = vld [vmem:[%s2357 + $0xa8] sm:$0xff]
        %v2380 = vld [vmem:[%s2357 + $0xb0] sm:$0xff]
        %v2381 = vld [vmem:[%s2357 + $0xb8] sm:$0xff]
        %v2382 = vld [vmem:[%s2357 + $0xc0] sm:$0xff]
        %v2383 = vld [vmem:[%s2357 + $0xc8] sm:$0xff]
        %v2384 = vld [vmem:[%s2357 + $0xd0] sm:$0xff]
        %v2385 = vld [vmem:[%s2357 + $0xd8] sm:$0xff]
        %v2386 = vld [vmem:[%s2357 + $0xe0] sm:$0xff]
        %v2387 = vld [vmem:[%s2357 + $0xe8] sm:$0xff]
        %v2388 = vld [vmem:[%s2357 + $0xf0] sm:$0xff]
        %v2389 = vld [vmem:[%s2357 + $0xf8] sm:$0xff]
        %2390 = vmatprep.subr.mxu0 %v2389
        %2391 = vmatpush1.msra.mxu0 %v2388
        %2392 = vmatprep.subr.mxu0 %v2387
        %2393 = vmatpush1.msra.mxu0 %v2386
        %2394 = vmatprep.subr.mxu0 %v2385
        %2395 = vmatpush1.msra.mxu0 %v2384
        %2396 = vmatprep.subr.mxu0 %v2383
        %2397 = vmatpush1.msra.mxu0 %v2382
        %2398 = vmatprep.subr.mxu0 %v2381
        %2399 = vmatpush1.msra.mxu0 %v2380
        %2400 = vmatprep.subr.mxu0 %v2379
        %2401 = vmatpush1.msra.mxu0 %v2378
        %2402 = vmatprep.subr.mxu0 %v2377
        %2403 = vmatpush1.msra.mxu0 %v2376
        %2404 = vmatprep.subr.mxu0 %v2375
        %2405 = vmatpush1.msra.mxu0 %v2374
        %2406 = vmatprep.subr.mxu0 %v2373
        %2407 = vmatpush1.msra.mxu0 %v2372
        %2408 = vmatprep.subr.mxu0 %v2371
        %2409 = vmatpush1.msra.mxu0 %v2370
        %2410 = vmatprep.subr.mxu0 %v2369
        %2411 = vmatpush1.msra.mxu0 %v2368
        %2412 = vmatprep.subr.mxu0 %v2367
        %2413 = vmatpush1.msra.mxu0 %v2366
        %2414 = vmatprep.subr.mxu0 %v2365
        %2415 = vmatpush1.msra.mxu0 %v2364
        %2416 = vmatprep.subr.mxu0 %v2363
        %2417 = vmatpush1.msra.mxu0 %v2362
        %2418 = vmatprep.subr.mxu0 %v2361
        %2419 = vmatpush1.msra.mxu0 %v2360
        %2420 = vmatprep.subr.mxu0 %v2359
        %2421 = vmatpush1.msra.mxu0 %v2358
        %2422 = vmatprep.subr.mxu0 0.0
        %2423 = vmatpush2.msra.mxu0 0.0
        %2424 = vmatprep.subr.mxu0 0.0
        %2425 = vmatpush2.msra.mxu0 0.0
        %2426 = vmatprep.subr.mxu0 0.0
        %2427 = vmatpush2.msra.mxu0 0.0
        %2428 = vmatprep.subr.mxu0 0.0
        %2429 = vmatpush2.msra.mxu0 0.0
        %2430 = vmatprep.subr.mxu0 0.0
        %2431 = vmatpush2.msra.mxu0 0.0
        %2432 = vmatprep.subr.mxu0 0.0
        %2433 = vmatpush2.msra.mxu0 0.0
        %2434 = vmatprep.subr.mxu0 0.0
        %2435 = vmatpush2.msra.mxu0 0.0
        %2436 = vmatprep.subr.mxu0 0.0
        %2437 = vmatpush2.msra.mxu0 0.0
        %2438 = vmatprep.subr.mxu0 0.0
        %2439 = vmatpush2.msra.mxu0 0.0
        %2440 = vmatprep.subr.mxu0 0.0
        %2441 = vmatpush2.msra.mxu0 0.0
        %2442 = vmatprep.subr.mxu0 0.0
        %2443 = vmatpush2.msra.mxu0 0.0
        %2444 = vmatprep.subr.mxu0 0.0
        %2445 = vmatpush2.msra.mxu0 0.0
        %2446 = vmatprep.subr.mxu0 0.0
        %2447 = vmatpush2.msra.mxu0 0.0
        %2448 = vmatprep.subr.mxu0 0.0
        %2449 = vmatpush2.msra.mxu0 0.0
        %2450 = vmatprep.subr.mxu0 0.0
        %2451 = vmatpush2.msra.mxu0 0.0
        %2452 = vmatprep.subr.mxu0 0.0
        %2453 = vmatpush2.msra.mxu0 0.0
        %2454 = vmatprep.mubr.f32.mxu0 0.0
        %2455 = vmatmul.mubr.f32.gmra.mxu0 %v2356
        %v2456 = vpop.f32.mrf.mxu0
        %v2457 = vadd.f32 0.0, %v2456
        %v2458 = vpop.f32.mrf.mxu0
        %v2459 = vadd.f32 0.0, %v2458
        %2460 = vdwg.mxu0
        %v2461 = vadd.f32 %v2354, %v2457
        %v2462 = vadd.f32 %v2355, %v2459
        %v2463 = vld [vmem:[#allocation2 + $0x2] sm:$0x1f]
        %s2464 = scalar_lea.vmem %s3, 1024
        %v2465 = vld [vmem:[%s2464] sm:$0xff]
        %v2466 = vld [vmem:[%s2464 + $0x8] sm:$0xff]
        %v2467 = vld [vmem:[%s2464 + $0x10] sm:$0xff]
        %v2468 = vld [vmem:[%s2464 + $0x18] sm:$0xff]
        %v2469 = vld [vmem:[%s2464 + $0x20] sm:$0xff]
        %v2470 = vld [vmem:[%s2464 + $0x28] sm:$0xff]
        %v2471 = vld [vmem:[%s2464 + $0x30] sm:$0xff]
        %v2472 = vld [vmem:[%s2464 + $0x38] sm:$0xff]
        %v2473 = vld [vmem:[%s2464 + $0x40] sm:$0xff]
        %v2474 = vld [vmem:[%s2464 + $0x48] sm:$0xff]
        %v2475 = vld [vmem:[%s2464 + $0x50] sm:$0xff]
        %v2476 = vld [vmem:[%s2464 + $0x58] sm:$0xff]
        %v2477 = vld [vmem:[%s2464 + $0x60] sm:$0xff]
        %v2478 = vld [vmem:[%s2464 + $0x68] sm:$0xff]
        %v2479 = vld [vmem:[%s2464 + $0x70] sm:$0xff]
        %v2480 = vld [vmem:[%s2464 + $0x78] sm:$0xff]
        %v2481 = vld [vmem:[%s2464 + $0x80] sm:$0xff]
        %v2482 = vld [vmem:[%s2464 + $0x88] sm:$0xff]
        %v2483 = vld [vmem:[%s2464 + $0x90] sm:$0xff]
        %v2484 = vld [vmem:[%s2464 + $0x98] sm:$0xff]
        %v2485 = vld [vmem:[%s2464 + $0xa0] sm:$0xff]
        %v2486 = vld [vmem:[%s2464 + $0xa8] sm:$0xff]
        %v2487 = vld [vmem:[%s2464 + $0xb0] sm:$0xff]
        %v2488 = vld [vmem:[%s2464 + $0xb8] sm:$0xff]
        %v2489 = vld [vmem:[%s2464 + $0xc0] sm:$0xff]
        %v2490 = vld [vmem:[%s2464 + $0xc8] sm:$0xff]
        %v2491 = vld [vmem:[%s2464 + $0xd0] sm:$0xff]
        %v2492 = vld [vmem:[%s2464 + $0xd8] sm:$0xff]
        %v2493 = vld [vmem:[%s2464 + $0xe0] sm:$0xff]
        %v2494 = vld [vmem:[%s2464 + $0xe8] sm:$0xff]
        %v2495 = vld [vmem:[%s2464 + $0xf0] sm:$0xff]
        %v2496 = vld [vmem:[%s2464 + $0xf8] sm:$0xff]
        %2497 = vmatprep.subr.mxu0 %v2496
        %2498 = vmatpush1.msra.mxu0 %v2495
        %2499 = vmatprep.subr.mxu0 %v2494
        %2500 = vmatpush1.msra.mxu0 %v2493
        %2501 = vmatprep.subr.mxu0 %v2492
        %2502 = vmatpush1.msra.mxu0 %v2491
        %2503 = vmatprep.subr.mxu0 %v2490
        %2504 = vmatpush1.msra.mxu0 %v2489
        %2505 = vmatprep.subr.mxu0 %v2488
        %2506 = vmatpush1.msra.mxu0 %v2487
        %2507 = vmatprep.subr.mxu0 %v2486
        %2508 = vmatpush1.msra.mxu0 %v2485
        %2509 = vmatprep.subr.mxu0 %v2484
        %2510 = vmatpush1.msra.mxu0 %v2483
        %2511 = vmatprep.subr.mxu0 %v2482
        %2512 = vmatpush1.msra.mxu0 %v2481
        %2513 = vmatprep.subr.mxu0 %v2480
        %2514 = vmatpush1.msra.mxu0 %v2479
        %2515 = vmatprep.subr.mxu0 %v2478
        %2516 = vmatpush1.msra.mxu0 %v2477
        %2517 = vmatprep.subr.mxu0 %v2476
        %2518 = vmatpush1.msra.mxu0 %v2475
        %2519 = vmatprep.subr.mxu0 %v2474
        %2520 = vmatpush1.msra.mxu0 %v2473
        %2521 = vmatprep.subr.mxu0 %v2472
        %2522 = vmatpush1.msra.mxu0 %v2471
        %2523 = vmatprep.subr.mxu0 %v2470
        %2524 = vmatpush1.msra.mxu0 %v2469
        %2525 = vmatprep.subr.mxu0 %v2468
        %2526 = vmatpush1.msra.mxu0 %v2467
        %2527 = vmatprep.subr.mxu0 %v2466
        %2528 = vmatpush1.msra.mxu0 %v2465
        %2529 = vmatprep.subr.mxu0 0.0
        %2530 = vmatpush2.msra.mxu0 0.0
        %2531 = vmatprep.subr.mxu0 0.0
        %2532 = vmatpush2.msra.mxu0 0.0
        %2533 = vmatprep.subr.mxu0 0.0
        %2534 = vmatpush2.msra.mxu0 0.0
        %2535 = vmatprep.subr.mxu0 0.0
        %2536 = vmatpush2.msra.mxu0 0.0
        %2537 = vmatprep.subr.mxu0 0.0
        %2538 = vmatpush2.msra.mxu0 0.0
        %2539 = vmatprep.subr.mxu0 0.0
        %2540 = vmatpush2.msra.mxu0 0.0
        %2541 = vmatprep.subr.mxu0 0.0
        %2542 = vmatpush2.msra.mxu0 0.0
        %2543 = vmatprep.subr.mxu0 0.0
        %2544 = vmatpush2.msra.mxu0 0.0
        %2545 = vmatprep.subr.mxu0 0.0
        %2546 = vmatpush2.msra.mxu0 0.0
        %2547 = vmatprep.subr.mxu0 0.0
        %2548 = vmatpush2.msra.mxu0 0.0
        %2549 = vmatprep.subr.mxu0 0.0
        %2550 = vmatpush2.msra.mxu0 0.0
        %2551 = vmatprep.subr.mxu0 0.0
        %2552 = vmatpush2.msra.mxu0 0.0
        %2553 = vmatprep.subr.mxu0 0.0
        %2554 = vmatpush2.msra.mxu0 0.0
        %2555 = vmatprep.subr.mxu0 0.0
        %2556 = vmatpush2.msra.mxu0 0.0
        %2557 = vmatprep.subr.mxu0 0.0
        %2558 = vmatpush2.msra.mxu0 0.0
        %2559 = vmatprep.subr.mxu0 0.0
        %2560 = vmatpush2.msra.mxu0 0.0
        %2561 = vmatprep.mubr.f32.mxu0 0.0
        %2562 = vmatmul.mubr.f32.gmra.mxu0 %v2463
        %v2563 = vpop.f32.mrf.mxu0
        %v2564 = vadd.f32 0.0, %v2563
        %v2565 = vpop.f32.mrf.mxu0
        %v2566 = vadd.f32 0.0, %v2565
        %2567 = vdwg.mxu0
        %v2568 = vadd.f32 %v2461, %v2564
        %v2569 = vadd.f32 %v2462, %v2566
        %v2570 = vld [vmem:[%s4] sm:$0x3]
        %v2572 = vlaneseq
        %v2573 = vshrl.u32 %v2572, 7
        %v2574 = vsub.s32 0, %v2573
        %v2575 = vrot.slane %v2570, %v2574
        %v2576 = vlaneseq
        %v2577 = vshrl.u32 %v2576, 7
        %v2578 = vsub.s32 1, %v2577
        %v2579 = vrot.slane %v2570, %v2578
        %v2582 = vadd.f32 %v2568, %v2575
        %v2583 = vadd.f32 %v2569, %v2579
        %v2584 = vmax.f32 %v2582, 0.0
        %v2585 = vmax.f32 %v2583, 0.0
        %2586 = vmatprep.subr.mxu0 %v2106
        %2587 = vmatpush1.msra.mxu0 %v2105
        %2588 = vmatprep.subr.mxu0 %v2104
        %2589 = vmatpush1.msra.mxu0 %v2103
        %2590 = vmatprep.subr.mxu0 %v2102
        %2591 = vmatpush1.msra.mxu0 %v2101
        %2592 = vmatprep.subr.mxu0 %v2100
        %2593 = vmatpush1.msra.mxu0 %v2099
        %2594 = vmatprep.subr.mxu0 %v2098
        %2595 = vmatpush1.msra.mxu0 %v2097
        %2596 = vmatprep.subr.mxu0 %v2096
        %2597 = vmatpush1.msra.mxu0 %v2095
        %2598 = vmatprep.subr.mxu0 %v2094
        %2599 = vmatpush1.msra.mxu0 %v2093
        %2600 = vmatprep.subr.mxu0 %v2092
        %2601 = vmatpush1.msra.mxu0 %v2091
        %2602 = vmatprep.subr.mxu0 %v2090
        %2603 = vmatpush1.msra.mxu0 %v2089
        %2604 = vmatprep.subr.mxu0 %v2088
        %2605 = vmatpush1.msra.mxu0 %v2087
        %2606 = vmatprep.subr.mxu0 %v2086
        %2607 = vmatpush1.msra.mxu0 %v2085
        %2608 = vmatprep.subr.mxu0 %v2084
        %2609 = vmatpush1.msra.mxu0 %v2083
        %2610 = vmatprep.subr.mxu0 %v2082
        %2611 = vmatpush1.msra.mxu0 %v2081
        %2612 = vmatprep.subr.mxu0 %v2080
        %2613 = vmatpush1.msra.mxu0 %v2079
        %2614 = vmatprep.subr.mxu0 %v2078
        %2615 = vmatpush1.msra.mxu0 %v2077
        %2616 = vmatprep.subr.mxu0 %v2076
        %2617 = vmatpush1.msra.mxu0 %v2075
        %2618 = vmatprep.subr.mxu0 0.0
        %2619 = vmatpush2.msra.mxu0 0.0
        %2620 = vmatprep.subr.mxu0 0.0
        %2621 = vmatpush2.msra.mxu0 0.0
        %2622 = vmatprep.subr.mxu0 0.0
        %2623 = vmatpush2.msra.mxu0 0.0
        %2624 = vmatprep.subr.mxu0 0.0
        %2625 = vmatpush2.msra.mxu0 0.0
        %2626 = vmatprep.subr.mxu0 0.0
        %2627 = vmatpush2.msra.mxu0 0.0
        %2628 = vmatprep.subr.mxu0 0.0
        %2629 = vmatpush2.msra.mxu0 0.0
        %2630 = vmatprep.subr.mxu0 0.0
        %2631 = vmatpush2.msra.mxu0 0.0
        %2632 = vmatprep.subr.mxu0 0.0
        %2633 = vmatpush2.msra.mxu0 0.0
        %2634 = vmatprep.subr.mxu0 0.0
        %2635 = vmatpush2.msra.mxu0 0.0
        %2636 = vmatprep.subr.mxu0 0.0
        %2637 = vmatpush2.msra.mxu0 0.0
        %2638 = vmatprep.subr.mxu0 0.0
        %2639 = vmatpush2.msra.mxu0 0.0
        %2640 = vmatprep.subr.mxu0 0.0
        %2641 = vmatpush2.msra.mxu0 0.0
        %2642 = vmatprep.subr.mxu0 0.0
        %2643 = vmatpush2.msra.mxu0 0.0
        %2644 = vmatprep.subr.mxu0 0.0
        %2645 = vmatpush2.msra.mxu0 0.0
        %2646 = vmatprep.subr.mxu0 0.0
        %2647 = vmatpush2.msra.mxu0 0.0
        %2648 = vmatprep.subr.mxu0 0.0
        %2649 = vmatpush2.msra.mxu0 0.0
        %2650 = vmatprep.mubr.f32.mxu0 0.0
        %2651 = vmatmul.mubr.f32.gmra.mxu0 %v2249
        %v2652 = vpop.f32.mrf.mxu0
        %v2653 = vadd.f32 0.0, %v2652
        %v2654 = vpop.f32.mrf.mxu0
        %v2655 = vadd.f32 0.0, %v2654
        %2656 = vdwg.mxu0
        %2657 = vmatprep.subr.mxu0 %v2072
        %2658 = vmatpush1.msra.mxu0 %v2071
        %2659 = vmatprep.subr.mxu0 %v2070
        %2660 = vmatpush1.msra.mxu0 %v2069
        %2661 = vmatprep.subr.mxu0 %v2068
        %2662 = vmatpush1.msra.mxu0 %v2067
        %2663 = vmatprep.subr.mxu0 %v2066
        %2664 = vmatpush1.msra.mxu0 %v2065
        %2665 = vmatprep.subr.mxu0 %v2064
        %2666 = vmatpush1.msra.mxu0 %v2063
        %2667 = vmatprep.subr.mxu0 %v2062
        %2668 = vmatpush1.msra.mxu0 %v2061
        %2669 = vmatprep.subr.mxu0 %v2060
        %2670 = vmatpush1.msra.mxu0 %v2059
        %2671 = vmatprep.subr.mxu0 %v2058
        %2672 = vmatpush1.msra.mxu0 %v2057
        %2673 = vmatprep.subr.mxu0 %v2056
        %2674 = vmatpush1.msra.mxu0 %v2055
        %2675 = vmatprep.subr.mxu0 %v2054
        %2676 = vmatpush1.msra.mxu0 %v2053
        %2677 = vmatprep.subr.mxu0 %v2052
        %2678 = vmatpush1.msra.mxu0 %v2051
        %2679 = vmatprep.subr.mxu0 %v2050
        %2680 = vmatpush1.msra.mxu0 %v2049
        %2681 = vmatprep.subr.mxu0 %v2048
        %2682 = vmatpush1.msra.mxu0 %v2047
        %2683 = vmatprep.subr.mxu0 %v2046
        %2684 = vmatpush1.msra.mxu0 %v2045
        %2685 = vmatprep.subr.mxu0 %v2044
        %2686 = vmatpush1.msra.mxu0 %v2043
        %2687 = vmatprep.subr.mxu0 %v2042
        %2688 = vmatpush1.msra.mxu0 %v2041
        %2689 = vmatprep.subr.mxu0 0.0
        %2690 = vmatpush2.msra.mxu0 0.0
        %2691 = vmatprep.subr.mxu0 0.0
        %2692 = vmatpush2.msra.mxu0 0.0
        %2693 = vmatprep.subr.mxu0 0.0
        %2694 = vmatpush2.msra.mxu0 0.0
        %2695 = vmatprep.subr.mxu0 0.0
        %2696 = vmatpush2.msra.mxu0 0.0
        %2697 = vmatprep.subr.mxu0 0.0
        %2698 = vmatpush2.msra.mxu0 0.0
        %2699 = vmatprep.subr.mxu0 0.0
        %2700 = vmatpush2.msra.mxu0 0.0
        %2701 = vmatprep.subr.mxu0 0.0
        %2702 = vmatpush2.msra.mxu0 0.0
        %2703 = vmatprep.subr.mxu0 0.0
        %2704 = vmatpush2.msra.mxu0 0.0
        %2705 = vmatprep.subr.mxu0 0.0
        %2706 = vmatpush2.msra.mxu0 0.0
        %2707 = vmatprep.subr.mxu0 0.0
        %2708 = vmatpush2.msra.mxu0 0.0
        %2709 = vmatprep.subr.mxu0 0.0
        %2710 = vmatpush2.msra.mxu0 0.0
        %2711 = vmatprep.subr.mxu0 0.0
        %2712 = vmatpush2.msra.mxu0 0.0
        %2713 = vmatprep.subr.mxu0 0.0
        %2714 = vmatpush2.msra.mxu0 0.0
        %2715 = vmatprep.subr.mxu0 0.0
        %2716 = vmatpush2.msra.mxu0 0.0
        %2717 = vmatprep.subr.mxu0 0.0
        %2718 = vmatpush2.msra.mxu0 0.0
        %2719 = vmatprep.subr.mxu0 0.0
        %2720 = vmatpush2.msra.mxu0 0.0
        %2721 = vmatprep.mubr.f32.mxu0 0.0
        %2722 = vmatmul.mubr.f32.gmra.mxu0 %v2073
        %v2723 = vpop.f32.mrf.mxu0
        %v2724 = vadd.f32 %v2653, %v2723
        %v2725 = vpop.f32.mrf.mxu0
        %v2726 = vadd.f32 %v2655, %v2725
        %2727 = vdwg.mxu0
        %2728 = vmatprep.subr.mxu0 %v2282
        %2729 = vmatpush1.msra.mxu0 %v2281
        %2730 = vmatprep.subr.mxu0 %v2280
        %2731 = vmatpush1.msra.mxu0 %v2279
        %2732 = vmatprep.subr.mxu0 %v2278
        %2733 = vmatpush1.msra.mxu0 %v2277
        %2734 = vmatprep.subr.mxu0 %v2276
        %2735 = vmatpush1.msra.mxu0 %v2275
        %2736 = vmatprep.subr.mxu0 %v2274
        %2737 = vmatpush1.msra.mxu0 %v2273
        %2738 = vmatprep.subr.mxu0 %v2272
        %2739 = vmatpush1.msra.mxu0 %v2271
        %2740 = vmatprep.subr.mxu0 %v2270
        %2741 = vmatpush1.msra.mxu0 %v2269
        %2742 = vmatprep.subr.mxu0 %v2268
        %2743 = vmatpush1.msra.mxu0 %v2267
        %2744 = vmatprep.subr.mxu0 %v2266
        %2745 = vmatpush1.msra.mxu0 %v2265
        %2746 = vmatprep.subr.mxu0 %v2264
        %2747 = vmatpush1.msra.mxu0 %v2263
        %2748 = vmatprep.subr.mxu0 %v2262
        %2749 = vmatpush1.msra.mxu0 %v2261
        %2750 = vmatprep.subr.mxu0 %v2260
        %2751 = vmatpush1.msra.mxu0 %v2259
        %2752 = vmatprep.subr.mxu0 %v2258
        %2753 = vmatpush1.msra.mxu0 %v2257
        %2754 = vmatprep.subr.mxu0 %v2256
        %2755 = vmatpush1.msra.mxu0 %v2255
        %2756 = vmatprep.subr.mxu0 %v2254
        %2757 = vmatpush1.msra.mxu0 %v2253
        %2758 = vmatprep.subr.mxu0 %v2252
        %2759 = vmatpush1.msra.mxu0 %v2251
        %2760 = vmatprep.subr.mxu0 0.0
        %2761 = vmatpush2.msra.mxu0 0.0
        %2762 = vmatprep.subr.mxu0 0.0
        %2763 = vmatpush2.msra.mxu0 0.0
        %2764 = vmatprep.subr.mxu0 0.0
        %2765 = vmatpush2.msra.mxu0 0.0
        %2766 = vmatprep.subr.mxu0 0.0
        %2767 = vmatpush2.msra.mxu0 0.0
        %2768 = vmatprep.subr.mxu0 0.0
        %2769 = vmatpush2.msra.mxu0 0.0
        %2770 = vmatprep.subr.mxu0 0.0
        %2771 = vmatpush2.msra.mxu0 0.0
        %2772 = vmatprep.subr.mxu0 0.0
        %2773 = vmatpush2.msra.mxu0 0.0
        %2774 = vmatprep.subr.mxu0 0.0
        %2775 = vmatpush2.msra.mxu0 0.0
        %2776 = vmatprep.subr.mxu0 0.0
        %2777 = vmatpush2.msra.mxu0 0.0
        %2778 = vmatprep.subr.mxu0 0.0
        %2779 = vmatpush2.msra.mxu0 0.0
        %2780 = vmatprep.subr.mxu0 0.0
        %2781 = vmatpush2.msra.mxu0 0.0
        %2782 = vmatprep.subr.mxu0 0.0
        %2783 = vmatpush2.msra.mxu0 0.0
        %2784 = vmatprep.subr.mxu0 0.0
        %2785 = vmatpush2.msra.mxu0 0.0
        %2786 = vmatprep.subr.mxu0 0.0
        %2787 = vmatpush2.msra.mxu0 0.0
        %2788 = vmatprep.subr.mxu0 0.0
        %2789 = vmatpush2.msra.mxu0 0.0
        %2790 = vmatprep.subr.mxu0 0.0
        %2791 = vmatpush2.msra.mxu0 0.0
        %2792 = vmatprep.mubr.f32.mxu0 0.0
        %2793 = vmatmul.mubr.f32.gmra.mxu0 %v2356
        %v2794 = vpop.f32.mrf.mxu0
        %v2795 = vadd.f32 0.0, %v2794
        %v2796 = vpop.f32.mrf.mxu0
        %v2797 = vadd.f32 0.0, %v2796
        %2798 = vdwg.mxu0
        %v2799 = vadd.f32 %v2724, %v2795
        %v2800 = vadd.f32 %v2726, %v2797
        %2801 = vmatprep.subr.mxu0 %v2389
        %2802 = vmatpush1.msra.mxu0 %v2388
        %2803 = vmatprep.subr.mxu0 %v2387
        %2804 = vmatpush1.msra.mxu0 %v2386
        %2805 = vmatprep.subr.mxu0 %v2385
        %2806 = vmatpush1.msra.mxu0 %v2384
        %2807 = vmatprep.subr.mxu0 %v2383
        %2808 = vmatpush1.msra.mxu0 %v2382
        %2809 = vmatprep.subr.mxu0 %v2381
        %2810 = vmatpush1.msra.mxu0 %v2380
        %2811 = vmatprep.subr.mxu0 %v2379
        %2812 = vmatpush1.msra.mxu0 %v2378
        %2813 = vmatprep.subr.mxu0 %v2377
        %2814 = vmatpush1.msra.mxu0 %v2376
        %2815 = vmatprep.subr.mxu0 %v2375
        %2816 = vmatpush1.msra.mxu0 %v2374
        %2817 = vmatprep.subr.mxu0 %v2373
        %2818 = vmatpush1.msra.mxu0 %v2372
        %2819 = vmatprep.subr.mxu0 %v2371
        %2820 = vmatpush1.msra.mxu0 %v2370
        %2821 = vmatprep.subr.mxu0 %v2369
        %2822 = vmatpush1.msra.mxu0 %v2368
        %2823 = vmatprep.subr.mxu0 %v2367
        %2824 = vmatpush1.msra.mxu0 %v2366
        %2825 = vmatprep.subr.mxu0 %v2365
        %2826 = vmatpush1.msra.mxu0 %v2364
        %2827 = vmatprep.subr.mxu0 %v2363
        %2828 = vmatpush1.msra.mxu0 %v2362
        %2829 = vmatprep.subr.mxu0 %v2361
        %2830 = vmatpush1.msra.mxu0 %v2360
        %2831 = vmatprep.subr.mxu0 %v2359
        %2832 = vmatpush1.msra.mxu0 %v2358
        %2833 = vmatprep.subr.mxu0 0.0
        %2834 = vmatpush2.msra.mxu0 0.0
        %2835 = vmatprep.subr.mxu0 0.0
        %2836 = vmatpush2.msra.mxu0 0.0
        %2837 = vmatprep.subr.mxu0 0.0
        %2838 = vmatpush2.msra.mxu0 0.0
        %2839 = vmatprep.subr.mxu0 0.0
        %2840 = vmatpush2.msra.mxu0 0.0
        %2841 = vmatprep.subr.mxu0 0.0
        %2842 = vmatpush2.msra.mxu0 0.0
        %2843 = vmatprep.subr.mxu0 0.0
        %2844 = vmatpush2.msra.mxu0 0.0
        %2845 = vmatprep.subr.mxu0 0.0
        %2846 = vmatpush2.msra.mxu0 0.0
        %2847 = vmatprep.subr.mxu0 0.0
        %2848 = vmatpush2.msra.mxu0 0.0
        %2849 = vmatprep.subr.mxu0 0.0
        %2850 = vmatpush2.msra.mxu0 0.0
        %2851 = vmatprep.subr.mxu0 0.0
        %2852 = vmatpush2.msra.mxu0 0.0
        %2853 = vmatprep.subr.mxu0 0.0
        %2854 = vmatpush2.msra.mxu0 0.0
        %2855 = vmatprep.subr.mxu0 0.0
        %2856 = vmatpush2.msra.mxu0 0.0
        %2857 = vmatprep.subr.mxu0 0.0
        %2858 = vmatpush2.msra.mxu0 0.0
        %2859 = vmatprep.subr.mxu0 0.0
        %2860 = vmatpush2.msra.mxu0 0.0
        %2861 = vmatprep.subr.mxu0 0.0
        %2862 = vmatpush2.msra.mxu0 0.0
        %2863 = vmatprep.subr.mxu0 0.0
        %2864 = vmatpush2.msra.mxu0 0.0
        %2865 = vmatprep.mubr.f32.mxu0 0.0
        %2866 = vmatmul.mubr.f32.gmra.mxu0 %v2463
        %v2867 = vpop.f32.mrf.mxu0
        %v2868 = vadd.f32 0.0, %v2867
        %v2869 = vpop.f32.mrf.mxu0
        %v2870 = vadd.f32 0.0, %v2869
        %2871 = vdwg.mxu0
        %v2872 = vadd.f32 %v2799, %v2868
        %v2873 = vadd.f32 %v2800, %v2870
        %v2874 = vld [vmem:[%s2038 + $0x2] sm:$0x1f]
        %2875 = vmatprep.subr.mxu0 %v2496
        %2876 = vmatpush1.msra.mxu0 %v2495
        %2877 = vmatprep.subr.mxu0 %v2494
        %2878 = vmatpush1.msra.mxu0 %v2493
        %2879 = vmatprep.subr.mxu0 %v2492
        %2880 = vmatpush1.msra.mxu0 %v2491
        %2881 = vmatprep.subr.mxu0 %v2490
        %2882 = vmatpush1.msra.mxu0 %v2489
        %2883 = vmatprep.subr.mxu0 %v2488
        %2884 = vmatpush1.msra.mxu0 %v2487
        %2885 = vmatprep.subr.mxu0 %v2486
        %2886 = vmatpush1.msra.mxu0 %v2485
        %2887 = vmatprep.subr.mxu0 %v2484
        %2888 = vmatpush1.msra.mxu0 %v2483
        %2889 = vmatprep.subr.mxu0 %v2482
        %2890 = vmatpush1.msra.mxu0 %v2481
        %2891 = vmatprep.subr.mxu0 %v2480
        %2892 = vmatpush1.msra.mxu0 %v2479
        %2893 = vmatprep.subr.mxu0 %v2478
        %2894 = vmatpush1.msra.mxu0 %v2477
        %2895 = vmatprep.subr.mxu0 %v2476
        %2896 = vmatpush1.msra.mxu0 %v2475
        %2897 = vmatprep.subr.mxu0 %v2474
        %2898 = vmatpush1.msra.mxu0 %v2473
        %2899 = vmatprep.subr.mxu0 %v2472
        %2900 = vmatpush1.msra.mxu0 %v2471
        %2901 = vmatprep.subr.mxu0 %v2470
        %2902 = vmatpush1.msra.mxu0 %v2469
        %2903 = vmatprep.subr.mxu0 %v2468
        %2904 = vmatpush1.msra.mxu0 %v2467
        %2905 = vmatprep.subr.mxu0 %v2466
        %2906 = vmatpush1.msra.mxu0 %v2465
        %2907 = vmatprep.subr.mxu0 0.0
        %2908 = vmatpush2.msra.mxu0 0.0
        %2909 = vmatprep.subr.mxu0 0.0
        %2910 = vmatpush2.msra.mxu0 0.0
        %2911 = vmatprep.subr.mxu0 0.0
        %2912 = vmatpush2.msra.mxu0 0.0
        %2913 = vmatprep.subr.mxu0 0.0
        %2914 = vmatpush2.msra.mxu0 0.0
        %2915 = vmatprep.subr.mxu0 0.0
        %2916 = vmatpush2.msra.mxu0 0.0
        %2917 = vmatprep.subr.mxu0 0.0
        %2918 = vmatpush2.msra.mxu0 0.0
        %2919 = vmatprep.subr.mxu0 0.0
        %2920 = vmatpush2.msra.mxu0 0.0
        %2921 = vmatprep.subr.mxu0 0.0
        %2922 = vmatpush2.msra.mxu0 0.0
        %2923 = vmatprep.subr.mxu0 0.0
        %2924 = vmatpush2.msra.mxu0 0.0
        %2925 = vmatprep.subr.mxu0 0.0
        %2926 = vmatpush2.msra.mxu0 0.0
        %2927 = vmatprep.subr.mxu0 0.0
        %2928 = vmatpush2.msra.mxu0 0.0
        %2929 = vmatprep.subr.mxu0 0.0
        %2930 = vmatpush2.msra.mxu0 0.0
        %2931 = vmatprep.subr.mxu0 0.0
        %2932 = vmatpush2.msra.mxu0 0.0
        %2933 = vmatprep.subr.mxu0 0.0
        %2934 = vmatpush2.msra.mxu0 0.0
        %2935 = vmatprep.subr.mxu0 0.0
        %2936 = vmatpush2.msra.mxu0 0.0
        %2937 = vmatprep.subr.mxu0 0.0
        %2938 = vmatpush2.msra.mxu0 0.0
        %2939 = vmatprep.mubr.f32.mxu0 0.0
        %2940 = vmatmul.mubr.f32.gmra.mxu0 %v2874
        %v2941 = vpop.f32.mrf.mxu0
        %v2942 = vadd.f32 0.0, %v2941
        %v2943 = vpop.f32.mrf.mxu0
        %v2944 = vadd.f32 0.0, %v2943
        %2945 = vdwg.mxu0
        %v2946 = vadd.f32 %v2872, %v2942
        %v2947 = vadd.f32 %v2873, %v2944
        %v2948 = vadd.f32 %v2946, %v2575
        %v2949 = vadd.f32 %v2947, %v2579
        %v2950 = vmax.f32 %v2948, 0.0
        %v2951 = vmax.f32 %v2949, 0.0
        %v2952 = vmax.f32 %v2584, %v2950
        %v2953 = vmax.f32 %v2585, %v2951
        %v2954 = vmax.f32 %v2952, %v2953
        %2955 = vst [vmem:[#allocation3] sm:$0x1f] %v2954
        %v2956 = vld [vmem:[#allocation3] sm:$0x1]
        %v2957 = vld [vmem:[%s5] sm:$0xff]
        %v2958 = vld [vmem:[%s5 + $0x8] sm:$0xff]
        %v2959 = vld [vmem:[%s5 + $0x10] sm:$0xff]
        %v2960 = vld [vmem:[%s5 + $0x18] sm:$0xff]
        %v2961 = vld [vmem:[%s5 + $0x20] sm:$0xff]
        %v2962 = vld [vmem:[%s5 + $0x28] sm:$0xff]
        %v2963 = vld [vmem:[%s5 + $0x30] sm:$0xff]
        %v2964 = vld [vmem:[%s5 + $0x38] sm:$0xff]
        %v2965 = vld [vmem:[%s5 + $0x40] sm:$0xff]
        %v2966 = vld [vmem:[%s5 + $0x48] sm:$0xff]
        %v2967 = vld [vmem:[%s5 + $0x50] sm:$0xff]
        %v2968 = vld [vmem:[%s5 + $0x58] sm:$0xff]
        %v2969 = vld [vmem:[%s5 + $0x60] sm:$0xff]
        %v2970 = vld [vmem:[%s5 + $0x68] sm:$0xff]
        %v2971 = vld [vmem:[%s5 + $0x70] sm:$0xff]
        %v2972 = vld [vmem:[%s5 + $0x78] sm:$0xff]
        %v2973 = vld [vmem:[#allocation3 + $0x1] sm:$0x1]
        %s2974 = scalar_lea.vmem %s5, 128
        %v2975 = vld [vmem:[%s2974] sm:$0xff]
        %v2976 = vld [vmem:[%s2974 + $0x8] sm:$0xff]
        %v2977 = vld [vmem:[%s2974 + $0x10] sm:$0xff]
        %v2978 = vld [vmem:[%s2974 + $0x18] sm:$0xff]
        %v2979 = vld [vmem:[%s2974 + $0x20] sm:$0xff]
        %v2980 = vld [vmem:[%s2974 + $0x28] sm:$0xff]
        %v2981 = vld [vmem:[%s2974 + $0x30] sm:$0xff]
        %v2982 = vld [vmem:[%s2974 + $0x38] sm:$0xff]
        %v2983 = vld [vmem:[%s2974 + $0x40] sm:$0xff]
        %v2984 = vld [vmem:[%s2974 + $0x48] sm:$0xff]
        %v2985 = vld [vmem:[%s2974 + $0x50] sm:$0xff]
        %v2986 = vld [vmem:[%s2974 + $0x58] sm:$0xff]
        %v2987 = vld [vmem:[%s2974 + $0x60] sm:$0xff]
        %v2988 = vld [vmem:[%s2974 + $0x68] sm:$0xff]
        %v2989 = vld [vmem:[%s2974 + $0x70] sm:$0xff]
        %v2990 = vld [vmem:[%s2974 + $0x78] sm:$0xff]
        %2991 = vmatprep.subr.mxu0 0.0
        %2992 = vmatpush1.msra.mxu0 %v2990
        %2993 = vmatprep.subr.mxu0 0.0
        %2994 = vmatpush1.msra.mxu0 %v2989
        %2995 = vmatprep.subr.mxu0 0.0
        %2996 = vmatpush1.msra.mxu0 %v2988
        %2997 = vmatprep.subr.mxu0 0.0
        %2998 = vmatpush1.msra.mxu0 %v2987
        %2999 = vmatprep.subr.mxu0 0.0
        %3000 = vmatpush1.msra.mxu0 %v2986
        %3001 = vmatprep.subr.mxu0 0.0
        %3002 = vmatpush1.msra.mxu0 %v2985
        %3003 = vmatprep.subr.mxu0 0.0
        %3004 = vmatpush1.msra.mxu0 %v2984
        %3005 = vmatprep.subr.mxu0 0.0
        %3006 = vmatpush1.msra.mxu0 %v2983
        %3007 = vmatprep.subr.mxu0 0.0
        %3008 = vmatpush1.msra.mxu0 %v2982
        %3009 = vmatprep.subr.mxu0 0.0
        %3010 = vmatpush1.msra.mxu0 %v2981
        %3011 = vmatprep.subr.mxu0 0.0
        %3012 = vmatpush1.msra.mxu0 %v2980
        %3013 = vmatprep.subr.mxu0 0.0
        %3014 = vmatpush1.msra.mxu0 %v2979
        %3015 = vmatprep.subr.mxu0 0.0
        %3016 = vmatpush1.msra.mxu0 %v2978
        %3017 = vmatprep.subr.mxu0 0.0
        %3018 = vmatpush1.msra.mxu0 %v2977
        %3019 = vmatprep.subr.mxu0 0.0
        %3020 = vmatpush1.msra.mxu0 %v2976
        %3021 = vmatprep.subr.mxu0 0.0
        %3022 = vmatpush1.msra.mxu0 %v2975
        %3023 = vmatprep.subr.mxu0 0.0
        %3024 = vmatpush2.msra.mxu0 0.0
        %3025 = vmatprep.subr.mxu0 0.0
        %3026 = vmatpush2.msra.mxu0 0.0
        %3027 = vmatprep.subr.mxu0 0.0
        %3028 = vmatpush2.msra.mxu0 0.0
        %3029 = vmatprep.subr.mxu0 0.0
        %3030 = vmatpush2.msra.mxu0 0.0
        %3031 = vmatprep.subr.mxu0 0.0
        %3032 = vmatpush2.msra.mxu0 0.0
        %3033 = vmatprep.subr.mxu0 0.0
        %3034 = vmatpush2.msra.mxu0 0.0
        %3035 = vmatprep.subr.mxu0 0.0
        %3036 = vmatpush2.msra.mxu0 0.0
        %3037 = vmatprep.subr.mxu0 0.0
        %3038 = vmatpush2.msra.mxu0 0.0
        %3039 = vmatprep.subr.mxu0 0.0
        %3040 = vmatpush2.msra.mxu0 0.0
        %3041 = vmatprep.subr.mxu0 0.0
        %3042 = vmatpush2.msra.mxu0 0.0
        %3043 = vmatprep.subr.mxu0 0.0
        %3044 = vmatpush2.msra.mxu0 0.0
        %3045 = vmatprep.subr.mxu0 0.0
        %3046 = vmatpush2.msra.mxu0 0.0
        %3047 = vmatprep.subr.mxu0 0.0
        %3048 = vmatpush2.msra.mxu0 0.0
        %3049 = vmatprep.subr.mxu0 0.0
        %3050 = vmatpush2.msra.mxu0 0.0
        %3051 = vmatprep.subr.mxu0 0.0
        %3052 = vmatpush2.msra.mxu0 0.0
        %3053 = vmatprep.subr.mxu0 0.0
        %3054 = vmatpush2.msra.mxu0 0.0
        %3055 = vmatprep.mubr.f32.mxu0 0.0
        %3056 = vmatmul.mubr.f32.gmra.mxu0 %v2973
        %v3057 = vpop.f32.mrf.mxu0
        %v3058 = vadd.f32 0.0, %v3057
        %v3059 = vpop.f32.mrf.mxu0
        %3060 = vdwg.mxu0
        %3061 = vmatprep.subr.mxu0 0.0
        %3062 = vmatpush1.msra.mxu0 %v2972
        %3063 = vmatprep.subr.mxu0 0.0
        %3064 = vmatpush1.msra.mxu0 %v2971
        %3065 = vmatprep.subr.mxu0 0.0
        %3066 = vmatpush1.msra.mxu0 %v2970
        %3067 = vmatprep.subr.mxu0 0.0
        %3068 = vmatpush1.msra.mxu0 %v2969
        %3069 = vmatprep.subr.mxu0 0.0
        %3070 = vmatpush1.msra.mxu0 %v2968
        %3071 = vmatprep.subr.mxu0 0.0
        %3072 = vmatpush1.msra.mxu0 %v2967
        %3073 = vmatprep.subr.mxu0 0.0
        %3074 = vmatpush1.msra.mxu0 %v2966
        %3075 = vmatprep.subr.mxu0 0.0
        %3076 = vmatpush1.msra.mxu0 %v2965
        %3077 = vmatprep.subr.mxu0 0.0
        %3078 = vmatpush1.msra.mxu0 %v2964
        %3079 = vmatprep.subr.mxu0 0.0
        %3080 = vmatpush1.msra.mxu0 %v2963
        %3081 = vmatprep.subr.mxu0 0.0
        %3082 = vmatpush1.msra.mxu0 %v2962
        %3083 = vmatprep.subr.mxu0 0.0
        %3084 = vmatpush1.msra.mxu0 %v2961
        %3085 = vmatprep.subr.mxu0 0.0
        %3086 = vmatpush1.msra.mxu0 %v2960
        %3087 = vmatprep.subr.mxu0 0.0
        %3088 = vmatpush1.msra.mxu0 %v2959
        %3089 = vmatprep.subr.mxu0 0.0
        %3090 = vmatpush1.msra.mxu0 %v2958
        %3091 = vmatprep.subr.mxu0 0.0
        %3092 = vmatpush1.msra.mxu0 %v2957
        %3093 = vmatprep.subr.mxu0 0.0
        %3094 = vmatpush2.msra.mxu0 0.0
        %3095 = vmatprep.subr.mxu0 0.0
        %3096 = vmatpush2.msra.mxu0 0.0
        %3097 = vmatprep.subr.mxu0 0.0
        %3098 = vmatpush2.msra.mxu0 0.0
        %3099 = vmatprep.subr.mxu0 0.0
        %3100 = vmatpush2.msra.mxu0 0.0
        %3101 = vmatprep.subr.mxu0 0.0
        %3102 = vmatpush2.msra.mxu0 0.0
        %3103 = vmatprep.subr.mxu0 0.0
        %3104 = vmatpush2.msra.mxu0 0.0
        %3105 = vmatprep.subr.mxu0 0.0
        %3106 = vmatpush2.msra.mxu0 0.0
        %3107 = vmatprep.subr.mxu0 0.0
        %3108 = vmatpush2.msra.mxu0 0.0
        %3109 = vmatprep.subr.mxu0 0.0
        %3110 = vmatpush2.msra.mxu0 0.0
        %3111 = vmatprep.subr.mxu0 0.0
        %3112 = vmatpush2.msra.mxu0 0.0
        %3113 = vmatprep.subr.mxu0 0.0
        %3114 = vmatpush2.msra.mxu0 0.0
        %3115 = vmatprep.subr.mxu0 0.0
        %3116 = vmatpush2.msra.mxu0 0.0
        %3117 = vmatprep.subr.mxu0 0.0
        %3118 = vmatpush2.msra.mxu0 0.0
        %3119 = vmatprep.subr.mxu0 0.0
        %3120 = vmatpush2.msra.mxu0 0.0
        %3121 = vmatprep.subr.mxu0 0.0
        %3122 = vmatpush2.msra.mxu0 0.0
        %3123 = vmatprep.subr.mxu0 0.0
        %3124 = vmatpush2.msra.mxu0 0.0
        %3125 = vmatprep.mubr.f32.mxu0 0.0
        %3126 = vmatmul.mubr.f32.gmra.mxu0 %v2956
        %v3127 = vpop.f32.mrf.mxu0
        %v3128 = vadd.f32 %v3058, %v3127
        %v3129 = vpop.f32.mrf.mxu0
        %3130 = vdwg.mxu0
        %v3131 = vld [vmem:[#allocation3 + $0x2] sm:$0x1]
        %s3132 = scalar_lea.vmem %s5, 256
        %v3133 = vld [vmem:[%s3132] sm:$0xff]
        %v3134 = vld [vmem:[%s3132 + $0x8] sm:$0xff]
        %v3135 = vld [vmem:[%s3132 + $0x10] sm:$0xff]
        %v3136 = vld [vmem:[%s3132 + $0x18] sm:$0xff]
        %v3137 = vld [vmem:[%s3132 + $0x20] sm:$0xff]
        %v3138 = vld [vmem:[%s3132 + $0x28] sm:$0xff]
        %v3139 = vld [vmem:[%s3132 + $0x30] sm:$0xff]
        %v3140 = vld [vmem:[%s3132 + $0x38] sm:$0xff]
        %v3141 = vld [vmem:[%s3132 + $0x40] sm:$0xff]
        %v3142 = vld [vmem:[%s3132 + $0x48] sm:$0xff]
        %v3143 = vld [vmem:[%s3132 + $0x50] sm:$0xff]
        %v3144 = vld [vmem:[%s3132 + $0x58] sm:$0xff]
        %v3145 = vld [vmem:[%s3132 + $0x60] sm:$0xff]
        %v3146 = vld [vmem:[%s3132 + $0x68] sm:$0xff]
        %v3147 = vld [vmem:[%s3132 + $0x70] sm:$0xff]
        %v3148 = vld [vmem:[%s3132 + $0x78] sm:$0xff]
        %3149 = vmatprep.subr.mxu0 0.0
        %3150 = vmatpush1.msra.mxu0 %v3148
        %3151 = vmatprep.subr.mxu0 0.0
        %3152 = vmatpush1.msra.mxu0 %v3147
        %3153 = vmatprep.subr.mxu0 0.0
        %3154 = vmatpush1.msra.mxu0 %v3146
        %3155 = vmatprep.subr.mxu0 0.0
        %3156 = vmatpush1.msra.mxu0 %v3145
        %3157 = vmatprep.subr.mxu0 0.0
        %3158 = vmatpush1.msra.mxu0 %v3144
        %3159 = vmatprep.subr.mxu0 0.0
        %3160 = vmatpush1.msra.mxu0 %v3143
        %3161 = vmatprep.subr.mxu0 0.0
        %3162 = vmatpush1.msra.mxu0 %v3142
        %3163 = vmatprep.subr.mxu0 0.0
        %3164 = vmatpush1.msra.mxu0 %v3141
        %3165 = vmatprep.subr.mxu0 0.0
        %3166 = vmatpush1.msra.mxu0 %v3140
        %3167 = vmatprep.subr.mxu0 0.0
        %3168 = vmatpush1.msra.mxu0 %v3139
        %3169 = vmatprep.subr.mxu0 0.0
        %3170 = vmatpush1.msra.mxu0 %v3138
        %3171 = vmatprep.subr.mxu0 0.0
        %3172 = vmatpush1.msra.mxu0 %v3137
        %3173 = vmatprep.subr.mxu0 0.0
        %3174 = vmatpush1.msra.mxu0 %v3136
        %3175 = vmatprep.subr.mxu0 0.0
        %3176 = vmatpush1.msra.mxu0 %v3135
        %3177 = vmatprep.subr.mxu0 0.0
        %3178 = vmatpush1.msra.mxu0 %v3134
        %3179 = vmatprep.subr.mxu0 0.0
        %3180 = vmatpush1.msra.mxu0 %v3133
        %3181 = vmatprep.subr.mxu0 0.0
        %3182 = vmatpush2.msra.mxu0 0.0
        %3183 = vmatprep.subr.mxu0 0.0
        %3184 = vmatpush2.msra.mxu0 0.0
        %3185 = vmatprep.subr.mxu0 0.0
        %3186 = vmatpush2.msra.mxu0 0.0
        %3187 = vmatprep.subr.mxu0 0.0
        %3188 = vmatpush2.msra.mxu0 0.0
        %3189 = vmatprep.subr.mxu0 0.0
        %3190 = vmatpush2.msra.mxu0 0.0
        %3191 = vmatprep.subr.mxu0 0.0
        %3192 = vmatpush2.msra.mxu0 0.0
        %3193 = vmatprep.subr.mxu0 0.0
        %3194 = vmatpush2.msra.mxu0 0.0
        %3195 = vmatprep.subr.mxu0 0.0
        %3196 = vmatpush2.msra.mxu0 0.0
        %3197 = vmatprep.subr.mxu0 0.0
        %3198 = vmatpush2.msra.mxu0 0.0
        %3199 = vmatprep.subr.mxu0 0.0
        %3200 = vmatpush2.msra.mxu0 0.0
        %3201 = vmatprep.subr.mxu0 0.0
        %3202 = vmatpush2.msra.mxu0 0.0
        %3203 = vmatprep.subr.mxu0 0.0
        %3204 = vmatpush2.msra.mxu0 0.0
        %3205 = vmatprep.subr.mxu0 0.0
        %3206 = vmatpush2.msra.mxu0 0.0
        %3207 = vmatprep.subr.mxu0 0.0
        %3208 = vmatpush2.msra.mxu0 0.0
        %3209 = vmatprep.subr.mxu0 0.0
        %3210 = vmatpush2.msra.mxu0 0.0
        %3211 = vmatprep.subr.mxu0 0.0
        %3212 = vmatpush2.msra.mxu0 0.0
        %3213 = vmatprep.mubr.f32.mxu0 0.0
        %3214 = vmatmul.mubr.f32.gmra.mxu0 %v3131
        %v3215 = vpop.f32.mrf.mxu0
        %v3216 = vadd.f32 0.0, %v3215
        %v3217 = vpop.f32.mrf.mxu0
        %3218 = vdwg.mxu0
        %v3219 = vadd.f32 %v3128, %v3216
        %v3220 = vld [vmem:[#allocation3 + $0x3] sm:$0x1]
        %s3221 = scalar_lea.vmem %s5, 384
        %v3222 = vld [vmem:[%s3221] sm:$0xff]
        %v3223 = vld [vmem:[%s3221 + $0x8] sm:$0xff]
        %v3224 = vld [vmem:[%s3221 + $0x10] sm:$0xff]
        %v3225 = vld [vmem:[%s3221 + $0x18] sm:$0xff]
        %v3226 = vld [vmem:[%s3221 + $0x20] sm:$0xff]
        %v3227 = vld [vmem:[%s3221 + $0x28] sm:$0xff]
        %v3228 = vld [vmem:[%s3221 + $0x30] sm:$0xff]
        %v3229 = vld [vmem:[%s3221 + $0x38] sm:$0xff]
        %v3230 = vld [vmem:[%s3221 + $0x40] sm:$0xff]
        %v3231 = vld [vmem:[%s3221 + $0x48] sm:$0xff]
        %v3232 = vld [vmem:[%s3221 + $0x50] sm:$0xff]
        %v3233 = vld [vmem:[%s3221 + $0x58] sm:$0xff]
        %v3234 = vld [vmem:[%s3221 + $0x60] sm:$0xff]
        %v3235 = vld [vmem:[%s3221 + $0x68] sm:$0xff]
        %v3236 = vld [vmem:[%s3221 + $0x70] sm:$0xff]
        %v3237 = vld [vmem:[%s3221 + $0x78] sm:$0xff]
        %3238 = vmatprep.subr.mxu0 0.0
        %3239 = vmatpush1.msra.mxu0 %v3237
        %3240 = vmatprep.subr.mxu0 0.0
        %3241 = vmatpush1.msra.mxu0 %v3236
        %3242 = vmatprep.subr.mxu0 0.0
        %3243 = vmatpush1.msra.mxu0 %v3235
        %3244 = vmatprep.subr.mxu0 0.0
        %3245 = vmatpush1.msra.mxu0 %v3234
        %3246 = vmatprep.subr.mxu0 0.0
        %3247 = vmatpush1.msra.mxu0 %v3233
        %3248 = vmatprep.subr.mxu0 0.0
        %3249 = vmatpush1.msra.mxu0 %v3232
        %3250 = vmatprep.subr.mxu0 0.0
        %3251 = vmatpush1.msra.mxu0 %v3231
        %3252 = vmatprep.subr.mxu0 0.0
        %3253 = vmatpush1.msra.mxu0 %v3230
        %3254 = vmatprep.subr.mxu0 0.0
        %3255 = vmatpush1.msra.mxu0 %v3229
        %3256 = vmatprep.subr.mxu0 0.0
        %3257 = vmatpush1.msra.mxu0 %v3228
        %3258 = vmatprep.subr.mxu0 0.0
        %3259 = vmatpush1.msra.mxu0 %v3227
        %3260 = vmatprep.subr.mxu0 0.0
        %3261 = vmatpush1.msra.mxu0 %v3226
        %3262 = vmatprep.subr.mxu0 0.0
        %3263 = vmatpush1.msra.mxu0 %v3225
        %3264 = vmatprep.subr.mxu0 0.0
        %3265 = vmatpush1.msra.mxu0 %v3224
        %3266 = vmatprep.subr.mxu0 0.0
        %3267 = vmatpush1.msra.mxu0 %v3223
        %3268 = vmatprep.subr.mxu0 0.0
        %3269 = vmatpush1.msra.mxu0 %v3222
        %3270 = vmatprep.subr.mxu0 0.0
        %3271 = vmatpush2.msra.mxu0 0.0
        %3272 = vmatprep.subr.mxu0 0.0
        %3273 = vmatpush2.msra.mxu0 0.0
        %3274 = vmatprep.subr.mxu0 0.0
        %3275 = vmatpush2.msra.mxu0 0.0
        %3276 = vmatprep.subr.mxu0 0.0
        %3277 = vmatpush2.msra.mxu0 0.0
        %3278 = vmatprep.subr.mxu0 0.0
        %3279 = vmatpush2.msra.mxu0 0.0
        %3280 = vmatprep.subr.mxu0 0.0
        %3281 = vmatpush2.msra.mxu0 0.0
        %3282 = vmatprep.subr.mxu0 0.0
        %3283 = vmatpush2.msra.mxu0 0.0
        %3284 = vmatprep.subr.mxu0 0.0
        %3285 = vmatpush2.msra.mxu0 0.0
        %3286 = vmatprep.subr.mxu0 0.0
        %3287 = vmatpush2.msra.mxu0 0.0
        %3288 = vmatprep.subr.mxu0 0.0
        %3289 = vmatpush2.msra.mxu0 0.0
        %3290 = vmatprep.subr.mxu0 0.0
        %3291 = vmatpush2.msra.mxu0 0.0
        %3292 = vmatprep.subr.mxu0 0.0
        %3293 = vmatpush2.msra.mxu0 0.0
        %3294 = vmatprep.subr.mxu0 0.0
        %3295 = vmatpush2.msra.mxu0 0.0
        %3296 = vmatprep.subr.mxu0 0.0
        %3297 = vmatpush2.msra.mxu0 0.0
        %3298 = vmatprep.subr.mxu0 0.0
        %3299 = vmatpush2.msra.mxu0 0.0
        %3300 = vmatprep.subr.mxu0 0.0
        %3301 = vmatpush2.msra.mxu0 0.0
        %3302 = vmatprep.mubr.f32.mxu0 0.0
        %3303 = vmatmul.mubr.f32.gmra.mxu0 %v3220
        %v3304 = vpop.f32.mrf.mxu0
        %v3305 = vadd.f32 0.0, %v3304
        %v3306 = vpop.f32.mrf.mxu0
        %3307 = vdwg.mxu0
        %v3308 = vadd.f32 %v3219, %v3305
        %v3309 = vld [vmem:[#allocation3 + $0x4] sm:$0x1]
        %s3310 = scalar_lea.vmem %s5, 512
        %v3311 = vld [vmem:[%s3310] sm:$0xff]
        %v3312 = vld [vmem:[%s3310 + $0x8] sm:$0xff]
        %v3313 = vld [vmem:[%s3310 + $0x10] sm:$0xff]
        %v3314 = vld [vmem:[%s3310 + $0x18] sm:$0xff]
        %v3315 = vld [vmem:[%s3310 + $0x20] sm:$0xff]
        %v3316 = vld [vmem:[%s3310 + $0x28] sm:$0xff]
        %v3317 = vld [vmem:[%s3310 + $0x30] sm:$0xff]
        %v3318 = vld [vmem:[%s3310 + $0x38] sm:$0xff]
        %v3319 = vld [vmem:[%s3310 + $0x40] sm:$0xff]
        %v3320 = vld [vmem:[%s3310 + $0x48] sm:$0xff]
        %v3321 = vld [vmem:[%s3310 + $0x50] sm:$0xff]
        %v3322 = vld [vmem:[%s3310 + $0x58] sm:$0xff]
        %v3323 = vld [vmem:[%s3310 + $0x60] sm:$0xff]
        %v3324 = vld [vmem:[%s3310 + $0x68] sm:$0xff]
        %v3325 = vld [vmem:[%s3310 + $0x70] sm:$0xff]
        %v3326 = vld [vmem:[%s3310 + $0x78] sm:$0xff]
        %3327 = vmatprep.subr.mxu0 0.0
        %3328 = vmatpush1.msra.mxu0 %v3326
        %3329 = vmatprep.subr.mxu0 0.0
        %3330 = vmatpush1.msra.mxu0 %v3325
        %3331 = vmatprep.subr.mxu0 0.0
        %3332 = vmatpush1.msra.mxu0 %v3324
        %3333 = vmatprep.subr.mxu0 0.0
        %3334 = vmatpush1.msra.mxu0 %v3323
        %3335 = vmatprep.subr.mxu0 0.0
        %3336 = vmatpush1.msra.mxu0 %v3322
        %3337 = vmatprep.subr.mxu0 0.0
        %3338 = vmatpush1.msra.mxu0 %v3321
        %3339 = vmatprep.subr.mxu0 0.0
        %3340 = vmatpush1.msra.mxu0 %v3320
        %3341 = vmatprep.subr.mxu0 0.0
        %3342 = vmatpush1.msra.mxu0 %v3319
        %3343 = vmatprep.subr.mxu0 0.0
        %3344 = vmatpush1.msra.mxu0 %v3318
        %3345 = vmatprep.subr.mxu0 0.0
        %3346 = vmatpush1.msra.mxu0 %v3317
        %3347 = vmatprep.subr.mxu0 0.0
        %3348 = vmatpush1.msra.mxu0 %v3316
        %3349 = vmatprep.subr.mxu0 0.0
        %3350 = vmatpush1.msra.mxu0 %v3315
        %3351 = vmatprep.subr.mxu0 0.0
        %3352 = vmatpush1.msra.mxu0 %v3314
        %3353 = vmatprep.subr.mxu0 0.0
        %3354 = vmatpush1.msra.mxu0 %v3313
        %3355 = vmatprep.subr.mxu0 0.0
        %3356 = vmatpush1.msra.mxu0 %v3312
        %3357 = vmatprep.subr.mxu0 0.0
        %3358 = vmatpush1.msra.mxu0 %v3311
        %3359 = vmatprep.subr.mxu0 0.0
        %3360 = vmatpush2.msra.mxu0 0.0
        %3361 = vmatprep.subr.mxu0 0.0
        %3362 = vmatpush2.msra.mxu0 0.0
        %3363 = vmatprep.subr.mxu0 0.0
        %3364 = vmatpush2.msra.mxu0 0.0
        %3365 = vmatprep.subr.mxu0 0.0
        %3366 = vmatpush2.msra.mxu0 0.0
        %3367 = vmatprep.subr.mxu0 0.0
        %3368 = vmatpush2.msra.mxu0 0.0
        %3369 = vmatprep.subr.mxu0 0.0
        %3370 = vmatpush2.msra.mxu0 0.0
        %3371 = vmatprep.subr.mxu0 0.0
        %3372 = vmatpush2.msra.mxu0 0.0
        %3373 = vmatprep.subr.mxu0 0.0
        %3374 = vmatpush2.msra.mxu0 0.0
        %3375 = vmatprep.subr.mxu0 0.0
        %3376 = vmatpush2.msra.mxu0 0.0
        %3377 = vmatprep.subr.mxu0 0.0
        %3378 = vmatpush2.msra.mxu0 0.0
        %3379 = vmatprep.subr.mxu0 0.0
        %3380 = vmatpush2.msra.mxu0 0.0
        %3381 = vmatprep.subr.mxu0 0.0
        %3382 = vmatpush2.msra.mxu0 0.0
        %3383 = vmatprep.subr.mxu0 0.0
        %3384 = vmatpush2.msra.mxu0 0.0
        %3385 = vmatprep.subr.mxu0 0.0
        %3386 = vmatpush2.msra.mxu0 0.0
        %3387 = vmatprep.subr.mxu0 0.0
        %3388 = vmatpush2.msra.mxu0 0.0
        %3389 = vmatprep.subr.mxu0 0.0
        %3390 = vmatpush2.msra.mxu0 0.0
        %3391 = vmatprep.mubr.f32.mxu0 0.0
        %3392 = vmatmul.mubr.f32.gmra.mxu0 %v3309
        %v3393 = vpop.f32.mrf.mxu0
        %v3394 = vadd.f32 0.0, %v3393
        %v3395 = vpop.f32.mrf.mxu0
        %3396 = vdwg.mxu0
        %v3397 = vadd.f32 %v3308, %v3394
        %v3398 = vld [vmem:[%s6] sm:$0x1]
        %v3399 = vadd.f32 %v3397, %v3398
        %v3400 = vmax.f32 %v3399, 0.0
        %v3401 = vld [vmem:[%s7] sm:$0xff]
        %v3402 = vld [vmem:[%s7 + $0x8] sm:$0xff]
        %v3403 = vld [vmem:[%s7 + $0x10] sm:$0xff]
        %v3404 = vld [vmem:[%s7 + $0x18] sm:$0xff]
        %v3405 = vld [vmem:[%s7 + $0x20] sm:$0xff]
        %v3406 = vld [vmem:[%s7 + $0x28] sm:$0xff]
        %v3407 = vld [vmem:[%s7 + $0x30] sm:$0xff]
        %v3408 = vld [vmem:[%s7 + $0x38] sm:$0xff]
        %v3409 = vld [vmem:[%s7 + $0x40] sm:$0xff]
        %v3410 = vld [vmem:[%s7 + $0x48] sm:$0xff]
        %v3411 = vld [vmem:[%s7 + $0x50] sm:$0xff]
        %v3412 = vld [vmem:[%s7 + $0x58] sm:$0xff]
        %v3413 = vld [vmem:[%s7 + $0x60] sm:$0xff]
        %v3414 = vld [vmem:[%s7 + $0x68] sm:$0xff]
        %v3415 = vld [vmem:[%s7 + $0x70] sm:$0xff]
        %v3416 = vld [vmem:[%s7 + $0x78] sm:$0xff]
        %v3417 = vld [vmem:[%s8] sm:$0x1]
        %3418 = vmatprep.subr.mxu0 0.0
        %3419 = vmatpush1.msra.mxu0 %v3416
        %3420 = vmatprep.subr.mxu0 0.0
        %3421 = vmatpush1.msra.mxu0 %v3415
        %3422 = vmatprep.subr.mxu0 0.0
        %3423 = vmatpush1.msra.mxu0 %v3414
        %3424 = vmatprep.subr.mxu0 0.0
        %3425 = vmatpush1.msra.mxu0 %v3413
        %3426 = vmatprep.subr.mxu0 0.0
        %3427 = vmatpush1.msra.mxu0 %v3412
        %3428 = vmatprep.subr.mxu0 0.0
        %3429 = vmatpush1.msra.mxu0 %v3411
        %3430 = vmatprep.subr.mxu0 0.0
        %3431 = vmatpush1.msra.mxu0 %v3410
        %3432 = vmatprep.subr.mxu0 0.0
        %3433 = vmatpush1.msra.mxu0 %v3409
        %3434 = vmatprep.subr.mxu0 0.0
        %3435 = vmatpush1.msra.mxu0 %v3408
        %3436 = vmatprep.subr.mxu0 0.0
        %3437 = vmatpush1.msra.mxu0 %v3407
        %3438 = vmatprep.subr.mxu0 0.0
        %3439 = vmatpush1.msra.mxu0 %v3406
        %3440 = vmatprep.subr.mxu0 0.0
        %3441 = vmatpush1.msra.mxu0 %v3405
        %3442 = vmatprep.subr.mxu0 0.0
        %3443 = vmatpush1.msra.mxu0 %v3404
        %3444 = vmatprep.subr.mxu0 0.0
        %3445 = vmatpush1.msra.mxu0 %v3403
        %3446 = vmatprep.subr.mxu0 0.0
        %3447 = vmatpush1.msra.mxu0 %v3402
        %3448 = vmatprep.subr.mxu0 0.0
        %3449 = vmatpush1.msra.mxu0 %v3401
        %3450 = vmatprep.subr.mxu0 0.0
        %3451 = vmatpush2.msra.mxu0 0.0
        %3452 = vmatprep.subr.mxu0 0.0
        %3453 = vmatpush2.msra.mxu0 0.0
        %3454 = vmatprep.subr.mxu0 0.0
        %3455 = vmatpush2.msra.mxu0 0.0
        %3456 = vmatprep.subr.mxu0 0.0
        %3457 = vmatpush2.msra.mxu0 0.0
        %3458 = vmatprep.subr.mxu0 0.0
        %3459 = vmatpush2.msra.mxu0 0.0
        %3460 = vmatprep.subr.mxu0 0.0
        %3461 = vmatpush2.msra.mxu0 0.0
        %3462 = vmatprep.subr.mxu0 0.0
        %3463 = vmatpush2.msra.mxu0 0.0
        %3464 = vmatprep.subr.mxu0 0.0
        %3465 = vmatpush2.msra.mxu0 0.0
        %3466 = vmatprep.subr.mxu0 0.0
        %3467 = vmatpush2.msra.mxu0 0.0
        %3468 = vmatprep.subr.mxu0 0.0
        %3469 = vmatpush2.msra.mxu0 0.0
        %3470 = vmatprep.subr.mxu0 0.0
        %3471 = vmatpush2.msra.mxu0 0.0
        %3472 = vmatprep.subr.mxu0 0.0
        %3473 = vmatpush2.msra.mxu0 0.0
        %3474 = vmatprep.subr.mxu0 0.0
        %3475 = vmatpush2.msra.mxu0 0.0
        %3476 = vmatprep.subr.mxu0 0.0
        %3477 = vmatpush2.msra.mxu0 0.0
        %3478 = vmatprep.subr.mxu0 0.0
        %3479 = vmatpush2.msra.mxu0 0.0
        %3480 = vmatprep.subr.mxu0 0.0
        %3481 = vmatpush2.msra.mxu0 0.0
        %3482 = vmatprep.mubr.f32.mxu0 0.0
        %3483 = vmatmul.mubr.f32.gmra.mxu0 %v3400
        %v3484 = vpop.f32.mrf.mxu0
        %v3485 = vadd.f32 %v3417, %v3484
        %v3486 = vpop.f32.mrf.mxu0
        %3487 = vdwg.mxu0
        %v3488 = vmax.f32 %v3485, 0.0
        %v3489 = vld [vmem:[%s9] sm:$0xff]
        %v3490 = vld [vmem:[%s9 + $0x8] sm:$0xff]
        %v3491 = vld [vmem:[%s9 + $0x10] sm:$0xff]
        %v3492 = vld [vmem:[%s9 + $0x18] sm:$0xff]
        %v3493 = vld [vmem:[%s9 + $0x20] sm:$0xff]
        %v3494 = vld [vmem:[%s9 + $0x28] sm:$0xff]
        %v3495 = vld [vmem:[%s9 + $0x30] sm:$0xff]
        %v3496 = vld [vmem:[%s9 + $0x38] sm:$0xff]
        %v3497 = vld [vmem:[%s9 + $0x40] sm:$0xff]
        %v3498 = vld [vmem:[%s9 + $0x48] sm:$0xff]
        %v3499 = vld [vmem:[%s9 + $0x50] sm:$0xff]
        %v3500 = vld [vmem:[%s9 + $0x58] sm:$0xff]
        %v3501 = vld [vmem:[%s9 + $0x60] sm:$0xff]
        %v3502 = vld [vmem:[%s9 + $0x68] sm:$0xff]
        %v3503 = vld [vmem:[%s9 + $0x70] sm:$0xff]
        %v3504 = vld [vmem:[%s9 + $0x78] sm:$0xff]
        %v3505 = vld [vmem:[%s10] sm:$0x1]
        %3506 = vmatprep.subr.mxu0 0.0
        %3507 = vmatpush1.msra.mxu0 %v3504
        %3508 = vmatprep.subr.mxu0 0.0
        %3509 = vmatpush1.msra.mxu0 %v3503
        %3510 = vmatprep.subr.mxu0 0.0
        %3511 = vmatpush1.msra.mxu0 %v3502
        %3512 = vmatprep.subr.mxu0 0.0
        %3513 = vmatpush1.msra.mxu0 %v3501
        %3514 = vmatprep.subr.mxu0 0.0
        %3515 = vmatpush1.msra.mxu0 %v3500
        %3516 = vmatprep.subr.mxu0 0.0
        %3517 = vmatpush1.msra.mxu0 %v3499
        %3518 = vmatprep.subr.mxu0 0.0
        %3519 = vmatpush1.msra.mxu0 %v3498
        %3520 = vmatprep.subr.mxu0 0.0
        %3521 = vmatpush1.msra.mxu0 %v3497
        %3522 = vmatprep.subr.mxu0 0.0
        %3523 = vmatpush1.msra.mxu0 %v3496
        %3524 = vmatprep.subr.mxu0 0.0
        %3525 = vmatpush1.msra.mxu0 %v3495
        %3526 = vmatprep.subr.mxu0 0.0
        %3527 = vmatpush1.msra.mxu0 %v3494
        %3528 = vmatprep.subr.mxu0 0.0
        %3529 = vmatpush1.msra.mxu0 %v3493
        %3530 = vmatprep.subr.mxu0 0.0
        %3531 = vmatpush1.msra.mxu0 %v3492
        %3532 = vmatprep.subr.mxu0 0.0
        %3533 = vmatpush1.msra.mxu0 %v3491
        %3534 = vmatprep.subr.mxu0 0.0
        %3535 = vmatpush1.msra.mxu0 %v3490
        %3536 = vmatprep.subr.mxu0 0.0
        %3537 = vmatpush1.msra.mxu0 %v3489
        %3538 = vmatprep.subr.mxu0 0.0
        %3539 = vmatpush2.msra.mxu0 0.0
        %3540 = vmatprep.subr.mxu0 0.0
        %3541 = vmatpush2.msra.mxu0 0.0
        %3542 = vmatprep.subr.mxu0 0.0
        %3543 = vmatpush2.msra.mxu0 0.0
        %3544 = vmatprep.subr.mxu0 0.0
        %3545 = vmatpush2.msra.mxu0 0.0
        %3546 = vmatprep.subr.mxu0 0.0
        %3547 = vmatpush2.msra.mxu0 0.0
        %3548 = vmatprep.subr.mxu0 0.0
        %3549 = vmatpush2.msra.mxu0 0.0
        %3550 = vmatprep.subr.mxu0 0.0
        %3551 = vmatpush2.msra.mxu0 0.0
        %3552 = vmatprep.subr.mxu0 0.0
        %3553 = vmatpush2.msra.mxu0 0.0
        %3554 = vmatprep.subr.mxu0 0.0
        %3555 = vmatpush2.msra.mxu0 0.0
        %3556 = vmatprep.subr.mxu0 0.0
        %3557 = vmatpush2.msra.mxu0 0.0
        %3558 = vmatprep.subr.mxu0 0.0
        %3559 = vmatpush2.msra.mxu0 0.0
        %3560 = vmatprep.subr.mxu0 0.0
        %3561 = vmatpush2.msra.mxu0 0.0
        %3562 = vmatprep.subr.mxu0 0.0
        %3563 = vmatpush2.msra.mxu0 0.0
        %3564 = vmatprep.subr.mxu0 0.0
        %3565 = vmatpush2.msra.mxu0 0.0
        %3566 = vmatprep.subr.mxu0 0.0
        %3567 = vmatpush2.msra.mxu0 0.0
        %3568 = vmatprep.subr.mxu0 0.0
        %3569 = vmatpush2.msra.mxu0 0.0
        %3570 = vmatprep.mubr.f32.mxu0 0.0
        %3571 = vmatmul.mubr.f32.gmra.mxu0 %v3488
        %v3572 = vpop.f32.mrf.mxu0
        %v3573 = vadd.f32 %v3505, %v3572
        %v3574 = vpop.f32.mrf.mxu0
        %3575 = vdwg.mxu0
        %v3576 = vmax.f32 %v3573, 0.0
        %3577 = vst [vmem:[%s378] sm:$0x1] %v3576
        %s3578 = sand.u32 %s269, 1
        %s3579 = scalar_lea.sflag [#allocation5], %s3578
        %s3580 = sand.u32 %s269, 1
        %s3581 = scalar_lea.vmem [#allocation4], %s3580
        // Predicated region
        $region65: #{cnn_forward.1} parent=63 // pred_check
          %p3582 = pneg %p279
        $region66: #{cnn_forward.1} parent=63 // pred_check_branch
          %3584 = sbr.rel (%p3582) target = $region68
        $region67: #{cnn_forward.1} parent=63 // pred_region
          %s3586 = ssub.s32 16, 16
          %3587 = vsyncadd %s3579, %s3586
          %s3588 = smul.addr %s25, 16
          %s3589 = scalar_lea.hbm %s11, %s3588
          %s3591 = sshll.u32 %s3581, 4
          %s3592 = int_to_ptr.vmem [resolvable:$true] %s3591
          %3594 = dma.vmem_to_hbm [thread:$0]  %s3592, 16, %s3589, %s3579
        $region68: #{cnn_forward.1} parent=63 // pred_fallthru
          _
      $region64: #{cnn_forward.1} parent=5 // pred_fallthru
        _
      %p3595 = scmp.le.s32.totalorder 2, %s20
      // Predicated region
      $region69: #{cnn_forward.1} parent=5 // pred_check
        %p3596 = pneg %p3595
      $region70: #{cnn_forward.1} parent=5 // pred_check_branch
        %3598 = sbr.rel (%p3596) target = $region72
      $region71: #{cnn_forward.1} parent=5 // pred_region
        %s3599 = ssub.s32 %s20, 2
        // Predicated region
        $region73: #{cnn_forward.1} parent=71 // pred_check
          %p3600 = pneg %p285
        $region74: #{cnn_forward.1} parent=71 // pred_check_branch
          %3602 = sbr.rel (%p3600) target = $region76
        $region75: #{cnn_forward.1} parent=71 // pred_region
          %s3603 = sand.u32 %s270, 1
          %s3604 = scalar_lea.sflag [#allocation5], %s3603
          %s3605 = sand.u32 %s270, 1
          %s3606 = scalar_lea.vmem [#allocation4], %s3605
          %3607 = dma.done %s3604, 16
        $region76: #{cnn_forward.1} parent=71 // pred_fallthru
          _
      $region72: #{cnn_forward.1} parent=5 // pred_fallthru
        _
    $region6: #{cnn_forward.1} parent=1 // loop_footer
      %s24 = sadd.s32 1, %s20
    $region7: #{cnn_forward.1} parent=1 // loop_footer_branch
      %19 = sbr.rel target = $region3
    $region8: #{cnn_forward.1} parent=1 // loop_exit
      _
    %3608 = vsyncpa [#allocation5], 1
    %s3609 = scalar_lea.sflag [#allocation5], 1
    %3610 = vsyncpa %s3609, 1

</llo_original>
